<compile_context>
chip_gen: v7x
topology: tpu7x:2x2x1
jax: 0.10.0
libtpu: 0.0.40
codegen_flags: <defaults>
</compile_context>

<pallas_src>
import functools
import math

import jax
import jax.numpy as jnp
from jax.experimental import pallas as pl
from jax.experimental.pallas import tpu as pltpu

_H1, _H2, _H3 = 256, 512, 256
_LANE = 128
_PARAM_ORDER = ("w1", "b1", "w2", "b2", "w3", "b3", "w4", "b4")


def _epilogue_dtype():
    """bf16 bias/ReLU epilogue on bf16-VPU chips (v6e/v7x); f32 elsewhere."""
    try:
        kind = jax.devices()[0].device_kind.lower()
    except Exception:
        return jnp.float32
    if any(tag in kind for tag in ("v2", "v3", "v4", "v5")):
        return jnp.float32          # no bf16 VPU arithmetic on these chips
    return jnp.bfloat16             # v6e / v7x


# ----------------------------------------------------------------------------
# Kernel
# ----------------------------------------------------------------------------
def _mlp_kernel(x_ref,
                w1_ref, b1_ref,
                w2_ref, b2_ref,
                w3_ref, b3_ref,
                w4_ref, b4_ref,
                o_ref, *, ep_dtype):
    # Activations cast to bf16 right before each MXU dot; accumulation in f32.
    # Bias add / ReLU epilogue runs in `ep_dtype` (bf16 on v6e/v7x, f32 on v5e).
    x = x_ref[...].astype(jnp.bfloat16)

    h = jnp.dot(x, w1_ref[...], preferred_element_type=jnp.float32)
    h = jnp.maximum(h.astype(ep_dtype) + b1_ref[...], 0.0).astype(jnp.bfloat16)

    h = jnp.dot(h, w2_ref[...], preferred_element_type=jnp.float32)
    h = jnp.maximum(h.astype(ep_dtype) + b2_ref[...], 0.0).astype(jnp.bfloat16)

    h = jnp.dot(h, w3_ref[...], preferred_element_type=jnp.float32)
    h = jnp.maximum(h.astype(ep_dtype) + b3_ref[...], 0.0).astype(jnp.bfloat16)

    out = jnp.dot(h, w4_ref[...], preferred_element_type=jnp.float32) + b4_ref[...]
    o_ref[...] = out.astype(o_ref.dtype)


def _build_pallas_call(tb, grid_n, in_feat, n_out_pad, b_pad, params,
                       vmem_limit, cost, ep_dtype, single_buffer_weights):
    def _const(i):
        return (0, 0)

    if single_buffer_weights:
        # Constant index_map -> weights stay VMEM-resident; single-buffer them
        # so they don't pay a 2x VMEM footprint for nothing.
        w_specs = [pl.BlockSpec(params[k].shape, _const,
                                pipeline_mode=pl.Buffered(1))
                   for k in _PARAM_ORDER]
    else:
        w_specs = [pl.BlockSpec(params[k].shape, _const) for k in _PARAM_ORDER]

    x_spec = pl.BlockSpec((tb, in_feat), lambda i: (i, 0))
    out_spec = pl.BlockSpec((tb, n_out_pad), lambda i: (i, 0))

    return pl.pallas_call(
        functools.partial(_mlp_kernel, ep_dtype=ep_dtype),
        out_shape=jax.ShapeDtypeStruct((b_pad, n_out_pad), jnp.float32),
        grid=(grid_n,),
        in_specs=[x_spec] + w_specs,
        out_specs=out_spec,
        compiler_params=pltpu.CompilerParams(
            dimension_semantics=("parallel",),     # shards batch over TCs on v7x
            vmem_limit_bytes=vmem_limit),
        cost_estimate=cost,
    )


# ----------------------------------------------------------------------------
# Wrapper
# ----------------------------------------------------------------------------
def linear_dqn_forward(state, params, *, out_dim, batch_tile=512):
    """state: (B, C, H, W).  params: dict w1..w4 (bf16), b1..b3 (epilogue
    dtype), b4 (f32, lane-padded).  Returns (B, out_dim) float32 Q-values."""
    B = state.shape[0]
    x = state.reshape(B, -1)                      # T.flatten(state, start_dim=1)
    if x.dtype not in (jnp.float32, jnp.bfloat16):
        x = x.astype(jnp.float32)
    in_feat = x.shape[1]
    assert params["w1"].shape[0] == in_feat, "flattened features != w1 fan_in"

    n_out_pad = params["w4"].shape[1]             # lane-padded output width
    ep_dtype = params["b1"].dtype                 # epilogue dtype baked in params

    # --- Batch tiling: always >= 2 grid steps (feeds both v7x TCs) -----------
    tb = batch_tile
    if B <= tb:
        tb = max(8, (((B + 1) // 2 + 7) // 8) * 8)    # round8(ceil(B/2))
        grid_n = 2
    else:
        grid_n = -(-B // tb)
    b_pad = grid_n * tb
    if b_pad != B:
        # TODO(synk): tail-only padding still copies x in HBM; for large B pick
        # a batch divisible by batch_tile (or mask the ragged tail in-kernel).
        x = jnp.pad(x, ((0, b_pad - B), (0, 0)))

    # --- VMEM budget (explicit so v5e's 16 MiB scoped default doesn't bind) --
    weight_bytes = sum(int(params[k].size) * params[k].dtype.itemsize
                       for k in _PARAM_ORDER)
    need = (2 * tb * in_feat * x.dtype.itemsize   # x double buffer
            + 2 * weight_bytes                    # weights (worst case 2x)
            + 2 * tb * n_out_pad * 4              # output double buffer
            + 6 * tb * _H2 * 4)                   # activation temporaries
    vmem_limit = int(min(max(int(need * 1.25) + (4 << 20), 32 << 20), 100 << 20))

    # --- Cost estimate (advisory) --------------------------------------------
    flops = 2 * b_pad * (in_feat * _H1 + _H1 * _H2 + _H2 * _H3 + _H3 * n_out_pad)
    bytes_accessed = int(x.size * x.dtype.itemsize + weight_bytes
                         + b_pad * n_out_pad * 4)
    cost = pl.CostEstimate(flops=int(flops), transcendentals=0,
                           bytes_accessed=bytes_accessed)

    call_args = (x,) + tuple(params[k] for k in _PARAM_ORDER)
    try:
        out_pad = _build_pallas_call(tb, grid_n, in_feat, n_out_pad, b_pad,
                                     params, vmem_limit, cost, ep_dtype,
                                     single_buffer_weights=True)(*call_args)
    except Exception:
        # Fallback: jax version without BlockSpec pipeline_mode / pl.Buffered.
        out_pad = _build_pallas_call(tb, grid_n, in_feat, n_out_pad, b_pad,
                                     params, vmem_limit, cost, ep_dtype,
                                     single_buffer_weights=False)(*call_args)

    return out_pad[:B, :out_dim]


# ----------------------------------------------------------------------------
# Parameter init (PyTorch nn.Linear default init, (in, out) storage)
# ----------------------------------------------------------------------------
def _init_linear(key, fan_in, fan_out, *, bias_dtype, pad_out=None):
    kw, kb = jax.random.split(key)
    bound = 1.0 / math.sqrt(fan_in)
    w = jax.random.uniform(kw, (fan_in, fan_out), jnp.float32, -bound, bound)
    b = jax.random.uniform(kb, (1, fan_out), jnp.float32, -bound, bound)
    if pad_out is not None and pad_out > fan_out:
        w = jnp.pad(w, ((0, 0), (0, pad_out - fan_out)))   # zero columns
        b = jnp.pad(b, ((0, 0), (0, pad_out - fan_out)))
    return w.astype(jnp.bfloat16), b.astype(bias_dtype)


def make_params(input_dim, output_dim, key, *, epilogue_dtype=jnp.float32):
    # Spec uses input_dim[1] * input_dim[2] as in_features, which matches the
    # flattened input only when input_dim[0] (channels) == 1.
    assert input_dim[0] == 1, "LinearDQN spec assumes a single channel"
    in_feat = input_dim[1] * input_dim[2]
    n_out_pad = ((output_dim + _LANE - 1) // _LANE) * _LANE   # lane-dense output
    keys = jax.random.split(key, 4)
    w1, b1 = _init_linear(keys[0], in_feat, _H1, bias_dtype=epilogue_dtype)
    w2, b2 = _init_linear(keys[1], _H1, _H2, bias_dtype=epilogue_dtype)
    w3, b3 = _init_linear(keys[2], _H2, _H3, bias_dtype=epilogue_dtype)
    w4, b4 = _init_linear(keys[3], _H3, output_dim, bias_dtype=jnp.float32,
                          pad_out=n_out_pad)
    return dict(w1=w1, b1=b1, w2=w2, b2=b2, w3=w3, b3=b3, w4=w4, b4=b4)


def _reference_forward(state, params, out_dim):
    """Pure-JAX reference mirroring the kernel's mixed precision exactly."""
    ep_dtype = params["b1"].dtype
    x = state.reshape(state.shape[0], -1).astype(jnp.bfloat16)
    h = jnp.dot(x, params["w1"], preferred_element_type=jnp.float32)
    h = jnp.maximum(h.astype(ep_dtype) + params["b1"], 0.0).astype(jnp.bfloat16)
    h = jnp.dot(h, params["w2"], preferred_element_type=jnp.float32)
    h = jnp.maximum(h.astype(ep_dtype) + params["b2"], 0.0).astype(jnp.bfloat16)
    h = jnp.dot(h, params["w3"], preferred_element_type=jnp.float32)
    h = jnp.maximum(h.astype(ep_dtype) + params["b3"], 0.0).astype(jnp.bfloat16)
    out = jnp.dot(h, params["w4"], preferred_element_type=jnp.float32) + params["b4"]
    return out[:, :out_dim].astype(jnp.float32)


if __name__ == "__main__":
    key = jax.random.PRNGKey(0)
    k_param, k_state = jax.random.split(key)

    input_dim = (1, 8, 16)   # (C, H, W) -> in_features = 8 * 16 = 128
    output_dim = 4           # number of actions
    batch = 2

    ep_dtype = _epilogue_dtype()
    params = make_params(input_dim, output_dim, k_param, epilogue_dtype=ep_dtype)
    state = jax.random.normal(k_state, (batch,) + input_dim, jnp.float32)

    qvals = jax.block_until_ready(
        linear_dqn_forward(state, params, out_dim=output_dim))

    ref = _reference_forward(state, params, output_dim)
    assert qvals.shape == (batch, output_dim)
    assert jnp.allclose(qvals, ref, atol=2e-2, rtol=2e-2), (
        float(jnp.max(jnp.abs(qvals - ref))))

    print("KERNEL_OK")
</pallas_src>

<mosaic_0001>
module attributes {stable_mosaic.version = 11 : i64} {
  func.func @_mlp_kernel(%arg0: i32, %arg1: memref<8x128xf32, #tpu.memory_space<vmem>>, %arg2: memref<128x256xbf16, #tpu.memory_space<vmem>>, %arg3: memref<1x256xbf16, #tpu.memory_space<vmem>>, %arg4: memref<256x512xbf16, #tpu.memory_space<vmem>>, %arg5: memref<1x512xbf16, #tpu.memory_space<vmem>>, %arg6: memref<512x256xbf16, #tpu.memory_space<vmem>>, %arg7: memref<1x256xbf16, #tpu.memory_space<vmem>>, %arg8: memref<256x128xbf16, #tpu.memory_space<vmem>>, %arg9: memref<1x128xf32, #tpu.memory_space<vmem>>, %arg10: memref<8x128xf32, #tpu.memory_space<vmem>>) attributes {dimension_semantics = [#tpu.dimension_semantics<parallel>], iteration_bounds = array<i64: 2>, scalar_prefetch = 0 : i64, scratch_operands = 0 : i64, tpu.core_type = #tpu.core_type<tc>, window_params = [{transform_indices = @transform_0, window_bounds = array<i64: 8, 128>}, {pipeline_mode = #tpu.pipeline_mode<synchronous>, transform_indices = @transform_1, window_bounds = array<i64: 128, 256>}, {pipeline_mode = #tpu.pipeline_mode<synchronous>, transform_indices = @transform_2, window_bounds = array<i64: 1, 256>}, {pipeline_mode = #tpu.pipeline_mode<synchronous>, transform_indices = @transform_3, window_bounds = array<i64: 256, 512>}, {pipeline_mode = #tpu.pipeline_mode<synchronous>, transform_indices = @transform_4, window_bounds = array<i64: 1, 512>}, {pipeline_mode = #tpu.pipeline_mode<synchronous>, transform_indices = @transform_5, window_bounds = array<i64: 512, 256>}, {pipeline_mode = #tpu.pipeline_mode<synchronous>, transform_indices = @transform_6, window_bounds = array<i64: 1, 256>}, {pipeline_mode = #tpu.pipeline_mode<synchronous>, transform_indices = @transform_7, window_bounds = array<i64: 256, 128>}, {pipeline_mode = #tpu.pipeline_mode<synchronous>, transform_indices = @transform_8, window_bounds = array<i64: 1, 128>}, {transform_indices = @transform_9, window_bounds = array<i64: 8, 128>}]} {
    %c0 = arith.constant 0 : index
    %c0_0 = arith.constant 0 : index
    %0 = vector.load %arg1[%c0, %c0_0] : memref<8x128xf32, #tpu.memory_space<vmem>>, vector<8x128xf32>
    %1 = arith.truncf %0 : vector<8x128xf32> to vector<8x128xbf16>
    %c0_1 = arith.constant 0 : index
    %c0_2 = arith.constant 0 : index
    %2 = vector.load %arg2[%c0_1, %c0_2] : memref<128x256xbf16, #tpu.memory_space<vmem>>, vector<128x256xbf16>
    %cst = arith.constant dense<0.000000e+00> : vector<8x256xf32>
    %3 = tpu.matmul %1, %2, %cst {dimension_numbers = #tpu.dot_dimension_numbers<[1], [0], [0], [1], [0, 0, 1, 1], [], []>} : vector<8x128xbf16>, vector<128x256xbf16>, vector<8x256xf32> -> vector<8x256xf32>
    %4 = arith.truncf %3 : vector<8x256xf32> to vector<8x256xbf16>
    %c0_3 = arith.constant 0 : index
    %c0_4 = arith.constant 0 : index
    %5 = vector.load %arg3[%c0_3, %c0_4] : memref<1x256xbf16, #tpu.memory_space<vmem>>, vector<1x256xbf16>
    %6 = vector.broadcast %5 : vector<1x256xbf16> to vector<8x256xbf16>
    %7 = arith.addf %4, %6 : vector<8x256xbf16>
    %cst_5 = arith.constant 0.000000e+00 : bf16
    %8 = vector.broadcast %cst_5 : bf16 to vector<8x256xbf16>
    %9 = arith.maximumf %7, %8 : vector<8x256xbf16>
    %c0_6 = arith.constant 0 : index
    %c0_7 = arith.constant 0 : index
    %10 = vector.load %arg4[%c0_6, %c0_7] : memref<256x512xbf16, #tpu.memory_space<vmem>>, vector<256x512xbf16>
    %cst_8 = arith.constant dense<0.000000e+00> : vector<8x512xf32>
    %11 = tpu.matmul %9, %10, %cst_8 {dimension_numbers = #tpu.dot_dimension_numbers<[1], [0], [0], [1], [0, 0, 1, 1], [], []>} : vector<8x256xbf16>, vector<256x512xbf16>, vector<8x512xf32> -> vector<8x512xf32>
    %12 = arith.truncf %11 : vector<8x512xf32> to vector<8x512xbf16>
    %c0_9 = arith.constant 0 : index
    %c0_10 = arith.constant 0 : index
    %13 = vector.load %arg5[%c0_9, %c0_10] : memref<1x512xbf16, #tpu.memory_space<vmem>>, vector<1x512xbf16>
    %14 = vector.broadcast %13 : vector<1x512xbf16> to vector<8x512xbf16>
    %15 = arith.addf %12, %14 : vector<8x512xbf16>
    %cst_11 = arith.constant 0.000000e+00 : bf16
    %16 = vector.broadcast %cst_11 : bf16 to vector<8x512xbf16>
    %17 = arith.maximumf %15, %16 : vector<8x512xbf16>
    %c0_12 = arith.constant 0 : index
    %c0_13 = arith.constant 0 : index
    %18 = vector.load %arg6[%c0_12, %c0_13] : memref<512x256xbf16, #tpu.memory_space<vmem>>, vector<512x256xbf16>
    %cst_14 = arith.constant dense<0.000000e+00> : vector<8x256xf32>
    %19 = tpu.matmul %17, %18, %cst_14 {dimension_numbers = #tpu.dot_dimension_numbers<[1], [0], [0], [1], [0, 0, 1, 1], [], []>} : vector<8x512xbf16>, vector<512x256xbf16>, vector<8x256xf32> -> vector<8x256xf32>
    %20 = arith.truncf %19 : vector<8x256xf32> to vector<8x256xbf16>
    %c0_15 = arith.constant 0 : index
    %c0_16 = arith.constant 0 : index
    %21 = vector.load %arg7[%c0_15, %c0_16] : memref<1x256xbf16, #tpu.memory_space<vmem>>, vector<1x256xbf16>
    %22 = vector.broadcast %21 : vector<1x256xbf16> to vector<8x256xbf16>
    %23 = arith.addf %20, %22 : vector<8x256xbf16>
    %cst_17 = arith.constant 0.000000e+00 : bf16
    %24 = vector.broadcast %cst_17 : bf16 to vector<8x256xbf16>
    %25 = arith.maximumf %23, %24 : vector<8x256xbf16>
    %c0_18 = arith.constant 0 : index
    %c0_19 = arith.constant 0 : index
    %26 = vector.load %arg8[%c0_18, %c0_19] : memref<256x128xbf16, #tpu.memory_space<vmem>>, vector<256x128xbf16>
    %cst_20 = arith.constant dense<0.000000e+00> : vector<8x128xf32>
    %27 = tpu.matmul %25, %26, %cst_20 {dimension_numbers = #tpu.dot_dimension_numbers<[1], [0], [0], [1], [0, 0, 1, 1], [], []>} : vector<8x256xbf16>, vector<256x128xbf16>, vector<8x128xf32> -> vector<8x128xf32>
    %c0_21 = arith.constant 0 : index
    %c0_22 = arith.constant 0 : index
    %28 = vector.load %arg9[%c0_21, %c0_22] : memref<1x128xf32, #tpu.memory_space<vmem>>, vector<1x128xf32>
    %29 = vector.broadcast %28 : vector<1x128xf32> to vector<8x128xf32>
    %30 = arith.addf %27, %29 : vector<8x128xf32>
    %c0_23 = arith.constant 0 : index
    %c0_24 = arith.constant 0 : index
    %31 = vector.load %arg10[%c0_23, %c0_24] : memref<8x128xf32, #tpu.memory_space<vmem>>, vector<8x128xf32>
    tpu.vector_store %arg10[%c0_23, %c0_24], %30 {strides = array<i32>} : memref<8x128xf32, #tpu.memory_space<vmem>>, vector<8x128xf32>,
    return
  }
  func.func @transform_0(%arg0: i32) -> (i32, i32) {
    %c0_i32 = arith.constant 0 : i32
    %c0_i32_0 = arith.constant 0 : i32
    return %arg0, %c0_i32 : i32, i32
  }
  func.func @transform_1(%arg0: i32) -> (i32, i32) {
    %c0_i32 = arith.constant 0 : i32
    %c0_i32_0 = arith.constant 0 : i32
    %c0_i32_1 = arith.constant 0 : i32
    return %c0_i32, %c0_i32_0 : i32, i32
  }
  func.func @transform_2(%arg0: i32) -> (i32, i32) {
    %c0_i32 = arith.constant 0 : i32
    %c0_i32_0 = arith.constant 0 : i32
    %c0_i32_1 = arith.constant 0 : i32
    return %c0_i32, %c0_i32_0 : i32, i32
  }
  func.func @transform_3(%arg0: i32) -> (i32, i32) {
    %c0_i32 = arith.constant 0 : i32
    %c0_i32_0 = arith.constant 0 : i32
    %c0_i32_1 = arith.constant 0 : i32
    return %c0_i32, %c0_i32_0 : i32, i32
  }
  func.func @transform_4(%arg0: i32) -> (i32, i32) {
    %c0_i32 = arith.constant 0 : i32
    %c0_i32_0 = arith.constant 0 : i32
    %c0_i32_1 = arith.constant 0 : i32
    return %c0_i32, %c0_i32_0 : i32, i32
  }
  func.func @transform_5(%arg0: i32) -> (i32, i32) {
    %c0_i32 = arith.constant 0 : i32
    %c0_i32_0 = arith.constant 0 : i32
    %c0_i32_1 = arith.constant 0 : i32
    return %c0_i32, %c0_i32_0 : i32, i32
  }
  func.func @transform_6(%arg0: i32) -> (i32, i32) {
    %c0_i32 = arith.constant 0 : i32
    %c0_i32_0 = arith.constant 0 : i32
    %c0_i32_1 = arith.constant 0 : i32
    return %c0_i32, %c0_i32_0 : i32, i32
  }
  func.func @transform_7(%arg0: i32) -> (i32, i32) {
    %c0_i32 = arith.constant 0 : i32
    %c0_i32_0 = arith.constant 0 : i32
    %c0_i32_1 = arith.constant 0 : i32
    return %c0_i32, %c0_i32_0 : i32, i32
  }
  func.func @transform_8(%arg0: i32) -> (i32, i32) {
    %c0_i32 = arith.constant 0 : i32
    %c0_i32_0 = arith.constant 0 : i32
    %c0_i32_1 = arith.constant 0 : i32
    return %c0_i32, %c0_i32_0 : i32, i32
  }
  func.func @transform_9(%arg0: i32) -> (i32, i32) {
    %c0_i32 = arith.constant 0 : i32
    %c0_i32_0 = arith.constant 0 : i32
    return %arg0, %c0_i32 : i32, i32
  }
}

module attributes {stable_mosaic.version = 11 : i64} {
  func.func @_mlp_kernel(%arg0: i32, %arg1: memref<8x128xf32, #tpu.memory_space<vmem>>, %arg2: memref<128x256xbf16, #tpu.memory_space<vmem>>, %arg3: memref<1x256xbf16, #tpu.memory_space<vmem>>, %arg4: memref<256x512xbf16, #tpu.memory_space<vmem>>, %arg5: memref<1x512xbf16, #tpu.memory_space<vmem>>, %arg6: memref<512x256xbf16, #tpu.memory_space<vmem>>, %arg7: memref<1x256xbf16, #tpu.memory_space<vmem>>, %arg8: memref<256x128xbf16, #tpu.memory_space<vmem>>, %arg9: memref<1x128xf32, #tpu.memory_space<vmem>>, %arg10: memref<8x128xf32, #tpu.memory_space<vmem>>) attributes {dimension_semantics = [#tpu.dimension_semantics<parallel>], iteration_bounds = array<i64: 2>, scalar_prefetch = 0 : i64, scratch_operands = 0 : i64, tpu.core_type = #tpu.core_type<tc>, window_params = [{transform_indices = @transform_0, window_bounds = array<i64: 8, 128>}, {pipeline_mode = #tpu.pipeline_mode<synchronous>, transform_indices = @transform_1, window_bounds = array<i64: 128, 256>}, {pipeline_mode = #tpu.pipeline_mode<synchronous>, transform_indices = @transform_2, window_bounds = array<i64: 1, 256>}, {pipeline_mode = #tpu.pipeline_mode<synchronous>, transform_indices = @transform_3, window_bounds = array<i64: 256, 512>}, {pipeline_mode = #tpu.pipeline_mode<synchronous>, transform_indices = @transform_4, window_bounds = array<i64: 1, 512>}, {pipeline_mode = #tpu.pipeline_mode<synchronous>, transform_indices = @transform_5, window_bounds = array<i64: 512, 256>}, {pipeline_mode = #tpu.pipeline_mode<synchronous>, transform_indices = @transform_6, window_bounds = array<i64: 1, 256>}, {pipeline_mode = #tpu.pipeline_mode<synchronous>, transform_indices = @transform_7, window_bounds = array<i64: 256, 128>}, {pipeline_mode = #tpu.pipeline_mode<synchronous>, transform_indices = @transform_8, window_bounds = array<i64: 1, 128>}, {transform_indices = @transform_9, window_bounds = array<i64: 8, 128>}]} {
    %c0 = arith.constant 0 : index
    %c0_0 = arith.constant 0 : index
    %0 = vector.load %arg1[%c0, %c0_0] : memref<8x128xf32, #tpu.memory_space<vmem>>, vector<8x128xf32>
    %1 = arith.truncf %0 : vector<8x128xf32> to vector<8x128xbf16>
    %c0_1 = arith.constant 0 : index
    %c0_2 = arith.constant 0 : index
    %2 = vector.load %arg2[%c0_1, %c0_2] : memref<128x256xbf16, #tpu.memory_space<vmem>>, vector<128x256xbf16>
    %cst = arith.constant dense<0.000000e+00> : vector<8x256xf32>
    %3 = tpu.matmul %1, %2, %cst {dimension_numbers = #tpu.dot_dimension_numbers<[1], [0], [0], [1], [0, 0, 1, 1], [], []>} : vector<8x128xbf16>, vector<128x256xbf16>, vector<8x256xf32> -> vector<8x256xf32>
    %4 = arith.truncf %3 : vector<8x256xf32> to vector<8x256xbf16>
    %c0_3 = arith.constant 0 : index
    %c0_4 = arith.constant 0 : index
    %5 = vector.load %arg3[%c0_3, %c0_4] : memref<1x256xbf16, #tpu.memory_space<vmem>>, vector<1x256xbf16>
    %6 = vector.broadcast %5 : vector<1x256xbf16> to vector<8x256xbf16>
    %7 = arith.addf %4, %6 : vector<8x256xbf16>
    %cst_5 = arith.constant 0.000000e+00 : bf16
    %8 = vector.broadcast %cst_5 : bf16 to vector<8x256xbf16>
    %9 = arith.maximumf %7, %8 : vector<8x256xbf16>
    %c0_6 = arith.constant 0 : index
    %c0_7 = arith.constant 0 : index
    %10 = vector.load %arg4[%c0_6, %c0_7] : memref<256x512xbf16, #tpu.memory_space<vmem>>, vector<256x512xbf16>
    %cst_8 = arith.constant dense<0.000000e+00> : vector<8x512xf32>
    %11 = tpu.matmul %9, %10, %cst_8 {dimension_numbers = #tpu.dot_dimension_numbers<[1], [0], [0], [1], [0, 0, 1, 1], [], []>} : vector<8x256xbf16>, vector<256x512xbf16>, vector<8x512xf32> -> vector<8x512xf32>
    %12 = arith.truncf %11 : vector<8x512xf32> to vector<8x512xbf16>
    %c0_9 = arith.constant 0 : index
    %c0_10 = arith.constant 0 : index
    %13 = vector.load %arg5[%c0_9, %c0_10] : memref<1x512xbf16, #tpu.memory_space<vmem>>, vector<1x512xbf16>
    %14 = vector.broadcast %13 : vector<1x512xbf16> to vector<8x512xbf16>
    %15 = arith.addf %12, %14 : vector<8x512xbf16>
    %cst_11 = arith.constant 0.000000e+00 : bf16
    %16 = vector.broadcast %cst_11 : bf16 to vector<8x512xbf16>
    %17 = arith.maximumf %15, %16 : vector<8x512xbf16>
    %c0_12 = arith.constant 0 : index
    %c0_13 = arith.constant 0 : index
    %18 = vector.load %arg6[%c0_12, %c0_13] : memref<512x256xbf16, #tpu.memory_space<vmem>>, vector<512x256xbf16>
    %cst_14 = arith.constant dense<0.000000e+00> : vector<8x256xf32>
    %19 = tpu.matmul %17, %18, %cst_14 {dimension_numbers = #tpu.dot_dimension_numbers<[1], [0], [0], [1], [0, 0, 1, 1], [], []>} : vector<8x512xbf16>, vector<512x256xbf16>, vector<8x256xf32> -> vector<8x256xf32>
    %20 = arith.truncf %19 : vector<8x256xf32> to vector<8x256xbf16>
    %c0_15 = arith.constant 0 : index
    %c0_16 = arith.constant 0 : index
    %21 = vector.load %arg7[%c0_15, %c0_16] : memref<1x256xbf16, #tpu.memory_space<vmem>>, vector<1x256xbf16>
    %22 = vector.broadcast %21 : vector<1x256xbf16> to vector<8x256xbf16>
    %23 = arith.addf %20, %22 : vector<8x256xbf16>
    %cst_17 = arith.constant 0.000000e+00 : bf16
    %24 = vector.broadcast %cst_17 : bf16 to vector<8x256xbf16>
    %25 = arith.maximumf %23, %24 : vector<8x256xbf16>
    %c0_18 = arith.constant 0 : index
    %c0_19 = arith.constant 0 : index
    %26 = vector.load %arg8[%c0_18, %c0_19] : memref<256x128xbf16, #tpu.memory_space<vmem>>, vector<256x128xbf16>
    %cst_20 = arith.constant dense<0.000000e+00> : vector<8x128xf32>
    %27 = tpu.matmul %25, %26, %cst_20 {dimension_numbers = #tpu.dot_dimension_numbers<[1], [0], [0], [1], [0, 0, 1, 1], [], []>} : vector<8x256xbf16>, vector<256x128xbf16>, vector<8x128xf32> -> vector<8x128xf32>
    %c0_21 = arith.constant 0 : index
    %c0_22 = arith.constant 0 : index
    %28 = vector.load %arg9[%c0_21, %c0_22] : memref<1x128xf32, #tpu.memory_space<vmem>>, vector<1x128xf32>
    %29 = vector.broadcast %28 : vector<1x128xf32> to vector<8x128xf32>
    %30 = arith.addf %27, %29 : vector<8x128xf32>
    %c0_23 = arith.constant 0 : index
    %c0_24 = arith.constant 0 : index
    %31 = vector.load %arg10[%c0_23, %c0_24] : memref<8x128xf32, #tpu.memory_space<vmem>>, vector<8x128xf32>
    tpu.vector_store %arg10[%c0_23, %c0_24], %30 {strides = array<i32>} : memref<8x128xf32, #tpu.memory_space<vmem>>, vector<8x128xf32>,
    return
  }
  func.func @transform_0(%arg0: i32) -> (i32, i32) {
    %c0_i32 = arith.constant 0 : i32
    %c0_i32_0 = arith.constant 0 : i32
    return %arg0, %c0_i32 : i32, i32
  }
  func.func @transform_1(%arg0: i32) -> (i32, i32) {
    %c0_i32 = arith.constant 0 : i32
    %c0_i32_0 = arith.constant 0 : i32
    %c0_i32_1 = arith.constant 0 : i32
    return %c0_i32, %c0_i32_0 : i32, i32
  }
  func.func @transform_2(%arg0: i32) -> (i32, i32) {
    %c0_i32 = arith.constant 0 : i32
    %c0_i32_0 = arith.constant 0 : i32
    %c0_i32_1 = arith.constant 0 : i32
    return %c0_i32, %c0_i32_0 : i32, i32
  }
  func.func @transform_3(%arg0: i32) -> (i32, i32) {
    %c0_i32 = arith.constant 0 : i32
    %c0_i32_0 = arith.constant 0 : i32
    %c0_i32_1 = arith.constant 0 : i32
    return %c0_i32, %c0_i32_0 : i32, i32
  }
  func.func @transform_4(%arg0: i32) -> (i32, i32) {
    %c0_i32 = arith.constant 0 : i32
    %c0_i32_0 = arith.constant 0 : i32
    %c0_i32_1 = arith.constant 0 : i32
    return %c0_i32, %c0_i32_0 : i32, i32
  }
  func.func @transform_5(%arg0: i32) -> (i32, i32) {
    %c0_i32 = arith.constant 0 : i32
    %c0_i32_0 = arith.constant 0 : i32
    %c0_i32_1 = arith.constant 0 : i32
    return %c0_i32, %c0_i32_0 : i32, i32
  }
  func.func @transform_6(%arg0: i32) -> (i32, i32) {
    %c0_i32 = arith.constant 0 : i32
    %c0_i32_0 = arith.constant 0 : i32
    %c0_i32_1 = arith.constant 0 : i32
    return %c0_i32, %c0_i32_0 : i32, i32
  }
  func.func @transform_7(%arg0: i32) -> (i32, i32) {
    %c0_i32 = arith.constant 0 : i32
    %c0_i32_0 = arith.constant 0 : i32
    %c0_i32_1 = arith.constant 0 : i32
    return %c0_i32, %c0_i32_0 : i32, i32
  }
  func.func @transform_8(%arg0: i32) -> (i32, i32) {
    %c0_i32 = arith.constant 0 : i32
    %c0_i32_0 = arith.constant 0 : i32
    %c0_i32_1 = arith.constant 0 : i32
    return %c0_i32, %c0_i32_0 : i32, i32
  }
  func.func @transform_9(%arg0: i32) -> (i32, i32) {
    %c0_i32 = arith.constant 0 : i32
    %c0_i32_0 = arith.constant 0 : i32
    return %arg0, %c0_i32 : i32, i32
  }
}

</mosaic_0001>

<llo_original>
// kernel: tpu_custom_call.1
$region0: #{tpu_custom_call.1}
  #allocation0 [shape = 'u32[]', space=smem, size = 0x4, offset = 0x4, fixed_abs, tag = 'smem constant byte address 0x4 - core index']
  #allocation1 [shape = 'u32[144,128]{1,0:T(1,128)}', space=vmem, size = 0x12000, scoped, tag = 'internal scratch']
  %s0 = inlined_call_operand.hbm [shape: f32[16,128], index: 0, kind: input, shape index: {}]
  %s1 = inlined_call_operand.hbm [shape: bf16[128,256], index: 1, kind: input, shape index: {}]
  %s2 = inlined_call_operand.vmem [shape: bf16[1,256], index: 2, kind: input, shape index: {}]
  %s3 = inlined_call_operand.hbm [shape: bf16[256,512], index: 3, kind: input, shape index: {}]
  %s4 = inlined_call_operand.vmem [shape: bf16[1,512], index: 4, kind: input, shape index: {}]
  %s5 = inlined_call_operand.hbm [shape: bf16[512,256], index: 5, kind: input, shape index: {}]
  %s6 = inlined_call_operand.vmem [shape: bf16[1,256], index: 6, kind: input, shape index: {}]
  %s7 = inlined_call_operand.hbm [shape: bf16[256,128], index: 7, kind: input, shape index: {}]
  %s8 = inlined_call_operand.vmem [shape: f32[1,128], index: 8, kind: input, shape index: {}]
  %s9 = inlined_call_operand.hbm [shape: f32[16,128], index: 9, kind: output, shape index: {}]
  %s10 = sld [smem:[#allocation0]]
  $region89: #{tpu_custom_call.1} parent=0
    _
  %s12 = ssub.s32 1, %s10
  %s13 = scalar_select 0, %s12, %s10
  $region1: #{tpu_custom_call.1} parent=0
    #allocation2 [shape = 'u8[8192]{0}', space=vmem, size = 0x2000, scoped, tag = 'input window, operand 0']
    #allocation3 [shape = 's32[2]{0}', space=sflag, size = 0x8, scoped, tag = 'scoped memory for tpu_custom_call.1']
    #allocation4 [shape = 's32[2]{0}', space=sflag, size = 0x8, scoped, tag = 'scoped memory for tpu_custom_call.1']
    #allocation5 [shape = 'u8[65536]{0}', space=vmem, size = 0x10000, scoped, tag = 'input window, operand 1, single buffered']
    #allocation6 [shape = 's32[1]{0}', space=sflag, size = 0x4, scoped, tag = 'scoped memory for tpu_custom_call.1']
    #allocation7 [shape = 'u8[262144]{0}', space=vmem, size = 0x40000, scoped, tag = 'input window, operand 3, single buffered']
    #allocation8 [shape = 'u8[262144]{0}', space=vmem, size = 0x40000, scoped, tag = 'input window, operand 5, single buffered']
    #allocation9 [shape = 's32[1]{0}', space=sflag, size = 0x4, scoped, tag = 'scoped memory for tpu_custom_call.1']
    #allocation10 [shape = 'u8[65536]{0}', space=vmem, size = 0x10000, scoped, tag = 'input window, operand 7, single buffered']
    #allocation11 [shape = 'u8[8192]{0}', space=vmem, size = 0x2000, scoped, tag = 'output window, operand 0']
    %14 = vsyncpa [#allocation3], 0
    %s15 = scalar_lea.sflag [#allocation3], 1
    %16 = vsyncpa %s15, 0
    %17 = vsyncpa [#allocation6], 0
    %18 = vsyncpa [#allocation9], 0
    %19 = vsyncpa [#allocation4], 0
    %s20 = scalar_lea.sflag [#allocation4], 1
    %21 = vsyncpa %s20, 0
    loop: start=0, step=1, limit=4
    $region2: #{tpu_custom_call.1} parent=1 // loop_pre_header
      _
    $region3: #{tpu_custom_call.1} parent=1 // loop_header
      %s23 = sphi 0, %s27
      %p24 = scmp.ge.s32.totalorder %s23, 4
      %s33 = sphi 0, %s35
      %s36 = sphi 0, %s33
      %s37 = sphi 0, %s36
      %s53 = sphi 0, %s37
      %s57 = sphi 0, %s57
      %s59 = sphi 0, %s57
      %s60 = sphi 0, %s59
      %s74 = sphi 0, %s60
      %s78 = sphi 0, %s78
      %s80 = sphi 0, %s78
      %s81 = sphi 0, %s80
      %s95 = sphi 0, %s81
      %s99 = sphi 0, %s99
      %s101 = sphi 0, %s99
      %s102 = sphi 0, %s101
      %s116 = sphi 0, %s102
      %s120 = sphi 0, %s120
      %s122 = sphi 0, %s120
      %s123 = sphi 0, %s122
      %s137 = sphi 0, %s123
      %s141 = sphi 0, %s141
      %s143 = sphi 0, %s141
      %s144 = sphi 0, %s143
      %s158 = sphi 0, %s144
      %s162 = sphi 0, %s162
      %s164 = sphi 0, %s162
      %s165 = sphi 0, %s164
      %s179 = sphi 0, %s165
      %s183 = sphi 0, %s183
      %s185 = sphi 0, %s183
      %s186 = sphi 0, %s185
      %s200 = sphi 0, %s186
      %s204 = sphi 0, %s204
      %s206 = sphi 0, %s204
      %s207 = sphi 0, %s206
      %s221 = sphi 0, %s207
      %s227 = sphi 0, %s229
      %s230 = sphi 0, %s227
      %s231 = sphi 0, %s230
      %s247 = sphi 0, %s231
    $region4: #{tpu_custom_call.1} parent=1 // loop_header_branch
      %26 = sbr.rel (%p24) target = $region8
    $region5: #{tpu_custom_call.1} parent=1 // loop_body
      %s28 = ssub.s32 %s23, 1
      %s29 = ssub.s32 %s23, 2
      %s30 = sadd.s32 %s23, 1
      %s31 = ssub.s32 %s23, %s30
      %p32 = scmp.eq.s32.totalorder %s31, 0
      %s34 = sadd.s32 %s33, 1
      %s35 = scalar_select %p32, %s33, %s34
      %p38 = pneg %p32
      %p39 = scmp.eq.s32.totalorder %s23, 1
      %p40 = por %p38, %p39
      %p41 = scmp.ne.s32.totalorder %s33, %s36
      %p42 = scmp.eq.s32.totalorder %s23, 0
      %p43 = por %p41, %p42
      %p44 = scmp.ne.s32.totalorder %s33, %s36
      %p45 = scmp.eq.s32.totalorder %s28, 1
      %p46 = por %p44, %p45
      %p47 = scmp.ne.s32.totalorder %s36, %s37
      %p48 = scmp.eq.s32.totalorder %s28, 0
      %p49 = por %p47, %p48
      %p50 = scmp.ne.s32.totalorder %s36, %s37
      %p51 = scmp.eq.s32.totalorder %s29, 1
      %p52 = por %p50, %p51
      %p54 = scmp.ne.s32.totalorder %s37, %s53
      %p55 = scmp.eq.s32.totalorder %s29, 0
      %p56 = por %p54, %p55
      %s58 = sadd.s32 %s57, 1
      %p61 = scmp.eq.s32.totalorder %s23, 1
      %p62 = scmp.ne.s32.totalorder %s57, %s59
      %p63 = scmp.eq.s32.totalorder %s23, 0
      %p64 = por %p62, %p63
      %p65 = scmp.ne.s32.totalorder %s57, %s59
      %p66 = scmp.eq.s32.totalorder %s28, 1
      %p67 = por %p65, %p66
      %p68 = scmp.ne.s32.totalorder %s59, %s60
      %p69 = scmp.eq.s32.totalorder %s28, 0
      %p70 = por %p68, %p69
      %p71 = scmp.ne.s32.totalorder %s59, %s60
      %p72 = scmp.eq.s32.totalorder %s29, 1
      %p73 = por %p71, %p72
      %p75 = scmp.ne.s32.totalorder %s60, %s74
      %p76 = scmp.eq.s32.totalorder %s29, 0
      %p77 = por %p75, %p76
      %s79 = sadd.s32 %s78, 1
      %p82 = scmp.eq.s32.totalorder %s23, 1
      %p83 = scmp.ne.s32.totalorder %s78, %s80
      %p84 = scmp.eq.s32.totalorder %s23, 0
      %p85 = por %p83, %p84
      %p86 = scmp.ne.s32.totalorder %s78, %s80
      %p87 = scmp.eq.s32.totalorder %s28, 1
      %p88 = por %p86, %p87
      %p89 = scmp.ne.s32.totalorder %s80, %s81
      %p90 = scmp.eq.s32.totalorder %s28, 0
      %p91 = por %p89, %p90
      %p92 = scmp.ne.s32.totalorder %s80, %s81
      %p93 = scmp.eq.s32.totalorder %s29, 1
      %p94 = por %p92, %p93
      %p96 = scmp.ne.s32.totalorder %s81, %s95
      %p97 = scmp.eq.s32.totalorder %s29, 0
      %p98 = por %p96, %p97
      %s100 = sadd.s32 %s99, 1
      %p103 = scmp.eq.s32.totalorder %s23, 1
      %p104 = scmp.ne.s32.totalorder %s99, %s101
      %p105 = scmp.eq.s32.totalorder %s23, 0
      %p106 = por %p104, %p105
      %p107 = scmp.ne.s32.totalorder %s99, %s101
      %p108 = scmp.eq.s32.totalorder %s28, 1
      %p109 = por %p107, %p108
      %p110 = scmp.ne.s32.totalorder %s101, %s102
      %p111 = scmp.eq.s32.totalorder %s28, 0
      %p112 = por %p110, %p111
      %p113 = scmp.ne.s32.totalorder %s101, %s102
      %p114 = scmp.eq.s32.totalorder %s29, 1
      %p115 = por %p113, %p114
      %p117 = scmp.ne.s32.totalorder %s102, %s116
      %p118 = scmp.eq.s32.totalorder %s29, 0
      %p119 = por %p117, %p118
      %s121 = sadd.s32 %s120, 1
      %p124 = scmp.eq.s32.totalorder %s23, 1
      %p125 = scmp.ne.s32.totalorder %s120, %s122
      %p126 = scmp.eq.s32.totalorder %s23, 0
      %p127 = por %p125, %p126
      %p128 = scmp.ne.s32.totalorder %s120, %s122
      %p129 = scmp.eq.s32.totalorder %s28, 1
      %p130 = por %p128, %p129
      %p131 = scmp.ne.s32.totalorder %s122, %s123
      %p132 = scmp.eq.s32.totalorder %s28, 0
      %p133 = por %p131, %p132
      %p134 = scmp.ne.s32.totalorder %s122, %s123
      %p135 = scmp.eq.s32.totalorder %s29, 1
      %p136 = por %p134, %p135
      %p138 = scmp.ne.s32.totalorder %s123, %s137
      %p139 = scmp.eq.s32.totalorder %s29, 0
      %p140 = por %p138, %p139
      %s142 = sadd.s32 %s141, 1
      %p145 = scmp.eq.s32.totalorder %s23, 1
      %p146 = scmp.ne.s32.totalorder %s141, %s143
      %p147 = scmp.eq.s32.totalorder %s23, 0
      %p148 = por %p146, %p147
      %p149 = scmp.ne.s32.totalorder %s141, %s143
      %p150 = scmp.eq.s32.totalorder %s28, 1
      %p151 = por %p149, %p150
      %p152 = scmp.ne.s32.totalorder %s143, %s144
      %p153 = scmp.eq.s32.totalorder %s28, 0
      %p154 = por %p152, %p153
      %p155 = scmp.ne.s32.totalorder %s143, %s144
      %p156 = scmp.eq.s32.totalorder %s29, 1
      %p157 = por %p155, %p156
      %p159 = scmp.ne.s32.totalorder %s144, %s158
      %p160 = scmp.eq.s32.totalorder %s29, 0
      %p161 = por %p159, %p160
      %s163 = sadd.s32 %s162, 1
      %p166 = scmp.eq.s32.totalorder %s23, 1
      %p167 = scmp.ne.s32.totalorder %s162, %s164
      %p168 = scmp.eq.s32.totalorder %s23, 0
      %p169 = por %p167, %p168
      %p170 = scmp.ne.s32.totalorder %s162, %s164
      %p171 = scmp.eq.s32.totalorder %s28, 1
      %p172 = por %p170, %p171
      %p173 = scmp.ne.s32.totalorder %s164, %s165
      %p174 = scmp.eq.s32.totalorder %s28, 0
      %p175 = por %p173, %p174
      %p176 = scmp.ne.s32.totalorder %s164, %s165
      %p177 = scmp.eq.s32.totalorder %s29, 1
      %p178 = por %p176, %p177
      %p180 = scmp.ne.s32.totalorder %s165, %s179
      %p181 = scmp.eq.s32.totalorder %s29, 0
      %p182 = por %p180, %p181
      %s184 = sadd.s32 %s183, 1
      %p187 = scmp.eq.s32.totalorder %s23, 1
      %p188 = scmp.ne.s32.totalorder %s183, %s185
      %p189 = scmp.eq.s32.totalorder %s23, 0
      %p190 = por %p188, %p189
      %p191 = scmp.ne.s32.totalorder %s183, %s185
      %p192 = scmp.eq.s32.totalorder %s28, 1
      %p193 = por %p191, %p192
      %p194 = scmp.ne.s32.totalorder %s185, %s186
      %p195 = scmp.eq.s32.totalorder %s28, 0
      %p196 = por %p194, %p195
      %p197 = scmp.ne.s32.totalorder %s185, %s186
      %p198 = scmp.eq.s32.totalorder %s29, 1
      %p199 = por %p197, %p198
      %p201 = scmp.ne.s32.totalorder %s186, %s200
      %p202 = scmp.eq.s32.totalorder %s29, 0
      %p203 = por %p201, %p202
      %s205 = sadd.s32 %s204, 1
      %p208 = scmp.eq.s32.totalorder %s23, 1
      %p209 = scmp.ne.s32.totalorder %s204, %s206
      %p210 = scmp.eq.s32.totalorder %s23, 0
      %p211 = por %p209, %p210
      %p212 = scmp.ne.s32.totalorder %s204, %s206
      %p213 = scmp.eq.s32.totalorder %s28, 1
      %p214 = por %p212, %p213
      %p215 = scmp.ne.s32.totalorder %s206, %s207
      %p216 = scmp.eq.s32.totalorder %s28, 0
      %p217 = por %p215, %p216
      %p218 = scmp.ne.s32.totalorder %s206, %s207
      %p219 = scmp.eq.s32.totalorder %s29, 1
      %p220 = por %p218, %p219
      %p222 = scmp.ne.s32.totalorder %s207, %s221
      %p223 = scmp.eq.s32.totalorder %s29, 0
      %p224 = por %p222, %p223
      %s225 = ssub.s32 %s23, %s30
      %p226 = scmp.eq.s32.totalorder %s225, 0
      %s228 = sadd.s32 %s227, 1
      %s229 = scalar_select %p226, %s227, %s228
      %p232 = pneg %p226
      %p233 = scmp.eq.s32.totalorder %s23, 1
      %p234 = por %p232, %p233
      %p235 = scmp.ne.s32.totalorder %s227, %s230
      %p236 = scmp.eq.s32.totalorder %s23, 0
      %p237 = por %p235, %p236
      %p238 = scmp.ne.s32.totalorder %s227, %s230
      %p239 = scmp.eq.s32.totalorder %s28, 1
      %p240 = por %p238, %p239
      %p241 = scmp.ne.s32.totalorder %s230, %s231
      %p242 = scmp.eq.s32.totalorder %s28, 0
      %p243 = por %p241, %p242
      %p244 = scmp.ne.s32.totalorder %s230, %s231
      %p245 = scmp.eq.s32.totalorder %s29, 1
      %p246 = por %p244, %p245
      %p248 = scmp.ne.s32.totalorder %s231, %s247
      %p249 = scmp.eq.s32.totalorder %s29, 0
      %p250 = por %p248, %p249
      %p251 = scmp.le.s32.totalorder 1, %s23
      %p252 = scmp.lt.s32.totalorder %s23, 3
      %p253 = pnand %p251, %p252
      %p254 = pneg %p253
      // Predicated region
      $region9: #{tpu_custom_call.1} parent=5 // pred_check
        _
      $region10: #{tpu_custom_call.1} parent=5 // pred_check_branch
        %256 = sbr.rel (%p253) target = $region12
      $region11: #{tpu_custom_call.1} parent=5 // pred_region
        %s257 = ssub.s32 %s23, 1
        // Predicated region
        $region13: #{tpu_custom_call.1} parent=11 // pred_check
          %p258 = pneg %p70
        $region14: #{tpu_custom_call.1} parent=11 // pred_check_branch
          %260 = sbr.rel (%p258) target = $region16
        $region15: #{tpu_custom_call.1} parent=11 // pred_region
          %s262 = ssub.s32 2048, 2048
          %263 = vsyncadd [#allocation6], %s262
          %s264 = sshll.u32 [#allocation5], 4
          %s265 = int_to_ptr.vmem [resolvable:$true] %s264
          %270 = dma.hbm_to_vmem [thread:$0]  %s1, 2048, %s265, [#allocation6], 128, 128, 8
        $region16: #{tpu_custom_call.1} parent=11 // pred_fallthru
          _
        // Predicated region
        $region17: #{tpu_custom_call.1} parent=11 // pred_check
          %p271 = pneg %p91
        $region18: #{tpu_custom_call.1} parent=11 // pred_check_branch
          %273 = sbr.rel (%p271) target = $region20
        $region19: #{tpu_custom_call.1} parent=11 // pred_region
          _
        $region20: #{tpu_custom_call.1} parent=11 // pred_fallthru
          _
        // Predicated region
        $region21: #{tpu_custom_call.1} parent=11 // pred_check
          %p274 = pneg %p112
        $region22: #{tpu_custom_call.1} parent=11 // pred_check_branch
          %276 = sbr.rel (%p274) target = $region24
        $region23: #{tpu_custom_call.1} parent=11 // pred_region
          %s278 = ssub.s32 8192, 8192
          %279 = vsyncadd [#allocation6], %s278
          %s280 = sshll.u32 [#allocation7], 4
          %s281 = int_to_ptr.vmem [resolvable:$true] %s280
          %286 = dma.hbm_to_vmem [thread:$0]  %s3, 8192, %s281, [#allocation6], 256, 256, 16
        $region24: #{tpu_custom_call.1} parent=11 // pred_fallthru
          _
        // Predicated region
        $region25: #{tpu_custom_call.1} parent=11 // pred_check
          %p287 = pneg %p133
        $region26: #{tpu_custom_call.1} parent=11 // pred_check_branch
          %289 = sbr.rel (%p287) target = $region28
        $region27: #{tpu_custom_call.1} parent=11 // pred_region
          _
        $region28: #{tpu_custom_call.1} parent=11 // pred_fallthru
          _
        // Predicated region
        $region29: #{tpu_custom_call.1} parent=11 // pred_check
          %p290 = pneg %p154
        $region30: #{tpu_custom_call.1} parent=11 // pred_check_branch
          %292 = sbr.rel (%p290) target = $region32
        $region31: #{tpu_custom_call.1} parent=11 // pred_region
          %s294 = ssub.s32 8192, 8192
          %295 = vsyncadd [#allocation9], %s294
          %s296 = sshll.u32 [#allocation8], 4
          %s297 = int_to_ptr.vmem [resolvable:$true] %s296
          %302 = dma.hbm_to_vmem [thread:$0]  %s5, 8192, %s297, [#allocation9], 128, 128, 8
        $region32: #{tpu_custom_call.1} parent=11 // pred_fallthru
          _
        // Predicated region
        $region33: #{tpu_custom_call.1} parent=11 // pred_check
          %p303 = pneg %p175
        $region34: #{tpu_custom_call.1} parent=11 // pred_check_branch
          %305 = sbr.rel (%p303) target = $region36
        $region35: #{tpu_custom_call.1} parent=11 // pred_region
          _
        $region36: #{tpu_custom_call.1} parent=11 // pred_fallthru
          _
        // Predicated region
        $region37: #{tpu_custom_call.1} parent=11 // pred_check
          %p306 = pneg %p196
        $region38: #{tpu_custom_call.1} parent=11 // pred_check_branch
          %308 = sbr.rel (%p306) target = $region40
        $region39: #{tpu_custom_call.1} parent=11 // pred_region
          %s310 = ssub.s32 2048, 2048
          %311 = vsyncadd [#allocation9], %s310
          %s312 = sshll.u32 [#allocation10], 4
          %s313 = int_to_ptr.vmem [resolvable:$true] %s312
          %318 = dma.hbm_to_vmem [thread:$0]  %s7, 2048, %s313, [#allocation9], 64, 64, 4
        $region40: #{tpu_custom_call.1} parent=11 // pred_fallthru
          _
        // Predicated region
        $region41: #{tpu_custom_call.1} parent=11 // pred_check
          %p319 = pneg %p217
        $region42: #{tpu_custom_call.1} parent=11 // pred_check_branch
          %321 = sbr.rel (%p319) target = $region44
        $region43: #{tpu_custom_call.1} parent=11 // pred_region
          _
        $region44: #{tpu_custom_call.1} parent=11 // pred_fallthru
          _
      $region12: #{tpu_custom_call.1} parent=5 // pred_fallthru
        _
      %p322 = scmp.lt.s32.totalorder %s23, 2
      // Predicated region
      $region45: #{tpu_custom_call.1} parent=5 // pred_check
        %p323 = pneg %p322
      $region46: #{tpu_custom_call.1} parent=5 // pred_check_branch
        %325 = sbr.rel (%p323) target = $region48
      $region47: #{tpu_custom_call.1} parent=5 // pred_region
        // Predicated region
        $region49: #{tpu_custom_call.1} parent=47 // pred_check
          %p326 = pneg %p43
        $region50: #{tpu_custom_call.1} parent=47 // pred_check_branch
          %328 = sbr.rel (%p326) target = $region52
        $region51: #{tpu_custom_call.1} parent=47 // pred_region
          %s329 = sand.u32 %s33, 1
          %s330 = scalar_lea.sflag [#allocation3], %s329
          %s331 = sand.u32 %s33, 1
          %s332 = smul.addr %s331, 8
          %s333 = scalar_lea.vmem [#allocation2], %s332
          %s335 = ssub.s32 128, 128
          %336 = vsyncadd %s330, %s335
          %s337 = smul.addr %s23, 128
          %s338 = scalar_lea.hbm %s0, %s337
          %s340 = sshll.u32 %s333, 4
          %s341 = int_to_ptr.vmem [resolvable:$true] %s340
          %343 = dma.hbm_to_vmem [thread:$0]  %s338, 128, %s341, %s330
        $region52: #{tpu_custom_call.1} parent=47 // pred_fallthru
          _
      $region48: #{tpu_custom_call.1} parent=5 // pred_fallthru
        _
      %p344 = scmp.le.s32.totalorder 1, %s23
      %p345 = scmp.lt.s32.totalorder %s23, 3
      %p346 = pnand %p344, %p345
      %p347 = pneg %p346
      // Predicated region
      $region53: #{tpu_custom_call.1} parent=5 // pred_check
        _
      $region54: #{tpu_custom_call.1} parent=5 // pred_check_branch
        %349 = sbr.rel (%p346) target = $region56
      $region55: #{tpu_custom_call.1} parent=5 // pred_region
        %s350 = ssub.s32 %s23, 1
        %s351 = sand.u32 %s36, 1
        %s352 = scalar_lea.sflag [#allocation3], %s351
        %s353 = sand.u32 %s36, 1
        %s354 = smul.addr %s353, 8
        %s355 = scalar_lea.vmem [#allocation2], %s354
        // Predicated region
        $region57: #{tpu_custom_call.1} parent=55 // pred_check
          %p356 = pneg %p49
        $region58: #{tpu_custom_call.1} parent=55 // pred_check_branch
          %358 = sbr.rel (%p356) target = $region60
        $region59: #{tpu_custom_call.1} parent=55 // pred_region
          %359 = dma.done %s352, 128
        $region60: #{tpu_custom_call.1} parent=55 // pred_fallthru
          _
        // Predicated region
        $region61: #{tpu_custom_call.1} parent=55 // pred_check
          %p360 = pneg %p70
        $region62: #{tpu_custom_call.1} parent=55 // pred_check_branch
          %362 = sbr.rel (%p360) target = $region64
        $region63: #{tpu_custom_call.1} parent=55 // pred_region
          %363 = dma.done [#allocation6], 2048
        $region64: #{tpu_custom_call.1} parent=55 // pred_fallthru
          _
        // Predicated region
        $region65: #{tpu_custom_call.1} parent=55 // pred_check
          %p364 = pneg %p112
        $region66: #{tpu_custom_call.1} parent=55 // pred_check_branch
          %366 = sbr.rel (%p364) target = $region68
        $region67: #{tpu_custom_call.1} parent=55 // pred_region
          %367 = dma.done [#allocation6], 8192
        $region68: #{tpu_custom_call.1} parent=55 // pred_fallthru
          _
        // Predicated region
        $region69: #{tpu_custom_call.1} parent=55 // pred_check
          %p368 = pneg %p154
        $region70: #{tpu_custom_call.1} parent=55 // pred_check_branch
          %370 = sbr.rel (%p368) target = $region72
        $region71: #{tpu_custom_call.1} parent=55 // pred_region
          %371 = dma.done [#allocation9], 8192
        $region72: #{tpu_custom_call.1} parent=55 // pred_fallthru
          _
        // Predicated region
        $region73: #{tpu_custom_call.1} parent=55 // pred_check
          %p372 = pneg %p196
        $region74: #{tpu_custom_call.1} parent=55 // pred_check_branch
          %374 = sbr.rel (%p372) target = $region76
        $region75: #{tpu_custom_call.1} parent=55 // pred_region
          %375 = dma.done [#allocation9], 2048
        $region76: #{tpu_custom_call.1} parent=55 // pred_fallthru
          _
        %s376 = sand.u32 %s36, 1
        %s377 = scalar_lea.sflag [#allocation3], %s376
        %s378 = sand.u32 %s36, 1
        %s379 = smul.addr %s378, 8
        %s380 = scalar_lea.vmem [#allocation2], %s379
        %p381 = pneg %p49
        %p382 = pneg %p46
        %p383 = pneg %p70
        %p384 = pneg %p67
        %p385 = pneg %p91
        %p386 = pneg %p88
        %p387 = pneg %p112
        %p388 = pneg %p109
        %p389 = pneg %p133
        %p390 = pneg %p130
        %p391 = pneg %p154
        %p392 = pneg %p151
        %p393 = pneg %p175
        %p394 = pneg %p172
        %p395 = pneg %p196
        %p396 = pneg %p193
        %p397 = pneg %p217
        %p398 = pneg %p214
        %p399 = pneg %p243
        %p400 = pneg %p240
        %s401 = sand.u32 %s230, 1
        %s402 = scalar_lea.sflag [#allocation4], %s401
        %s403 = sand.u32 %s230, 1
        %s404 = smul.addr %s403, 8
        %s405 = scalar_lea.vmem [#allocation11], %s404
        %v407 = vld [vmem:[%s355] sm:$0xff]
        %v408 = vpack.c.bf16 %v407, %v407
        %v409 = vld [vmem:[#allocation5] sm:$0xff]
        %v410 = vld [vmem:[#allocation5 + $0x8] sm:$0xff]
        %v411 = vld [vmem:[#allocation5 + $0x10] sm:$0xff]
        %v412 = vld [vmem:[#allocation5 + $0x18] sm:$0xff]
        %v413 = vld [vmem:[#allocation5 + $0x20] sm:$0xff]
        %v414 = vld [vmem:[#allocation5 + $0x28] sm:$0xff]
        %v415 = vld [vmem:[#allocation5 + $0x30] sm:$0xff]
        %v416 = vld [vmem:[#allocation5 + $0x38] sm:$0xff]
        %v417 = vld [vmem:[#allocation5 + $0x40] sm:$0xff]
        %v418 = vld [vmem:[#allocation5 + $0x48] sm:$0xff]
        %v419 = vld [vmem:[#allocation5 + $0x50] sm:$0xff]
        %v420 = vld [vmem:[#allocation5 + $0x58] sm:$0xff]
        %v421 = vld [vmem:[#allocation5 + $0x60] sm:$0xff]
        %v422 = vld [vmem:[#allocation5 + $0x68] sm:$0xff]
        %v423 = vld [vmem:[#allocation5 + $0x70] sm:$0xff]
        %v424 = vld [vmem:[#allocation5 + $0x78] sm:$0xff]
        %v441 = vunpack.c.l.b16 %v409
        %v442 = vunpack.c.h.b16 %v409
        %v443 = vunpack.c.l.b16 %v410
        %v444 = vunpack.c.h.b16 %v410
        %v445 = vunpack.c.l.b16 %v411
        %v446 = vunpack.c.h.b16 %v411
        %v447 = vunpack.c.l.b16 %v412
        %v448 = vunpack.c.h.b16 %v412
        %v449 = vunpack.c.l.b16 %v413
        %v450 = vunpack.c.h.b16 %v413
        %v451 = vunpack.c.l.b16 %v414
        %v452 = vunpack.c.h.b16 %v414
        %v453 = vunpack.c.l.b16 %v415
        %v454 = vunpack.c.h.b16 %v415
        %v455 = vunpack.c.l.b16 %v416
        %v456 = vunpack.c.h.b16 %v416
        %v457 = vunpack.c.l.b16 %v417
        %v458 = vunpack.c.h.b16 %v417
        %v459 = vunpack.c.l.b16 %v418
        %v460 = vunpack.c.h.b16 %v418
        %v461 = vunpack.c.l.b16 %v419
        %v462 = vunpack.c.h.b16 %v419
        %v463 = vunpack.c.l.b16 %v420
        %v464 = vunpack.c.h.b16 %v420
        %v465 = vunpack.c.l.b16 %v421
        %v466 = vunpack.c.h.b16 %v421
        %v467 = vunpack.c.l.b16 %v422
        %v468 = vunpack.c.h.b16 %v422
        %v469 = vunpack.c.l.b16 %v423
        %v470 = vunpack.c.h.b16 %v423
        %v471 = vunpack.c.l.b16 %v424
        %v472 = vunpack.c.h.b16 %v424
        %v473 = vpack.c.b16 %v443, %v441
        %v474 = vpack.c.b16 %v444, %v442
        %v475 = vpack.c.b16 %v447, %v445
        %v476 = vpack.c.b16 %v448, %v446
        %v477 = vpack.c.b16 %v451, %v449
        %v478 = vpack.c.b16 %v452, %v450
        %v479 = vpack.c.b16 %v455, %v453
        %v480 = vpack.c.b16 %v456, %v454
        %v481 = vpack.c.b16 %v459, %v457
        %v482 = vpack.c.b16 %v460, %v458
        %v483 = vpack.c.b16 %v463, %v461
        %v484 = vpack.c.b16 %v464, %v462
        %v485 = vpack.c.b16 %v467, %v465
        %v486 = vpack.c.b16 %v468, %v466
        %v487 = vpack.c.b16 %v471, %v469
        %v488 = vpack.c.b16 %v472, %v470
        %505 = vmatprep.subr.bf16.mxu0 %v474
        %506 = vmatpush1.bf16.msra.mxu0 %v473
        %507 = vmatprep.subr.bf16.mxu0 %v476
        %508 = vmatpush1.bf16.msra.mxu0 %v475
        %509 = vmatprep.subr.bf16.mxu0 %v478
        %510 = vmatpush1.bf16.msra.mxu0 %v477
        %511 = vmatprep.subr.bf16.mxu0 %v480
        %512 = vmatpush1.bf16.msra.mxu0 %v479
        %513 = vmatprep.subr.bf16.mxu0 %v482
        %514 = vmatpush1.bf16.msra.mxu0 %v481
        %515 = vmatprep.subr.bf16.mxu0 %v484
        %516 = vmatpush1.bf16.msra.mxu0 %v483
        %517 = vmatprep.subr.bf16.mxu0 %v486
        %518 = vmatpush1.bf16.msra.mxu0 %v485
        %519 = vmatprep.subr.bf16.mxu0 %v488
        %520 = vmatpush1.bf16.msra.mxu0 %v487
        %521 = vmatprep.subr.bf16.mxu0 0
        %522 = vmatpush1.bf16.msra.mxu0 0
        %523 = vmatprep.subr.bf16.mxu0 0
        %524 = vmatpush1.bf16.msra.mxu0 0
        %525 = vmatprep.subr.bf16.mxu0 0
        %526 = vmatpush1.bf16.msra.mxu0 0
        %527 = vmatprep.subr.bf16.mxu0 0
        %528 = vmatpush1.bf16.msra.mxu0 0
        %529 = vmatprep.subr.bf16.mxu0 0
        %530 = vmatpush1.bf16.msra.mxu0 0
        %531 = vmatprep.subr.bf16.mxu0 0
        %532 = vmatpush1.bf16.msra.mxu0 0
        %533 = vmatprep.subr.bf16.mxu0 0
        %534 = vmatpush1.bf16.msra.mxu0 0
        %535 = vmatprep.subr.bf16.mxu0 0
        %536 = vmatpush1.bf16.msra.mxu0 0
        %537 = vmatprep.mubr.bf16.mxu0 0
        %538 = vmatmul.mubr.bf16.gmra.mrb[0].mxu0 %v408
        %v539 = vpop.f32.mrb[0].mxu0
        %v540 = vadd.f32 0.0, %v539
        %v541 = vpop.f32.mrb[0].mxu0
        %v542 = vadd.f32 0.0, %v541
        %v543 = vpop.f32.mrb[0].mxu0
        %v544 = vpop.f32.mrb[0].mxu0
        %545 = vdwg.mxu0
        %v546 = vpack.c.bf16 %v540, %v540
        %v547 = vpack.c.bf16 %v542, %v542
        %v548 = vld [vmem:[%s2] sm:$0x3]
        %v551 = vunpack.c.l.s4 1966171168
        %v552 = vunpack.c.0.s8 %v551
        %v553 = vlaneseq
        %v554 = vshrl.u32 %v553, 7
        %v555 = vsub.s32 %v552, %v554
        %v556 = vrot.slane %v548, %v555
        %v557 = vcombine.high %v556, %v556
        %v559 = vunpack.c.l.s4 1966171168
        %v560 = vunpack.c.0.s8 %v559
        %v561 = vlaneseq
        %v562 = vshrl.u32 %v561, 7
        %v563 = vsub.s32 %v560, %v562
        %v564 = vrot.slane %v556, %v563
        %v566 = vunpack.c.l.s4 1966171168
        %v567 = vunpack.c.0.s8 %v566
        %v568 = vlaneseq
        %v569 = vshrl.u32 %v568, 7
        %v570 = vsub.s32 %v567, %v569
        %v571 = vrot.slane %v557, %v570
        %v573 = vpack.i.b16 %v564, %v564
        %v575 = vlaneseq
        %v576 = vshrl.u32 %v575, 7
        %v577 = vsub.s32 0, %v576
        %v578 = vrot.slane %v573, %v577
        %v580 = vpack.i.b16 %v571, %v571
        %v582 = vlaneseq
        %v583 = vshrl.u32 %v582, 7
        %v584 = vsub.s32 0, %v583
        %v585 = vrot.slane %v580, %v584
        %v586 = vadd.bf16 %v546, %v578
        %v587 = vadd.bf16 %v547, %v585
        %v588 = vmax.bf16 %v586, 0
        %v589 = vmax.bf16 %v587, 0
        %v590 = vld [vmem:[#allocation7] sm:$0xff]
        %v591 = vld [vmem:[#allocation7 + $0x8] sm:$0xff]
        %v592 = vld [vmem:[#allocation7 + $0x10] sm:$0xff]
        %v593 = vld [vmem:[#allocation7 + $0x18] sm:$0xff]
        %v594 = vld [vmem:[#allocation7 + $0x20] sm:$0xff]
        %v595 = vld [vmem:[#allocation7 + $0x28] sm:$0xff]
        %v596 = vld [vmem:[#allocation7 + $0x30] sm:$0xff]
        %v597 = vld [vmem:[#allocation7 + $0x38] sm:$0xff]
        %v598 = vld [vmem:[#allocation7 + $0x40] sm:$0xff]
        %v599 = vld [vmem:[#allocation7 + $0x48] sm:$0xff]
        %v600 = vld [vmem:[#allocation7 + $0x50] sm:$0xff]
        %v601 = vld [vmem:[#allocation7 + $0x58] sm:$0xff]
        %v602 = vld [vmem:[#allocation7 + $0x60] sm:$0xff]
        %v603 = vld [vmem:[#allocation7 + $0x68] sm:$0xff]
        %v604 = vld [vmem:[#allocation7 + $0x70] sm:$0xff]
        %v605 = vld [vmem:[#allocation7 + $0x78] sm:$0xff]
        %v606 = vld [vmem:[#allocation7 + $0x80] sm:$0xff]
        %v607 = vld [vmem:[#allocation7 + $0x88] sm:$0xff]
        %v608 = vld [vmem:[#allocation7 + $0x90] sm:$0xff]
        %v609 = vld [vmem:[#allocation7 + $0x98] sm:$0xff]
        %v610 = vld [vmem:[#allocation7 + $0xa0] sm:$0xff]
        %v611 = vld [vmem:[#allocation7 + $0xa8] sm:$0xff]
        %v612 = vld [vmem:[#allocation7 + $0xb0] sm:$0xff]
        %v613 = vld [vmem:[#allocation7 + $0xb8] sm:$0xff]
        %v614 = vld [vmem:[#allocation7 + $0xc0] sm:$0xff]
        %v615 = vld [vmem:[#allocation7 + $0xc8] sm:$0xff]
        %v616 = vld [vmem:[#allocation7 + $0xd0] sm:$0xff]
        %v617 = vld [vmem:[#allocation7 + $0xd8] sm:$0xff]
        %v618 = vld [vmem:[#allocation7 + $0xe0] sm:$0xff]
        %v619 = vld [vmem:[#allocation7 + $0xe8] sm:$0xff]
        %v620 = vld [vmem:[#allocation7 + $0xf0] sm:$0xff]
        %v621 = vld [vmem:[#allocation7 + $0xf8] sm:$0xff]
        %v622 = vld [vmem:[#allocation7 + $0x100] sm:$0xff]
        %v623 = vld [vmem:[#allocation7 + $0x108] sm:$0xff]
        %v624 = vld [vmem:[#allocation7 + $0x110] sm:$0xff]
        %v625 = vld [vmem:[#allocation7 + $0x118] sm:$0xff]
        %v626 = vld [vmem:[#allocation7 + $0x120] sm:$0xff]
        %v627 = vld [vmem:[#allocation7 + $0x128] sm:$0xff]
        %v628 = vld [vmem:[#allocation7 + $0x130] sm:$0xff]
        %v629 = vld [vmem:[#allocation7 + $0x138] sm:$0xff]
        %v630 = vld [vmem:[#allocation7 + $0x140] sm:$0xff]
        %v631 = vld [vmem:[#allocation7 + $0x148] sm:$0xff]
        %v632 = vld [vmem:[#allocation7 + $0x150] sm:$0xff]
        %v633 = vld [vmem:[#allocation7 + $0x158] sm:$0xff]
        %v634 = vld [vmem:[#allocation7 + $0x160] sm:$0xff]
        %v635 = vld [vmem:[#allocation7 + $0x168] sm:$0xff]
        %v636 = vld [vmem:[#allocation7 + $0x170] sm:$0xff]
        %v637 = vld [vmem:[#allocation7 + $0x178] sm:$0xff]
        %v638 = vld [vmem:[#allocation7 + $0x180] sm:$0xff]
        %v639 = vld [vmem:[#allocation7 + $0x188] sm:$0xff]
        %v640 = vld [vmem:[#allocation7 + $0x190] sm:$0xff]
        %v641 = vld [vmem:[#allocation7 + $0x198] sm:$0xff]
        %v642 = vld [vmem:[#allocation7 + $0x1a0] sm:$0xff]
        %v643 = vld [vmem:[#allocation7 + $0x1a8] sm:$0xff]
        %v644 = vld [vmem:[#allocation7 + $0x1b0] sm:$0xff]
        %v645 = vld [vmem:[#allocation7 + $0x1b8] sm:$0xff]
        %v646 = vld [vmem:[#allocation7 + $0x1c0] sm:$0xff]
        %v647 = vld [vmem:[#allocation7 + $0x1c8] sm:$0xff]
        %v648 = vld [vmem:[#allocation7 + $0x1d0] sm:$0xff]
        %v649 = vld [vmem:[#allocation7 + $0x1d8] sm:$0xff]
        %v650 = vld [vmem:[#allocation7 + $0x1e0] sm:$0xff]
        %v651 = vld [vmem:[#allocation7 + $0x1e8] sm:$0xff]
        %v652 = vld [vmem:[#allocation7 + $0x1f0] sm:$0xff]
        %v653 = vld [vmem:[#allocation7 + $0x1f8] sm:$0xff]
        %v718 = vunpack.c.l.b16 %v590
        %v719 = vunpack.c.h.b16 %v590
        %v720 = vunpack.c.l.b16 %v591
        %v721 = vunpack.c.h.b16 %v591
        %v722 = vunpack.c.l.b16 %v592
        %v723 = vunpack.c.h.b16 %v592
        %v724 = vunpack.c.l.b16 %v593
        %v725 = vunpack.c.h.b16 %v593
        %v726 = vunpack.c.l.b16 %v594
        %v727 = vunpack.c.h.b16 %v594
        %v728 = vunpack.c.l.b16 %v595
        %v729 = vunpack.c.h.b16 %v595
        %v730 = vunpack.c.l.b16 %v596
        %v731 = vunpack.c.h.b16 %v596
        %v732 = vunpack.c.l.b16 %v597
        %v733 = vunpack.c.h.b16 %v597
        %v734 = vunpack.c.l.b16 %v598
        %v735 = vunpack.c.h.b16 %v598
        %v736 = vunpack.c.l.b16 %v599
        %v737 = vunpack.c.h.b16 %v599
        %v738 = vunpack.c.l.b16 %v600
        %v739 = vunpack.c.h.b16 %v600
        %v740 = vunpack.c.l.b16 %v601
        %v741 = vunpack.c.h.b16 %v601
        %v742 = vunpack.c.l.b16 %v602
        %v743 = vunpack.c.h.b16 %v602
        %v744 = vunpack.c.l.b16 %v603
        %v745 = vunpack.c.h.b16 %v603
        %v746 = vunpack.c.l.b16 %v604
        %v747 = vunpack.c.h.b16 %v604
        %v748 = vunpack.c.l.b16 %v605
        %v749 = vunpack.c.h.b16 %v605
        %v750 = vunpack.c.l.b16 %v606
        %v751 = vunpack.c.h.b16 %v606
        %v752 = vunpack.c.l.b16 %v607
        %v753 = vunpack.c.h.b16 %v607
        %v754 = vunpack.c.l.b16 %v608
        %v755 = vunpack.c.h.b16 %v608
        %v756 = vunpack.c.l.b16 %v609
        %v757 = vunpack.c.h.b16 %v609
        %v758 = vunpack.c.l.b16 %v610
        %v759 = vunpack.c.h.b16 %v610
        %v760 = vunpack.c.l.b16 %v611
        %v761 = vunpack.c.h.b16 %v611
        %v762 = vunpack.c.l.b16 %v612
        %v763 = vunpack.c.h.b16 %v612
        %v764 = vunpack.c.l.b16 %v613
        %v765 = vunpack.c.h.b16 %v613
        %v766 = vunpack.c.l.b16 %v614
        %v767 = vunpack.c.h.b16 %v614
        %v768 = vunpack.c.l.b16 %v615
        %v769 = vunpack.c.h.b16 %v615
        %v770 = vunpack.c.l.b16 %v616
        %v771 = vunpack.c.h.b16 %v616
        %v772 = vunpack.c.l.b16 %v617
        %v773 = vunpack.c.h.b16 %v617
        %v774 = vunpack.c.l.b16 %v618
        %v775 = vunpack.c.h.b16 %v618
        %v776 = vunpack.c.l.b16 %v619
        %v777 = vunpack.c.h.b16 %v619
        %v778 = vunpack.c.l.b16 %v620
        %v779 = vunpack.c.h.b16 %v620
        %v780 = vunpack.c.l.b16 %v621
        %v781 = vunpack.c.h.b16 %v621
        %v782 = vunpack.c.l.b16 %v622
        %v783 = vunpack.c.h.b16 %v622
        %v784 = vunpack.c.l.b16 %v623
        %v785 = vunpack.c.h.b16 %v623
        %v786 = vunpack.c.l.b16 %v624
        %v787 = vunpack.c.h.b16 %v624
        %v788 = vunpack.c.l.b16 %v625
        %v789 = vunpack.c.h.b16 %v625
        %v790 = vunpack.c.l.b16 %v626
        %v791 = vunpack.c.h.b16 %v626
        %v792 = vunpack.c.l.b16 %v627
        %v793 = vunpack.c.h.b16 %v627
        %v794 = vunpack.c.l.b16 %v628
        %v795 = vunpack.c.h.b16 %v628
        %v796 = vunpack.c.l.b16 %v629
        %v797 = vunpack.c.h.b16 %v629
        %v798 = vunpack.c.l.b16 %v630
        %v799 = vunpack.c.h.b16 %v630
        %v800 = vunpack.c.l.b16 %v631
        %v801 = vunpack.c.h.b16 %v631
        %v802 = vunpack.c.l.b16 %v632
        %v803 = vunpack.c.h.b16 %v632
        %v804 = vunpack.c.l.b16 %v633
        %v805 = vunpack.c.h.b16 %v633
        %v806 = vunpack.c.l.b16 %v634
        %v807 = vunpack.c.h.b16 %v634
        %v808 = vunpack.c.l.b16 %v635
        %v809 = vunpack.c.h.b16 %v635
        %v810 = vunpack.c.l.b16 %v636
        %v811 = vunpack.c.h.b16 %v636
        %v812 = vunpack.c.l.b16 %v637
        %v813 = vunpack.c.h.b16 %v637
        %v814 = vunpack.c.l.b16 %v638
        %v815 = vunpack.c.h.b16 %v638
        %v816 = vunpack.c.l.b16 %v639
        %v817 = vunpack.c.h.b16 %v639
        %v818 = vunpack.c.l.b16 %v640
        %v819 = vunpack.c.h.b16 %v640
        %v820 = vunpack.c.l.b16 %v641
        %v821 = vunpack.c.h.b16 %v641
        %v822 = vunpack.c.l.b16 %v642
        %v823 = vunpack.c.h.b16 %v642
        %v824 = vunpack.c.l.b16 %v643
        %v825 = vunpack.c.h.b16 %v643
        %v826 = vunpack.c.l.b16 %v644
        %v827 = vunpack.c.h.b16 %v644
        %v828 = vunpack.c.l.b16 %v645
        %v829 = vunpack.c.h.b16 %v645
        %v830 = vunpack.c.l.b16 %v646
        %v831 = vunpack.c.h.b16 %v646
        %v832 = vunpack.c.l.b16 %v647
        %v833 = vunpack.c.h.b16 %v647
        %v834 = vunpack.c.l.b16 %v648
        %v835 = vunpack.c.h.b16 %v648
        %v836 = vunpack.c.l.b16 %v649
        %v837 = vunpack.c.h.b16 %v649
        %v838 = vunpack.c.l.b16 %v650
        %v839 = vunpack.c.h.b16 %v650
        %v840 = vunpack.c.l.b16 %v651
        %v841 = vunpack.c.h.b16 %v651
        %v842 = vunpack.c.l.b16 %v652
        %v843 = vunpack.c.h.b16 %v652
        %v844 = vunpack.c.l.b16 %v653
        %v845 = vunpack.c.h.b16 %v653
        %v846 = vpack.c.b16 %v722, %v718
        %v847 = vpack.c.b16 %v723, %v719
        %v848 = vpack.c.b16 %v724, %v720
        %v849 = vpack.c.b16 %v725, %v721
        %v850 = vpack.c.b16 %v730, %v726
        %v851 = vpack.c.b16 %v731, %v727
        %v852 = vpack.c.b16 %v732, %v728
        %v853 = vpack.c.b16 %v733, %v729
        %v854 = vpack.c.b16 %v738, %v734
        %v855 = vpack.c.b16 %v739, %v735
        %v856 = vpack.c.b16 %v740, %v736
        %v857 = vpack.c.b16 %v741, %v737
        %v858 = vpack.c.b16 %v746, %v742
        %v859 = vpack.c.b16 %v747, %v743
        %v860 = vpack.c.b16 %v748, %v744
        %v861 = vpack.c.b16 %v749, %v745
        %v862 = vpack.c.b16 %v754, %v750
        %v863 = vpack.c.b16 %v755, %v751
        %v864 = vpack.c.b16 %v756, %v752
        %v865 = vpack.c.b16 %v757, %v753
        %v866 = vpack.c.b16 %v762, %v758
        %v867 = vpack.c.b16 %v763, %v759
        %v868 = vpack.c.b16 %v764, %v760
        %v869 = vpack.c.b16 %v765, %v761
        %v870 = vpack.c.b16 %v770, %v766
        %v871 = vpack.c.b16 %v771, %v767
        %v872 = vpack.c.b16 %v772, %v768
        %v873 = vpack.c.b16 %v773, %v769
        %v874 = vpack.c.b16 %v778, %v774
        %v875 = vpack.c.b16 %v779, %v775
        %v876 = vpack.c.b16 %v780, %v776
        %v877 = vpack.c.b16 %v781, %v777
        %v878 = vpack.c.b16 %v786, %v782
        %v879 = vpack.c.b16 %v787, %v783
        %v880 = vpack.c.b16 %v788, %v784
        %v881 = vpack.c.b16 %v789, %v785
        %v882 = vpack.c.b16 %v794, %v790
        %v883 = vpack.c.b16 %v795, %v791
        %v884 = vpack.c.b16 %v796, %v792
        %v885 = vpack.c.b16 %v797, %v793
        %v886 = vpack.c.b16 %v802, %v798
        %v887 = vpack.c.b16 %v803, %v799
        %v888 = vpack.c.b16 %v804, %v800
        %v889 = vpack.c.b16 %v805, %v801
        %v890 = vpack.c.b16 %v810, %v806
        %v891 = vpack.c.b16 %v811, %v807
        %v892 = vpack.c.b16 %v812, %v808
        %v893 = vpack.c.b16 %v813, %v809
        %v894 = vpack.c.b16 %v818, %v814
        %v895 = vpack.c.b16 %v819, %v815
        %v896 = vpack.c.b16 %v820, %v816
        %v897 = vpack.c.b16 %v821, %v817
        %v898 = vpack.c.b16 %v826, %v822
        %v899 = vpack.c.b16 %v827, %v823
        %v900 = vpack.c.b16 %v828, %v824
        %v901 = vpack.c.b16 %v829, %v825
        %v902 = vpack.c.b16 %v834, %v830
        %v903 = vpack.c.b16 %v835, %v831
        %v904 = vpack.c.b16 %v836, %v832
        %v905 = vpack.c.b16 %v837, %v833
        %v906 = vpack.c.b16 %v842, %v838
        %v907 = vpack.c.b16 %v843, %v839
        %v908 = vpack.c.b16 %v844, %v840
        %v909 = vpack.c.b16 %v845, %v841
        %974 = vmatprep.subr.bf16.mxu0 %v847
        %975 = vmatpush1.bf16.msra.mxu0 %v846
        %976 = vmatprep.subr.bf16.mxu0 %v851
        %977 = vmatpush1.bf16.msra.mxu0 %v850
        %978 = vmatprep.subr.bf16.mxu0 %v855
        %979 = vmatpush1.bf16.msra.mxu0 %v854
        %980 = vmatprep.subr.bf16.mxu0 %v859
        %981 = vmatpush1.bf16.msra.mxu0 %v858
        %982 = vmatprep.subr.bf16.mxu0 %v863
        %983 = vmatpush1.bf16.msra.mxu0 %v862
        %984 = vmatprep.subr.bf16.mxu0 %v867
        %985 = vmatpush1.bf16.msra.mxu0 %v866
        %986 = vmatprep.subr.bf16.mxu0 %v871
        %987 = vmatpush1.bf16.msra.mxu0 %v870
        %988 = vmatprep.subr.bf16.mxu0 %v875
        %989 = vmatpush1.bf16.msra.mxu0 %v874
        %990 = vmatprep.subr.bf16.mxu0 %v879
        %991 = vmatpush1.bf16.msra.mxu0 %v878
        %992 = vmatprep.subr.bf16.mxu0 %v883
        %993 = vmatpush1.bf16.msra.mxu0 %v882
        %994 = vmatprep.subr.bf16.mxu0 %v887
        %995 = vmatpush1.bf16.msra.mxu0 %v886
        %996 = vmatprep.subr.bf16.mxu0 %v891
        %997 = vmatpush1.bf16.msra.mxu0 %v890
        %998 = vmatprep.subr.bf16.mxu0 %v895
        %999 = vmatpush1.bf16.msra.mxu0 %v894
        %1000 = vmatprep.subr.bf16.mxu0 %v899
        %1001 = vmatpush1.bf16.msra.mxu0 %v898
        %1002 = vmatprep.subr.bf16.mxu0 %v903
        %1003 = vmatpush1.bf16.msra.mxu0 %v902
        %1004 = vmatprep.subr.bf16.mxu0 %v907
        %1005 = vmatpush1.bf16.msra.mxu0 %v906
        %1006 = vmatprep.mubr.bf16.mxu0 %v589
        %1007 = vmatmul.mubr.bf16.gmra.mrb[0].mxu0 %v588
        %v1008 = vpop.f32.mrb[0].mxu0
        %v1009 = vadd.f32 0.0, %v1008
        %v1010 = vpop.f32.mrb[0].mxu0
        %v1011 = vadd.f32 0.0, %v1010
        %v1012 = vpop.f32.mrb[0].mxu0
        %v1013 = vpop.f32.mrb[0].mxu0
        %1014 = vdwg.mxu0
        %1015 = vmatprep.subr.bf16.mxu0 %v849
        %1016 = vmatpush1.bf16.msra.mxu0 %v848
        %1017 = vmatprep.subr.bf16.mxu0 %v853
        %1018 = vmatpush1.bf16.msra.mxu0 %v852
        %1019 = vmatprep.subr.bf16.mxu0 %v857
        %1020 = vmatpush1.bf16.msra.mxu0 %v856
        %1021 = vmatprep.subr.bf16.mxu0 %v861
        %1022 = vmatpush1.bf16.msra.mxu0 %v860
        %1023 = vmatprep.subr.bf16.mxu0 %v865
        %1024 = vmatpush1.bf16.msra.mxu0 %v864
        %1025 = vmatprep.subr.bf16.mxu0 %v869
        %1026 = vmatpush1.bf16.msra.mxu0 %v868
        %1027 = vmatprep.subr.bf16.mxu0 %v873
        %1028 = vmatpush1.bf16.msra.mxu0 %v872
        %1029 = vmatprep.subr.bf16.mxu0 %v877
        %1030 = vmatpush1.bf16.msra.mxu0 %v876
        %1031 = vmatprep.subr.bf16.mxu0 %v881
        %1032 = vmatpush1.bf16.msra.mxu0 %v880
        %1033 = vmatprep.subr.bf16.mxu0 %v885
        %1034 = vmatpush1.bf16.msra.mxu0 %v884
        %1035 = vmatprep.subr.bf16.mxu0 %v889
        %1036 = vmatpush1.bf16.msra.mxu0 %v888
        %1037 = vmatprep.subr.bf16.mxu0 %v893
        %1038 = vmatpush1.bf16.msra.mxu0 %v892
        %1039 = vmatprep.subr.bf16.mxu0 %v897
        %1040 = vmatpush1.bf16.msra.mxu0 %v896
        %1041 = vmatprep.subr.bf16.mxu0 %v901
        %1042 = vmatpush1.bf16.msra.mxu0 %v900
        %1043 = vmatprep.subr.bf16.mxu0 %v905
        %1044 = vmatpush1.bf16.msra.mxu0 %v904
        %1045 = vmatprep.subr.bf16.mxu0 %v909
        %1046 = vmatpush1.bf16.msra.mxu0 %v908
        %1047 = vmatprep.mubr.bf16.mxu0 %v589
        %1048 = vmatmul.mubr.bf16.gmra.mrb[0].mxu0 %v588
        %v1049 = vpop.f32.mrb[0].mxu0
        %v1050 = vadd.f32 0.0, %v1049
        %v1051 = vpop.f32.mrb[0].mxu0
        %v1052 = vadd.f32 0.0, %v1051
        %v1053 = vpop.f32.mrb[0].mxu0
        %v1054 = vpop.f32.mrb[0].mxu0
        %1055 = vdwg.mxu0
        %v1056 = vpack.c.bf16 %v1009, %v1009
        %v1057 = vpack.c.bf16 %v1011, %v1011
        %v1058 = vpack.c.bf16 %v1050, %v1050
        %v1059 = vpack.c.bf16 %v1052, %v1052
        %v1060 = vld [vmem:[%s4] sm:$0xf]
        %v1063 = vunpack.c.l.s4 1966171168
        %v1064 = vunpack.c.0.s8 %v1063
        %v1065 = vlaneseq
        %v1066 = vshrl.u32 %v1065, 7
        %v1067 = vsub.s32 %v1064, %v1066
        %v1068 = vrot.slane %v1060, %v1067
        %v1069 = vcombine.high %v1068, %v1068
        %v1071 = vunpack.c.l.s4 1966171168
        %v1072 = vunpack.c.0.s8 %v1071
        %v1073 = vlaneseq
        %v1074 = vshrl.u32 %v1073, 7
        %v1075 = vsub.s32 %v1072, %v1074
        %v1076 = vrot.slane %v1068, %v1075
        %v1078 = vunpack.c.l.s4 1966171168
        %v1079 = vunpack.c.0.s8 %v1078
        %v1080 = vlaneseq
        %v1081 = vshrl.u32 %v1080, 7
        %v1082 = vsub.s32 %v1079, %v1081
        %v1083 = vrot.slane %v1069, %v1082
        %v1084 = vcombine.high %v1076, %v1076
        %v1085 = vcombine.high %v1083, %v1083
        %v1087 = vpack.i.b16 %v1076, %v1076
        %v1089 = vlaneseq
        %v1090 = vshrl.u32 %v1089, 7
        %v1091 = vsub.s32 0, %v1090
        %v1092 = vrot.slane %v1087, %v1091
        %v1094 = vpack.i.b16 %v1083, %v1083
        %v1096 = vlaneseq
        %v1097 = vshrl.u32 %v1096, 7
        %v1098 = vsub.s32 0, %v1097
        %v1099 = vrot.slane %v1094, %v1098
        %v1101 = vpack.i.b16 %v1084, %v1084
        %v1103 = vlaneseq
        %v1104 = vshrl.u32 %v1103, 7
        %v1105 = vsub.s32 0, %v1104
        %v1106 = vrot.slane %v1101, %v1105
        %v1108 = vpack.i.b16 %v1085, %v1085
        %v1110 = vlaneseq
        %v1111 = vshrl.u32 %v1110, 7
        %v1112 = vsub.s32 0, %v1111
        %v1113 = vrot.slane %v1108, %v1112
        %v1114 = vadd.bf16 %v1056, %v1092
        %v1115 = vadd.bf16 %v1057, %v1099
        %v1116 = vadd.bf16 %v1058, %v1106
        %v1117 = vadd.bf16 %v1059, %v1113
        %v1118 = vmax.bf16 %v1114, 0
        %v1119 = vmax.bf16 %v1115, 0
        %v1120 = vmax.bf16 %v1116, 0
        %v1121 = vmax.bf16 %v1117, 0
        %v1122 = vld [vmem:[#allocation8] sm:$0xff]
        %v1123 = vld [vmem:[#allocation8 + $0x8] sm:$0xff]
        %v1124 = vld [vmem:[#allocation8 + $0x10] sm:$0xff]
        %v1125 = vld [vmem:[#allocation8 + $0x18] sm:$0xff]
        %v1126 = vld [vmem:[#allocation8 + $0x20] sm:$0xff]
        %v1127 = vld [vmem:[#allocation8 + $0x28] sm:$0xff]
        %v1128 = vld [vmem:[#allocation8 + $0x30] sm:$0xff]
        %v1129 = vld [vmem:[#allocation8 + $0x38] sm:$0xff]
        %v1130 = vld [vmem:[#allocation8 + $0x40] sm:$0xff]
        %v1131 = vld [vmem:[#allocation8 + $0x48] sm:$0xff]
        %v1132 = vld [vmem:[#allocation8 + $0x50] sm:$0xff]
        %v1133 = vld [vmem:[#allocation8 + $0x58] sm:$0xff]
        %v1134 = vld [vmem:[#allocation8 + $0x60] sm:$0xff]
        %v1135 = vld [vmem:[#allocation8 + $0x68] sm:$0xff]
        %v1136 = vld [vmem:[#allocation8 + $0x70] sm:$0xff]
        %v1137 = vld [vmem:[#allocation8 + $0x78] sm:$0xff]
        %v1138 = vld [vmem:[#allocation8 + $0x80] sm:$0xff]
        %v1139 = vld [vmem:[#allocation8 + $0x88] sm:$0xff]
        %v1140 = vld [vmem:[#allocation8 + $0x90] sm:$0xff]
        %v1141 = vld [vmem:[#allocation8 + $0x98] sm:$0xff]
        %v1142 = vld [vmem:[#allocation8 + $0xa0] sm:$0xff]
        %v1143 = vld [vmem:[#allocation8 + $0xa8] sm:$0xff]
        %v1144 = vld [vmem:[#allocation8 + $0xb0] sm:$0xff]
        %v1145 = vld [vmem:[#allocation8 + $0xb8] sm:$0xff]
        %v1146 = vld [vmem:[#allocation8 + $0xc0] sm:$0xff]
        %v1147 = vld [vmem:[#allocation8 + $0xc8] sm:$0xff]
        %v1148 = vld [vmem:[#allocation8 + $0xd0] sm:$0xff]
        %v1149 = vld [vmem:[#allocation8 + $0xd8] sm:$0xff]
        %v1150 = vld [vmem:[#allocation8 + $0xe0] sm:$0xff]
        %v1151 = vld [vmem:[#allocation8 + $0xe8] sm:$0xff]
        %v1152 = vld [vmem:[#allocation8 + $0xf0] sm:$0xff]
        %v1153 = vld [vmem:[#allocation8 + $0xf8] sm:$0xff]
        %v1154 = vld [vmem:[#allocation8 + $0x100] sm:$0xff]
        %v1155 = vld [vmem:[#allocation8 + $0x108] sm:$0xff]
        %v1156 = vld [vmem:[#allocation8 + $0x110] sm:$0xff]
        %v1157 = vld [vmem:[#allocation8 + $0x118] sm:$0xff]
        %v1158 = vld [vmem:[#allocation8 + $0x120] sm:$0xff]
        %v1159 = vld [vmem:[#allocation8 + $0x128] sm:$0xff]
        %v1160 = vld [vmem:[#allocation8 + $0x130] sm:$0xff]
        %v1161 = vld [vmem:[#allocation8 + $0x138] sm:$0xff]
        %v1162 = vld [vmem:[#allocation8 + $0x140] sm:$0xff]
        %v1163 = vld [vmem:[#allocation8 + $0x148] sm:$0xff]
        %v1164 = vld [vmem:[#allocation8 + $0x150] sm:$0xff]
        %v1165 = vld [vmem:[#allocation8 + $0x158] sm:$0xff]
        %v1166 = vld [vmem:[#allocation8 + $0x160] sm:$0xff]
        %v1167 = vld [vmem:[#allocation8 + $0x168] sm:$0xff]
        %v1168 = vld [vmem:[#allocation8 + $0x170] sm:$0xff]
        %v1169 = vld [vmem:[#allocation8 + $0x178] sm:$0xff]
        %v1170 = vld [vmem:[#allocation8 + $0x180] sm:$0xff]
        %v1171 = vld [vmem:[#allocation8 + $0x188] sm:$0xff]
        %v1172 = vld [vmem:[#allocation8 + $0x190] sm:$0xff]
        %v1173 = vld [vmem:[#allocation8 + $0x198] sm:$0xff]
        %v1174 = vld [vmem:[#allocation8 + $0x1a0] sm:$0xff]
        %v1175 = vld [vmem:[#allocation8 + $0x1a8] sm:$0xff]
        %v1176 = vld [vmem:[#allocation8 + $0x1b0] sm:$0xff]
        %v1177 = vld [vmem:[#allocation8 + $0x1b8] sm:$0xff]
        %v1178 = vld [vmem:[#allocation8 + $0x1c0] sm:$0xff]
        %v1179 = vld [vmem:[#allocation8 + $0x1c8] sm:$0xff]
        %v1180 = vld [vmem:[#allocation8 + $0x1d0] sm:$0xff]
        %v1181 = vld [vmem:[#allocation8 + $0x1d8] sm:$0xff]
        %v1182 = vld [vmem:[#allocation8 + $0x1e0] sm:$0xff]
        %v1183 = vld [vmem:[#allocation8 + $0x1e8] sm:$0xff]
        %v1184 = vld [vmem:[#allocation8 + $0x1f0] sm:$0xff]
        %v1185 = vld [vmem:[#allocation8 + $0x1f8] sm:$0xff]
        %v1250 = vunpack.c.l.b16 %v1122
        %v1251 = vunpack.c.h.b16 %v1122
        %v1252 = vunpack.c.l.b16 %v1123
        %v1253 = vunpack.c.h.b16 %v1123
        %v1254 = vunpack.c.l.b16 %v1124
        %v1255 = vunpack.c.h.b16 %v1124
        %v1256 = vunpack.c.l.b16 %v1125
        %v1257 = vunpack.c.h.b16 %v1125
        %v1258 = vunpack.c.l.b16 %v1126
        %v1259 = vunpack.c.h.b16 %v1126
        %v1260 = vunpack.c.l.b16 %v1127
        %v1261 = vunpack.c.h.b16 %v1127
        %v1262 = vunpack.c.l.b16 %v1128
        %v1263 = vunpack.c.h.b16 %v1128
        %v1264 = vunpack.c.l.b16 %v1129
        %v1265 = vunpack.c.h.b16 %v1129
        %v1266 = vunpack.c.l.b16 %v1130
        %v1267 = vunpack.c.h.b16 %v1130
        %v1268 = vunpack.c.l.b16 %v1131
        %v1269 = vunpack.c.h.b16 %v1131
        %v1270 = vunpack.c.l.b16 %v1132
        %v1271 = vunpack.c.h.b16 %v1132
        %v1272 = vunpack.c.l.b16 %v1133
        %v1273 = vunpack.c.h.b16 %v1133
        %v1274 = vunpack.c.l.b16 %v1134
        %v1275 = vunpack.c.h.b16 %v1134
        %v1276 = vunpack.c.l.b16 %v1135
        %v1277 = vunpack.c.h.b16 %v1135
        %v1278 = vunpack.c.l.b16 %v1136
        %v1279 = vunpack.c.h.b16 %v1136
        %v1280 = vunpack.c.l.b16 %v1137
        %v1281 = vunpack.c.h.b16 %v1137
        %v1282 = vunpack.c.l.b16 %v1138
        %v1283 = vunpack.c.h.b16 %v1138
        %v1284 = vunpack.c.l.b16 %v1139
        %v1285 = vunpack.c.h.b16 %v1139
        %v1286 = vunpack.c.l.b16 %v1140
        %v1287 = vunpack.c.h.b16 %v1140
        %v1288 = vunpack.c.l.b16 %v1141
        %v1289 = vunpack.c.h.b16 %v1141
        %v1290 = vunpack.c.l.b16 %v1142
        %v1291 = vunpack.c.h.b16 %v1142
        %v1292 = vunpack.c.l.b16 %v1143
        %v1293 = vunpack.c.h.b16 %v1143
        %v1294 = vunpack.c.l.b16 %v1144
        %v1295 = vunpack.c.h.b16 %v1144
        %v1296 = vunpack.c.l.b16 %v1145
        %v1297 = vunpack.c.h.b16 %v1145
        %v1298 = vunpack.c.l.b16 %v1146
        %v1299 = vunpack.c.h.b16 %v1146
        %v1300 = vunpack.c.l.b16 %v1147
        %v1301 = vunpack.c.h.b16 %v1147
        %v1302 = vunpack.c.l.b16 %v1148
        %v1303 = vunpack.c.h.b16 %v1148
        %v1304 = vunpack.c.l.b16 %v1149
        %v1305 = vunpack.c.h.b16 %v1149
        %v1306 = vunpack.c.l.b16 %v1150
        %v1307 = vunpack.c.h.b16 %v1150
        %v1308 = vunpack.c.l.b16 %v1151
        %v1309 = vunpack.c.h.b16 %v1151
        %v1310 = vunpack.c.l.b16 %v1152
        %v1311 = vunpack.c.h.b16 %v1152
        %v1312 = vunpack.c.l.b16 %v1153
        %v1313 = vunpack.c.h.b16 %v1153
        %v1314 = vunpack.c.l.b16 %v1154
        %v1315 = vunpack.c.h.b16 %v1154
        %v1316 = vunpack.c.l.b16 %v1155
        %v1317 = vunpack.c.h.b16 %v1155
        %v1318 = vunpack.c.l.b16 %v1156
        %v1319 = vunpack.c.h.b16 %v1156
        %v1320 = vunpack.c.l.b16 %v1157
        %v1321 = vunpack.c.h.b16 %v1157
        %v1322 = vunpack.c.l.b16 %v1158
        %v1323 = vunpack.c.h.b16 %v1158
        %v1324 = vunpack.c.l.b16 %v1159
        %v1325 = vunpack.c.h.b16 %v1159
        %v1326 = vunpack.c.l.b16 %v1160
        %v1327 = vunpack.c.h.b16 %v1160
        %v1328 = vunpack.c.l.b16 %v1161
        %v1329 = vunpack.c.h.b16 %v1161
        %v1330 = vunpack.c.l.b16 %v1162
        %v1331 = vunpack.c.h.b16 %v1162
        %v1332 = vunpack.c.l.b16 %v1163
        %v1333 = vunpack.c.h.b16 %v1163
        %v1334 = vunpack.c.l.b16 %v1164
        %v1335 = vunpack.c.h.b16 %v1164
        %v1336 = vunpack.c.l.b16 %v1165
        %v1337 = vunpack.c.h.b16 %v1165
        %v1338 = vunpack.c.l.b16 %v1166
        %v1339 = vunpack.c.h.b16 %v1166
        %v1340 = vunpack.c.l.b16 %v1167
        %v1341 = vunpack.c.h.b16 %v1167
        %v1342 = vunpack.c.l.b16 %v1168
        %v1343 = vunpack.c.h.b16 %v1168
        %v1344 = vunpack.c.l.b16 %v1169
        %v1345 = vunpack.c.h.b16 %v1169
        %v1346 = vunpack.c.l.b16 %v1170
        %v1347 = vunpack.c.h.b16 %v1170
        %v1348 = vunpack.c.l.b16 %v1171
        %v1349 = vunpack.c.h.b16 %v1171
        %v1350 = vunpack.c.l.b16 %v1172
        %v1351 = vunpack.c.h.b16 %v1172
        %v1352 = vunpack.c.l.b16 %v1173
        %v1353 = vunpack.c.h.b16 %v1173
        %v1354 = vunpack.c.l.b16 %v1174
        %v1355 = vunpack.c.h.b16 %v1174
        %v1356 = vunpack.c.l.b16 %v1175
        %v1357 = vunpack.c.h.b16 %v1175
        %v1358 = vunpack.c.l.b16 %v1176
        %v1359 = vunpack.c.h.b16 %v1176
        %v1360 = vunpack.c.l.b16 %v1177
        %v1361 = vunpack.c.h.b16 %v1177
        %v1362 = vunpack.c.l.b16 %v1178
        %v1363 = vunpack.c.h.b16 %v1178
        %v1364 = vunpack.c.l.b16 %v1179
        %v1365 = vunpack.c.h.b16 %v1179
        %v1366 = vunpack.c.l.b16 %v1180
        %v1367 = vunpack.c.h.b16 %v1180
        %v1368 = vunpack.c.l.b16 %v1181
        %v1369 = vunpack.c.h.b16 %v1181
        %v1370 = vunpack.c.l.b16 %v1182
        %v1371 = vunpack.c.h.b16 %v1182
        %v1372 = vunpack.c.l.b16 %v1183
        %v1373 = vunpack.c.h.b16 %v1183
        %v1374 = vunpack.c.l.b16 %v1184
        %v1375 = vunpack.c.h.b16 %v1184
        %v1376 = vunpack.c.l.b16 %v1185
        %v1377 = vunpack.c.h.b16 %v1185
        %v1378 = vpack.c.b16 %v1252, %v1250
        %v1379 = vpack.c.b16 %v1253, %v1251
        %v1380 = vpack.c.b16 %v1256, %v1254
        %v1381 = vpack.c.b16 %v1257, %v1255
        %v1382 = vpack.c.b16 %v1260, %v1258
        %v1383 = vpack.c.b16 %v1261, %v1259
        %v1384 = vpack.c.b16 %v1264, %v1262
        %v1385 = vpack.c.b16 %v1265, %v1263
        %v1386 = vpack.c.b16 %v1268, %v1266
        %v1387 = vpack.c.b16 %v1269, %v1267
        %v1388 = vpack.c.b16 %v1272, %v1270
        %v1389 = vpack.c.b16 %v1273, %v1271
        %v1390 = vpack.c.b16 %v1276, %v1274
        %v1391 = vpack.c.b16 %v1277, %v1275
        %v1392 = vpack.c.b16 %v1280, %v1278
        %v1393 = vpack.c.b16 %v1281, %v1279
        %v1394 = vpack.c.b16 %v1284, %v1282
        %v1395 = vpack.c.b16 %v1285, %v1283
        %v1396 = vpack.c.b16 %v1288, %v1286
        %v1397 = vpack.c.b16 %v1289, %v1287
        %v1398 = vpack.c.b16 %v1292, %v1290
        %v1399 = vpack.c.b16 %v1293, %v1291
        %v1400 = vpack.c.b16 %v1296, %v1294
        %v1401 = vpack.c.b16 %v1297, %v1295
        %v1402 = vpack.c.b16 %v1300, %v1298
        %v1403 = vpack.c.b16 %v1301, %v1299
        %v1404 = vpack.c.b16 %v1304, %v1302
        %v1405 = vpack.c.b16 %v1305, %v1303
        %v1406 = vpack.c.b16 %v1308, %v1306
        %v1407 = vpack.c.b16 %v1309, %v1307
        %v1408 = vpack.c.b16 %v1312, %v1310
        %v1409 = vpack.c.b16 %v1313, %v1311
        %v1410 = vpack.c.b16 %v1316, %v1314
        %v1411 = vpack.c.b16 %v1317, %v1315
        %v1412 = vpack.c.b16 %v1320, %v1318
        %v1413 = vpack.c.b16 %v1321, %v1319
        %v1414 = vpack.c.b16 %v1324, %v1322
        %v1415 = vpack.c.b16 %v1325, %v1323
        %v1416 = vpack.c.b16 %v1328, %v1326
        %v1417 = vpack.c.b16 %v1329, %v1327
        %v1418 = vpack.c.b16 %v1332, %v1330
        %v1419 = vpack.c.b16 %v1333, %v1331
        %v1420 = vpack.c.b16 %v1336, %v1334
        %v1421 = vpack.c.b16 %v1337, %v1335
        %v1422 = vpack.c.b16 %v1340, %v1338
        %v1423 = vpack.c.b16 %v1341, %v1339
        %v1424 = vpack.c.b16 %v1344, %v1342
        %v1425 = vpack.c.b16 %v1345, %v1343
        %v1426 = vpack.c.b16 %v1348, %v1346
        %v1427 = vpack.c.b16 %v1349, %v1347
        %v1428 = vpack.c.b16 %v1352, %v1350
        %v1429 = vpack.c.b16 %v1353, %v1351
        %v1430 = vpack.c.b16 %v1356, %v1354
        %v1431 = vpack.c.b16 %v1357, %v1355
        %v1432 = vpack.c.b16 %v1360, %v1358
        %v1433 = vpack.c.b16 %v1361, %v1359
        %v1434 = vpack.c.b16 %v1364, %v1362
        %v1435 = vpack.c.b16 %v1365, %v1363
        %v1436 = vpack.c.b16 %v1368, %v1366
        %v1437 = vpack.c.b16 %v1369, %v1367
        %v1438 = vpack.c.b16 %v1372, %v1370
        %v1439 = vpack.c.b16 %v1373, %v1371
        %v1440 = vpack.c.b16 %v1376, %v1374
        %v1441 = vpack.c.b16 %v1377, %v1375
        %1506 = vmatprep.subr.bf16.mxu0 %v1379
        %1507 = vmatpush1.bf16.msra.mxu0 %v1378
        %1508 = vmatprep.subr.bf16.mxu0 %v1381
        %1509 = vmatpush1.bf16.msra.mxu0 %v1380
        %1510 = vmatprep.subr.bf16.mxu0 %v1383
        %1511 = vmatpush1.bf16.msra.mxu0 %v1382
        %1512 = vmatprep.subr.bf16.mxu0 %v1385
        %1513 = vmatpush1.bf16.msra.mxu0 %v1384
        %1514 = vmatprep.subr.bf16.mxu0 %v1387
        %1515 = vmatpush1.bf16.msra.mxu0 %v1386
        %1516 = vmatprep.subr.bf16.mxu0 %v1389
        %1517 = vmatpush1.bf16.msra.mxu0 %v1388
        %1518 = vmatprep.subr.bf16.mxu0 %v1391
        %1519 = vmatpush1.bf16.msra.mxu0 %v1390
        %1520 = vmatprep.subr.bf16.mxu0 %v1393
        %1521 = vmatpush1.bf16.msra.mxu0 %v1392
        %1522 = vmatprep.subr.bf16.mxu0 %v1395
        %1523 = vmatpush1.bf16.msra.mxu0 %v1394
        %1524 = vmatprep.subr.bf16.mxu0 %v1397
        %1525 = vmatpush1.bf16.msra.mxu0 %v1396
        %1526 = vmatprep.subr.bf16.mxu0 %v1399
        %1527 = vmatpush1.bf16.msra.mxu0 %v1398
        %1528 = vmatprep.subr.bf16.mxu0 %v1401
        %1529 = vmatpush1.bf16.msra.mxu0 %v1400
        %1530 = vmatprep.subr.bf16.mxu0 %v1403
        %1531 = vmatpush1.bf16.msra.mxu0 %v1402
        %1532 = vmatprep.subr.bf16.mxu0 %v1405
        %1533 = vmatpush1.bf16.msra.mxu0 %v1404
        %1534 = vmatprep.subr.bf16.mxu0 %v1407
        %1535 = vmatpush1.bf16.msra.mxu0 %v1406
        %1536 = vmatprep.subr.bf16.mxu0 %v1409
        %1537 = vmatpush1.bf16.msra.mxu0 %v1408
        %1538 = vmatprep.mubr.bf16.mxu0 %v1119
        %1539 = vmatmul.mubr.bf16.gmra.mrb[0].mxu0 %v1118
        %v1540 = vpop.f32.mrb[0].mxu0
        %v1541 = vadd.f32 0.0, %v1540
        %v1542 = vpop.f32.mrb[0].mxu0
        %v1543 = vadd.f32 0.0, %v1542
        %v1544 = vpop.f32.mrb[0].mxu0
        %v1545 = vpop.f32.mrb[0].mxu0
        %1546 = vdwg.mxu0
        %1547 = vmatprep.subr.bf16.mxu0 %v1411
        %1548 = vmatpush1.bf16.msra.mxu0 %v1410
        %1549 = vmatprep.subr.bf16.mxu0 %v1413
        %1550 = vmatpush1.bf16.msra.mxu0 %v1412
        %1551 = vmatprep.subr.bf16.mxu0 %v1415
        %1552 = vmatpush1.bf16.msra.mxu0 %v1414
        %1553 = vmatprep.subr.bf16.mxu0 %v1417
        %1554 = vmatpush1.bf16.msra.mxu0 %v1416
        %1555 = vmatprep.subr.bf16.mxu0 %v1419
        %1556 = vmatpush1.bf16.msra.mxu0 %v1418
        %1557 = vmatprep.subr.bf16.mxu0 %v1421
        %1558 = vmatpush1.bf16.msra.mxu0 %v1420
        %1559 = vmatprep.subr.bf16.mxu0 %v1423
        %1560 = vmatpush1.bf16.msra.mxu0 %v1422
        %1561 = vmatprep.subr.bf16.mxu0 %v1425
        %1562 = vmatpush1.bf16.msra.mxu0 %v1424
        %1563 = vmatprep.subr.bf16.mxu0 %v1427
        %1564 = vmatpush1.bf16.msra.mxu0 %v1426
        %1565 = vmatprep.subr.bf16.mxu0 %v1429
        %1566 = vmatpush1.bf16.msra.mxu0 %v1428
        %1567 = vmatprep.subr.bf16.mxu0 %v1431
        %1568 = vmatpush1.bf16.msra.mxu0 %v1430
        %1569 = vmatprep.subr.bf16.mxu0 %v1433
        %1570 = vmatpush1.bf16.msra.mxu0 %v1432
        %1571 = vmatprep.subr.bf16.mxu0 %v1435
        %1572 = vmatpush1.bf16.msra.mxu0 %v1434
        %1573 = vmatprep.subr.bf16.mxu0 %v1437
        %1574 = vmatpush1.bf16.msra.mxu0 %v1436
        %1575 = vmatprep.subr.bf16.mxu0 %v1439
        %1576 = vmatpush1.bf16.msra.mxu0 %v1438
        %1577 = vmatprep.subr.bf16.mxu0 %v1441
        %1578 = vmatpush1.bf16.msra.mxu0 %v1440
        %1579 = vmatprep.mubr.bf16.mxu0 %v1121
        %1580 = vmatmul.mubr.bf16.gmra.mrb[0].mxu0 %v1120
        %v1581 = vpop.f32.mrb[0].mxu0
        %v1582 = vadd.f32 %v1541, %v1581
        %v1583 = vpop.f32.mrb[0].mxu0
        %v1584 = vadd.f32 %v1543, %v1583
        %v1585 = vpop.f32.mrb[0].mxu0
        %v1586 = vpop.f32.mrb[0].mxu0
        %1587 = vdwg.mxu0
        %v1588 = vpack.c.bf16 %v1582, %v1582
        %v1589 = vpack.c.bf16 %v1584, %v1584
        %v1590 = vld [vmem:[%s6] sm:$0x3]
        %v1593 = vunpack.c.l.s4 1966171168
        %v1594 = vunpack.c.0.s8 %v1593
        %v1595 = vlaneseq
        %v1596 = vshrl.u32 %v1595, 7
        %v1597 = vsub.s32 %v1594, %v1596
        %v1598 = vrot.slane %v1590, %v1597
        %v1599 = vcombine.high %v1598, %v1598
        %v1601 = vunpack.c.l.s4 1966171168
        %v1602 = vunpack.c.0.s8 %v1601
        %v1603 = vlaneseq
        %v1604 = vshrl.u32 %v1603, 7
        %v1605 = vsub.s32 %v1602, %v1604
        %v1606 = vrot.slane %v1598, %v1605
        %v1608 = vunpack.c.l.s4 1966171168
        %v1609 = vunpack.c.0.s8 %v1608
        %v1610 = vlaneseq
        %v1611 = vshrl.u32 %v1610, 7
        %v1612 = vsub.s32 %v1609, %v1611
        %v1613 = vrot.slane %v1599, %v1612
        %v1615 = vpack.i.b16 %v1606, %v1606
        %v1617 = vlaneseq
        %v1618 = vshrl.u32 %v1617, 7
        %v1619 = vsub.s32 0, %v1618
        %v1620 = vrot.slane %v1615, %v1619
        %v1622 = vpack.i.b16 %v1613, %v1613
        %v1624 = vlaneseq
        %v1625 = vshrl.u32 %v1624, 7
        %v1626 = vsub.s32 0, %v1625
        %v1627 = vrot.slane %v1622, %v1626
        %v1628 = vadd.bf16 %v1588, %v1620
        %v1629 = vadd.bf16 %v1589, %v1627
        %v1630 = vmax.bf16 %v1628, 0
        %v1631 = vmax.bf16 %v1629, 0
        %v1632 = vld [vmem:[#allocation10] sm:$0xf]
        %v1633 = vld [vmem:[#allocation10 + $0x4] sm:$0xf]
        %v1634 = vld [vmem:[#allocation10 + $0x8] sm:$0xf]
        %v1635 = vld [vmem:[#allocation10 + $0xc] sm:$0xf]
        %v1636 = vld [vmem:[#allocation10 + $0x10] sm:$0xf]
        %v1637 = vld [vmem:[#allocation10 + $0x14] sm:$0xf]
        %v1638 = vld [vmem:[#allocation10 + $0x18] sm:$0xf]
        %v1639 = vld [vmem:[#allocation10 + $0x1c] sm:$0xf]
        %v1640 = vld [vmem:[#allocation10 + $0x20] sm:$0xf]
        %v1641 = vld [vmem:[#allocation10 + $0x24] sm:$0xf]
        %v1642 = vld [vmem:[#allocation10 + $0x28] sm:$0xf]
        %v1643 = vld [vmem:[#allocation10 + $0x2c] sm:$0xf]
        %v1644 = vld [vmem:[#allocation10 + $0x30] sm:$0xf]
        %v1645 = vld [vmem:[#allocation10 + $0x34] sm:$0xf]
        %v1646 = vld [vmem:[#allocation10 + $0x38] sm:$0xf]
        %v1647 = vld [vmem:[#allocation10 + $0x3c] sm:$0xf]
        %v1648 = vld [vmem:[#allocation10 + $0x40] sm:$0xf]
        %v1649 = vld [vmem:[#allocation10 + $0x44] sm:$0xf]
        %v1650 = vld [vmem:[#allocation10 + $0x48] sm:$0xf]
        %v1651 = vld [vmem:[#allocation10 + $0x4c] sm:$0xf]
        %v1652 = vld [vmem:[#allocation10 + $0x50] sm:$0xf]
        %v1653 = vld [vmem:[#allocation10 + $0x54] sm:$0xf]
        %v1654 = vld [vmem:[#allocation10 + $0x58] sm:$0xf]
        %v1655 = vld [vmem:[#allocation10 + $0x5c] sm:$0xf]
        %v1656 = vld [vmem:[#allocation10 + $0x60] sm:$0xf]
        %v1657 = vld [vmem:[#allocation10 + $0x64] sm:$0xf]
        %v1658 = vld [vmem:[#allocation10 + $0x68] sm:$0xf]
        %v1659 = vld [vmem:[#allocation10 + $0x6c] sm:$0xf]
        %v1660 = vld [vmem:[#allocation10 + $0x70] sm:$0xf]
        %v1661 = vld [vmem:[#allocation10 + $0x74] sm:$0xf]
        %v1662 = vld [vmem:[#allocation10 + $0x78] sm:$0xf]
        %v1663 = vld [vmem:[#allocation10 + $0x7c] sm:$0xf]
        %v1664 = vld [vmem:[%s8] sm:$0x1]
        %v1666 = vlaneseq
        %v1667 = vshrl.u32 %v1666, 7
        %v1668 = vsub.s32 0, %v1667
        %v1669 = vrot.slane %v1664, %v1668
        %v1703 = vunpack.c.l.b16 %v1632
        %v1704 = vunpack.c.l.b16 %v1633
        %v1705 = vunpack.c.l.b16 %v1634
        %v1706 = vunpack.c.l.b16 %v1635
        %v1707 = vunpack.c.l.b16 %v1636
        %v1708 = vunpack.c.l.b16 %v1637
        %v1709 = vunpack.c.l.b16 %v1638
        %v1710 = vunpack.c.l.b16 %v1639
        %v1711 = vunpack.c.l.b16 %v1640
        %v1712 = vunpack.c.l.b16 %v1641
        %v1713 = vunpack.c.l.b16 %v1642
        %v1714 = vunpack.c.l.b16 %v1643
        %v1715 = vunpack.c.l.b16 %v1644
        %v1716 = vunpack.c.l.b16 %v1645
        %v1717 = vunpack.c.l.b16 %v1646
        %v1718 = vunpack.c.l.b16 %v1647
        %v1719 = vunpack.c.l.b16 %v1648
        %v1720 = vunpack.c.l.b16 %v1649
        %v1721 = vunpack.c.l.b16 %v1650
        %v1722 = vunpack.c.l.b16 %v1651
        %v1723 = vunpack.c.l.b16 %v1652
        %v1724 = vunpack.c.l.b16 %v1653
        %v1725 = vunpack.c.l.b16 %v1654
        %v1726 = vunpack.c.l.b16 %v1655
        %v1727 = vunpack.c.l.b16 %v1656
        %v1728 = vunpack.c.l.b16 %v1657
        %v1729 = vunpack.c.l.b16 %v1658
        %v1730 = vunpack.c.l.b16 %v1659
        %v1731 = vunpack.c.l.b16 %v1660
        %v1732 = vunpack.c.l.b16 %v1661
        %v1733 = vunpack.c.l.b16 %v1662
        %v1734 = vunpack.c.l.b16 %v1663
        %v1735 = vpack.c.b16 %v1704, %v1703
        %v1736 = vpack.c.b16 %v1706, %v1705
        %v1737 = vpack.c.b16 %v1708, %v1707
        %v1738 = vpack.c.b16 %v1710, %v1709
        %v1739 = vpack.c.b16 %v1712, %v1711
        %v1740 = vpack.c.b16 %v1714, %v1713
        %v1741 = vpack.c.b16 %v1716, %v1715
        %v1742 = vpack.c.b16 %v1718, %v1717
        %v1743 = vpack.c.b16 %v1720, %v1719
        %v1744 = vpack.c.b16 %v1722, %v1721
        %v1745 = vpack.c.b16 %v1724, %v1723
        %v1746 = vpack.c.b16 %v1726, %v1725
        %v1747 = vpack.c.b16 %v1728, %v1727
        %v1748 = vpack.c.b16 %v1730, %v1729
        %v1749 = vpack.c.b16 %v1732, %v1731
        %v1750 = vpack.c.b16 %v1734, %v1733
        %1767 = vmatprep.subr.bf16.mxu0 0
        %1768 = vmatpush1.bf16.msra.mxu0 %v1735
        %1769 = vmatprep.subr.bf16.mxu0 0
        %1770 = vmatpush1.bf16.msra.mxu0 %v1736
        %1771 = vmatprep.subr.bf16.mxu0 0
        %1772 = vmatpush1.bf16.msra.mxu0 %v1737
        %1773 = vmatprep.subr.bf16.mxu0 0
        %1774 = vmatpush1.bf16.msra.mxu0 %v1738
        %1775 = vmatprep.subr.bf16.mxu0 0
        %1776 = vmatpush1.bf16.msra.mxu0 %v1739
        %1777 = vmatprep.subr.bf16.mxu0 0
        %1778 = vmatpush1.bf16.msra.mxu0 %v1740
        %1779 = vmatprep.subr.bf16.mxu0 0
        %1780 = vmatpush1.bf16.msra.mxu0 %v1741
        %1781 = vmatprep.subr.bf16.mxu0 0
        %1782 = vmatpush1.bf16.msra.mxu0 %v1742
        %1783 = vmatprep.subr.bf16.mxu0 0
        %1784 = vmatpush1.bf16.msra.mxu0 %v1743
        %1785 = vmatprep.subr.bf16.mxu0 0
        %1786 = vmatpush1.bf16.msra.mxu0 %v1744
        %1787 = vmatprep.subr.bf16.mxu0 0
        %1788 = vmatpush1.bf16.msra.mxu0 %v1745
        %1789 = vmatprep.subr.bf16.mxu0 0
        %1790 = vmatpush1.bf16.msra.mxu0 %v1746
        %1791 = vmatprep.subr.bf16.mxu0 0
        %1792 = vmatpush1.bf16.msra.mxu0 %v1747
        %1793 = vmatprep.subr.bf16.mxu0 0
        %1794 = vmatpush1.bf16.msra.mxu0 %v1748
        %1795 = vmatprep.subr.bf16.mxu0 0
        %1796 = vmatpush1.bf16.msra.mxu0 %v1749
        %1797 = vmatprep.subr.bf16.mxu0 0
        %1798 = vmatpush1.bf16.msra.mxu0 %v1750
        %1799 = vmatprep.mubr.bf16.mxu0 %v1631
        %1800 = vmatmul.mubr.bf16.gmra.mrb[0].mxu0 %v1630
        %v1801 = vpop.f32.mrb[0].mxu0
        %v1802 = vadd.f32 %v1669, %v1801
        %v1803 = vpop.f32.mrb[0].mxu0
        %v1804 = vpop.f32.mrb[0].mxu0
        %v1805 = vpop.f32.mrb[0].mxu0
        %1806 = vdwg.mxu0
        %1807 = vst [vmem:[%s405] sm:$0xff] %v1802
        %s1808 = sand.u32 %s230, 1
        %s1809 = scalar_lea.sflag [#allocation4], %s1808
        %s1810 = sand.u32 %s230, 1
        %s1811 = smul.addr %s1810, 8
        %s1812 = scalar_lea.vmem [#allocation11], %s1811
        // Predicated region
        $region77: #{tpu_custom_call.1} parent=55 // pred_check
          %p1813 = pneg %p240
        $region78: #{tpu_custom_call.1} parent=55 // pred_check_branch
          %1815 = sbr.rel (%p1813) target = $region80
        $region79: #{tpu_custom_call.1} parent=55 // pred_region
          %s1817 = ssub.s32 128, 128
          %1818 = vsyncadd %s1809, %s1817
          %s1819 = smul.addr %s28, 128
          %s1820 = scalar_lea.hbm %s9, %s1819
          %s1822 = sshll.u32 %s1812, 4
          %s1823 = int_to_ptr.vmem [resolvable:$true] %s1822
          %1825 = dma.vmem_to_hbm [thread:$0]  %s1823, 128, %s1820, %s1809
        $region80: #{tpu_custom_call.1} parent=55 // pred_fallthru
          _
      $region56: #{tpu_custom_call.1} parent=5 // pred_fallthru
        _
      %p1826 = scmp.le.s32.totalorder 2, %s23
      // Predicated region
      $region81: #{tpu_custom_call.1} parent=5 // pred_check
        %p1827 = pneg %p1826
      $region82: #{tpu_custom_call.1} parent=5 // pred_check_branch
        %1829 = sbr.rel (%p1827) target = $region84
      $region83: #{tpu_custom_call.1} parent=5 // pred_region
        %s1830 = ssub.s32 %s23, 2
        // Predicated region
        $region85: #{tpu_custom_call.1} parent=83 // pred_check
          %p1831 = pneg %p246
        $region86: #{tpu_custom_call.1} parent=83 // pred_check_branch
          %1833 = sbr.rel (%p1831) target = $region88
        $region87: #{tpu_custom_call.1} parent=83 // pred_region
          %s1834 = sand.u32 %s231, 1
          %s1835 = scalar_lea.sflag [#allocation4], %s1834
          %s1836 = sand.u32 %s231, 1
          %s1837 = smul.addr %s1836, 8
          %s1838 = scalar_lea.vmem [#allocation11], %s1837
          %1839 = dma.done %s1835, 128
        $region88: #{tpu_custom_call.1} parent=83 // pred_fallthru
          _
      $region84: #{tpu_custom_call.1} parent=5 // pred_fallthru
        _
    $region6: #{tpu_custom_call.1} parent=1 // loop_footer
      %s27 = sadd.s32 1, %s23
    $region7: #{tpu_custom_call.1} parent=1 // loop_footer_branch
      %22 = sbr.rel target = $region3
    $region8: #{tpu_custom_call.1} parent=1 // loop_exit
      _
    %1840 = vsyncpa [#allocation3], 1
    %s1841 = scalar_lea.sflag [#allocation3], 1
    %1842 = vsyncpa %s1841, 1
    %1843 = vsyncpa [#allocation6], 1
    %1844 = vsyncpa [#allocation9], 1
    %1845 = vsyncpa [#allocation4], 1
    %s1846 = scalar_lea.sflag [#allocation4], 1
    %1847 = vsyncpa %s1846, 1

// kernel: tpu_custom_call.1
$region0: #{tpu_custom_call.1}
  #allocation0 [shape = 'u32[]', space=smem, size = 0x4, offset = 0x4, fixed_abs, tag = 'smem constant byte address 0x4 - core index']
  #allocation1 [shape = 'u32[144,128]{1,0:T(1,128)}', space=vmem, size = 0x12000, scoped, tag = 'internal scratch']
  %s0 = inlined_call_operand.hbm [shape: f32[16,128], index: 0, kind: input, shape index: {}]
  %s1 = inlined_call_operand.hbm [shape: bf16[128,256], index: 1, kind: input, shape index: {}]
  %s2 = inlined_call_operand.vmem [shape: bf16[1,256], index: 2, kind: input, shape index: {}]
  %s3 = inlined_call_operand.hbm [shape: bf16[256,512], index: 3, kind: input, shape index: {}]
  %s4 = inlined_call_operand.vmem [shape: bf16[1,512], index: 4, kind: input, shape index: {}]
  %s5 = inlined_call_operand.hbm [shape: bf16[512,256], index: 5, kind: input, shape index: {}]
  %s6 = inlined_call_operand.vmem [shape: bf16[1,256], index: 6, kind: input, shape index: {}]
  %s7 = inlined_call_operand.hbm [shape: bf16[256,128], index: 7, kind: input, shape index: {}]
  %s8 = inlined_call_operand.vmem [shape: f32[1,128], index: 8, kind: input, shape index: {}]
  %s9 = inlined_call_operand.hbm [shape: f32[16,128], index: 9, kind: output, shape index: {}]
  %s10 = sld [smem:[#allocation0]]
  $region89: #{tpu_custom_call.1} parent=0
    _
  %s12 = ssub.s32 1, %s10
  %s13 = scalar_select 0, %s12, %s10
  $region1: #{tpu_custom_call.1} parent=0
    #allocation2 [shape = 'u8[8192]{0}', space=vmem, size = 0x2000, scoped, tag = 'input window, operand 0']
    #allocation3 [shape = 's32[2]{0}', space=sflag, size = 0x8, scoped, tag = 'scoped memory for tpu_custom_call.1']
    #allocation4 [shape = 's32[2]{0}', space=sflag, size = 0x8, scoped, tag = 'scoped memory for tpu_custom_call.1']
    #allocation5 [shape = 'u8[65536]{0}', space=vmem, size = 0x10000, scoped, tag = 'input window, operand 1, single buffered']
    #allocation6 [shape = 's32[1]{0}', space=sflag, size = 0x4, scoped, tag = 'scoped memory for tpu_custom_call.1']
    #allocation7 [shape = 'u8[262144]{0}', space=vmem, size = 0x40000, scoped, tag = 'input window, operand 3, single buffered']
    #allocation8 [shape = 'u8[262144]{0}', space=vmem, size = 0x40000, scoped, tag = 'input window, operand 5, single buffered']
    #allocation9 [shape = 's32[1]{0}', space=sflag, size = 0x4, scoped, tag = 'scoped memory for tpu_custom_call.1']
    #allocation10 [shape = 'u8[65536]{0}', space=vmem, size = 0x10000, scoped, tag = 'input window, operand 7, single buffered']
    #allocation11 [shape = 'u8[8192]{0}', space=vmem, size = 0x2000, scoped, tag = 'output window, operand 0']
    %14 = vsyncpa [#allocation3], 0
    %s15 = scalar_lea.sflag [#allocation3], 1
    %16 = vsyncpa %s15, 0
    %17 = vsyncpa [#allocation6], 0
    %18 = vsyncpa [#allocation9], 0
    %19 = vsyncpa [#allocation4], 0
    %s20 = scalar_lea.sflag [#allocation4], 1
    %21 = vsyncpa %s20, 0
    loop: start=0, step=1, limit=4
    $region2: #{tpu_custom_call.1} parent=1 // loop_pre_header
      _
    $region3: #{tpu_custom_call.1} parent=1 // loop_header
      %s23 = sphi 0, %s27
      %p24 = scmp.ge.s32.totalorder %s23, 4
      %s33 = sphi 0, %s35
      %s36 = sphi 0, %s33
      %s37 = sphi 0, %s36
      %s53 = sphi 0, %s37
      %s57 = sphi 0, %s57
      %s59 = sphi 0, %s57
      %s60 = sphi 0, %s59
      %s74 = sphi 0, %s60
      %s78 = sphi 0, %s78
      %s80 = sphi 0, %s78
      %s81 = sphi 0, %s80
      %s95 = sphi 0, %s81
      %s99 = sphi 0, %s99
      %s101 = sphi 0, %s99
      %s102 = sphi 0, %s101
      %s116 = sphi 0, %s102
      %s120 = sphi 0, %s120
      %s122 = sphi 0, %s120
      %s123 = sphi 0, %s122
      %s137 = sphi 0, %s123
      %s141 = sphi 0, %s141
      %s143 = sphi 0, %s141
      %s144 = sphi 0, %s143
      %s158 = sphi 0, %s144
      %s162 = sphi 0, %s162
      %s164 = sphi 0, %s162
      %s165 = sphi 0, %s164
      %s179 = sphi 0, %s165
      %s183 = sphi 0, %s183
      %s185 = sphi 0, %s183
      %s186 = sphi 0, %s185
      %s200 = sphi 0, %s186
      %s204 = sphi 0, %s204
      %s206 = sphi 0, %s204
      %s207 = sphi 0, %s206
      %s221 = sphi 0, %s207
      %s227 = sphi 0, %s229
      %s230 = sphi 0, %s227
      %s231 = sphi 0, %s230
      %s247 = sphi 0, %s231
    $region4: #{tpu_custom_call.1} parent=1 // loop_header_branch
      %26 = sbr.rel (%p24) target = $region8
    $region5: #{tpu_custom_call.1} parent=1 // loop_body
      %s28 = ssub.s32 %s23, 1
      %s29 = ssub.s32 %s23, 2
      %s30 = sadd.s32 %s23, 1
      %s31 = ssub.s32 %s23, %s30
      %p32 = scmp.eq.s32.totalorder %s31, 0
      %s34 = sadd.s32 %s33, 1
      %s35 = scalar_select %p32, %s33, %s34
      %p38 = pneg %p32
      %p39 = scmp.eq.s32.totalorder %s23, 1
      %p40 = por %p38, %p39
      %p41 = scmp.ne.s32.totalorder %s33, %s36
      %p42 = scmp.eq.s32.totalorder %s23, 0
      %p43 = por %p41, %p42
      %p44 = scmp.ne.s32.totalorder %s33, %s36
      %p45 = scmp.eq.s32.totalorder %s28, 1
      %p46 = por %p44, %p45
      %p47 = scmp.ne.s32.totalorder %s36, %s37
      %p48 = scmp.eq.s32.totalorder %s28, 0
      %p49 = por %p47, %p48
      %p50 = scmp.ne.s32.totalorder %s36, %s37
      %p51 = scmp.eq.s32.totalorder %s29, 1
      %p52 = por %p50, %p51
      %p54 = scmp.ne.s32.totalorder %s37, %s53
      %p55 = scmp.eq.s32.totalorder %s29, 0
      %p56 = por %p54, %p55
      %s58 = sadd.s32 %s57, 1
      %p61 = scmp.eq.s32.totalorder %s23, 1
      %p62 = scmp.ne.s32.totalorder %s57, %s59
      %p63 = scmp.eq.s32.totalorder %s23, 0
      %p64 = por %p62, %p63
      %p65 = scmp.ne.s32.totalorder %s57, %s59
      %p66 = scmp.eq.s32.totalorder %s28, 1
      %p67 = por %p65, %p66
      %p68 = scmp.ne.s32.totalorder %s59, %s60
      %p69 = scmp.eq.s32.totalorder %s28, 0
      %p70 = por %p68, %p69
      %p71 = scmp.ne.s32.totalorder %s59, %s60
      %p72 = scmp.eq.s32.totalorder %s29, 1
      %p73 = por %p71, %p72
      %p75 = scmp.ne.s32.totalorder %s60, %s74
      %p76 = scmp.eq.s32.totalorder %s29, 0
      %p77 = por %p75, %p76
      %s79 = sadd.s32 %s78, 1
      %p82 = scmp.eq.s32.totalorder %s23, 1
      %p83 = scmp.ne.s32.totalorder %s78, %s80
      %p84 = scmp.eq.s32.totalorder %s23, 0
      %p85 = por %p83, %p84
      %p86 = scmp.ne.s32.totalorder %s78, %s80
      %p87 = scmp.eq.s32.totalorder %s28, 1
      %p88 = por %p86, %p87
      %p89 = scmp.ne.s32.totalorder %s80, %s81
      %p90 = scmp.eq.s32.totalorder %s28, 0
      %p91 = por %p89, %p90
      %p92 = scmp.ne.s32.totalorder %s80, %s81
      %p93 = scmp.eq.s32.totalorder %s29, 1
      %p94 = por %p92, %p93
      %p96 = scmp.ne.s32.totalorder %s81, %s95
      %p97 = scmp.eq.s32.totalorder %s29, 0
      %p98 = por %p96, %p97
      %s100 = sadd.s32 %s99, 1
      %p103 = scmp.eq.s32.totalorder %s23, 1
      %p104 = scmp.ne.s32.totalorder %s99, %s101
      %p105 = scmp.eq.s32.totalorder %s23, 0
      %p106 = por %p104, %p105
      %p107 = scmp.ne.s32.totalorder %s99, %s101
      %p108 = scmp.eq.s32.totalorder %s28, 1
      %p109 = por %p107, %p108
      %p110 = scmp.ne.s32.totalorder %s101, %s102
      %p111 = scmp.eq.s32.totalorder %s28, 0
      %p112 = por %p110, %p111
      %p113 = scmp.ne.s32.totalorder %s101, %s102
      %p114 = scmp.eq.s32.totalorder %s29, 1
      %p115 = por %p113, %p114
      %p117 = scmp.ne.s32.totalorder %s102, %s116
      %p118 = scmp.eq.s32.totalorder %s29, 0
      %p119 = por %p117, %p118
      %s121 = sadd.s32 %s120, 1
      %p124 = scmp.eq.s32.totalorder %s23, 1
      %p125 = scmp.ne.s32.totalorder %s120, %s122
      %p126 = scmp.eq.s32.totalorder %s23, 0
      %p127 = por %p125, %p126
      %p128 = scmp.ne.s32.totalorder %s120, %s122
      %p129 = scmp.eq.s32.totalorder %s28, 1
      %p130 = por %p128, %p129
      %p131 = scmp.ne.s32.totalorder %s122, %s123
      %p132 = scmp.eq.s32.totalorder %s28, 0
      %p133 = por %p131, %p132
      %p134 = scmp.ne.s32.totalorder %s122, %s123
      %p135 = scmp.eq.s32.totalorder %s29, 1
      %p136 = por %p134, %p135
      %p138 = scmp.ne.s32.totalorder %s123, %s137
      %p139 = scmp.eq.s32.totalorder %s29, 0
      %p140 = por %p138, %p139
      %s142 = sadd.s32 %s141, 1
      %p145 = scmp.eq.s32.totalorder %s23, 1
      %p146 = scmp.ne.s32.totalorder %s141, %s143
      %p147 = scmp.eq.s32.totalorder %s23, 0
      %p148 = por %p146, %p147
      %p149 = scmp.ne.s32.totalorder %s141, %s143
      %p150 = scmp.eq.s32.totalorder %s28, 1
      %p151 = por %p149, %p150
      %p152 = scmp.ne.s32.totalorder %s143, %s144
      %p153 = scmp.eq.s32.totalorder %s28, 0
      %p154 = por %p152, %p153
      %p155 = scmp.ne.s32.totalorder %s143, %s144
      %p156 = scmp.eq.s32.totalorder %s29, 1
      %p157 = por %p155, %p156
      %p159 = scmp.ne.s32.totalorder %s144, %s158
      %p160 = scmp.eq.s32.totalorder %s29, 0
      %p161 = por %p159, %p160
      %s163 = sadd.s32 %s162, 1
      %p166 = scmp.eq.s32.totalorder %s23, 1
      %p167 = scmp.ne.s32.totalorder %s162, %s164
      %p168 = scmp.eq.s32.totalorder %s23, 0
      %p169 = por %p167, %p168
      %p170 = scmp.ne.s32.totalorder %s162, %s164
      %p171 = scmp.eq.s32.totalorder %s28, 1
      %p172 = por %p170, %p171
      %p173 = scmp.ne.s32.totalorder %s164, %s165
      %p174 = scmp.eq.s32.totalorder %s28, 0
      %p175 = por %p173, %p174
      %p176 = scmp.ne.s32.totalorder %s164, %s165
      %p177 = scmp.eq.s32.totalorder %s29, 1
      %p178 = por %p176, %p177
      %p180 = scmp.ne.s32.totalorder %s165, %s179
      %p181 = scmp.eq.s32.totalorder %s29, 0
      %p182 = por %p180, %p181
      %s184 = sadd.s32 %s183, 1
      %p187 = scmp.eq.s32.totalorder %s23, 1
      %p188 = scmp.ne.s32.totalorder %s183, %s185
      %p189 = scmp.eq.s32.totalorder %s23, 0
      %p190 = por %p188, %p189
      %p191 = scmp.ne.s32.totalorder %s183, %s185
      %p192 = scmp.eq.s32.totalorder %s28, 1
      %p193 = por %p191, %p192
      %p194 = scmp.ne.s32.totalorder %s185, %s186
      %p195 = scmp.eq.s32.totalorder %s28, 0
      %p196 = por %p194, %p195
      %p197 = scmp.ne.s32.totalorder %s185, %s186
      %p198 = scmp.eq.s32.totalorder %s29, 1
      %p199 = por %p197, %p198
      %p201 = scmp.ne.s32.totalorder %s186, %s200
      %p202 = scmp.eq.s32.totalorder %s29, 0
      %p203 = por %p201, %p202
      %s205 = sadd.s32 %s204, 1
      %p208 = scmp.eq.s32.totalorder %s23, 1
      %p209 = scmp.ne.s32.totalorder %s204, %s206
      %p210 = scmp.eq.s32.totalorder %s23, 0
      %p211 = por %p209, %p210
      %p212 = scmp.ne.s32.totalorder %s204, %s206
      %p213 = scmp.eq.s32.totalorder %s28, 1
      %p214 = por %p212, %p213
      %p215 = scmp.ne.s32.totalorder %s206, %s207
      %p216 = scmp.eq.s32.totalorder %s28, 0
      %p217 = por %p215, %p216
      %p218 = scmp.ne.s32.totalorder %s206, %s207
      %p219 = scmp.eq.s32.totalorder %s29, 1
      %p220 = por %p218, %p219
      %p222 = scmp.ne.s32.totalorder %s207, %s221
      %p223 = scmp.eq.s32.totalorder %s29, 0
      %p224 = por %p222, %p223
      %s225 = ssub.s32 %s23, %s30
      %p226 = scmp.eq.s32.totalorder %s225, 0
      %s228 = sadd.s32 %s227, 1
      %s229 = scalar_select %p226, %s227, %s228
      %p232 = pneg %p226
      %p233 = scmp.eq.s32.totalorder %s23, 1
      %p234 = por %p232, %p233
      %p235 = scmp.ne.s32.totalorder %s227, %s230
      %p236 = scmp.eq.s32.totalorder %s23, 0
      %p237 = por %p235, %p236
      %p238 = scmp.ne.s32.totalorder %s227, %s230
      %p239 = scmp.eq.s32.totalorder %s28, 1
      %p240 = por %p238, %p239
      %p241 = scmp.ne.s32.totalorder %s230, %s231
      %p242 = scmp.eq.s32.totalorder %s28, 0
      %p243 = por %p241, %p242
      %p244 = scmp.ne.s32.totalorder %s230, %s231
      %p245 = scmp.eq.s32.totalorder %s29, 1
      %p246 = por %p244, %p245
      %p248 = scmp.ne.s32.totalorder %s231, %s247
      %p249 = scmp.eq.s32.totalorder %s29, 0
      %p250 = por %p248, %p249
      %p251 = scmp.le.s32.totalorder 1, %s23
      %p252 = scmp.lt.s32.totalorder %s23, 3
      %p253 = pnand %p251, %p252
      %p254 = pneg %p253
      // Predicated region
      $region9: #{tpu_custom_call.1} parent=5 // pred_check
        _
      $region10: #{tpu_custom_call.1} parent=5 // pred_check_branch
        %256 = sbr.rel (%p253) target = $region12
      $region11: #{tpu_custom_call.1} parent=5 // pred_region
        %s257 = ssub.s32 %s23, 1
        // Predicated region
        $region13: #{tpu_custom_call.1} parent=11 // pred_check
          %p258 = pneg %p70
        $region14: #{tpu_custom_call.1} parent=11 // pred_check_branch
          %260 = sbr.rel (%p258) target = $region16
        $region15: #{tpu_custom_call.1} parent=11 // pred_region
          %s262 = ssub.s32 2048, 2048
          %263 = vsyncadd [#allocation6], %s262
          %s264 = sshll.u32 [#allocation5], 4
          %s265 = int_to_ptr.vmem [resolvable:$true] %s264
          %270 = dma.hbm_to_vmem [thread:$0]  %s1, 2048, %s265, [#allocation6], 128, 128, 8
        $region16: #{tpu_custom_call.1} parent=11 // pred_fallthru
          _
        // Predicated region
        $region17: #{tpu_custom_call.1} parent=11 // pred_check
          %p271 = pneg %p91
        $region18: #{tpu_custom_call.1} parent=11 // pred_check_branch
          %273 = sbr.rel (%p271) target = $region20
        $region19: #{tpu_custom_call.1} parent=11 // pred_region
          _
        $region20: #{tpu_custom_call.1} parent=11 // pred_fallthru
          _
        // Predicated region
        $region21: #{tpu_custom_call.1} parent=11 // pred_check
          %p274 = pneg %p112
        $region22: #{tpu_custom_call.1} parent=11 // pred_check_branch
          %276 = sbr.rel (%p274) target = $region24
        $region23: #{tpu_custom_call.1} parent=11 // pred_region
          %s278 = ssub.s32 8192, 8192
          %279 = vsyncadd [#allocation6], %s278
          %s280 = sshll.u32 [#allocation7], 4
          %s281 = int_to_ptr.vmem [resolvable:$true] %s280
          %286 = dma.hbm_to_vmem [thread:$0]  %s3, 8192, %s281, [#allocation6], 256, 256, 16
        $region24: #{tpu_custom_call.1} parent=11 // pred_fallthru
          _
        // Predicated region
        $region25: #{tpu_custom_call.1} parent=11 // pred_check
          %p287 = pneg %p133
        $region26: #{tpu_custom_call.1} parent=11 // pred_check_branch
          %289 = sbr.rel (%p287) target = $region28
        $region27: #{tpu_custom_call.1} parent=11 // pred_region
          _
        $region28: #{tpu_custom_call.1} parent=11 // pred_fallthru
          _
        // Predicated region
        $region29: #{tpu_custom_call.1} parent=11 // pred_check
          %p290 = pneg %p154
        $region30: #{tpu_custom_call.1} parent=11 // pred_check_branch
          %292 = sbr.rel (%p290) target = $region32
        $region31: #{tpu_custom_call.1} parent=11 // pred_region
          %s294 = ssub.s32 8192, 8192
          %295 = vsyncadd [#allocation9], %s294
          %s296 = sshll.u32 [#allocation8], 4
          %s297 = int_to_ptr.vmem [resolvable:$true] %s296
          %302 = dma.hbm_to_vmem [thread:$0]  %s5, 8192, %s297, [#allocation9], 128, 128, 8
        $region32: #{tpu_custom_call.1} parent=11 // pred_fallthru
          _
        // Predicated region
        $region33: #{tpu_custom_call.1} parent=11 // pred_check
          %p303 = pneg %p175
        $region34: #{tpu_custom_call.1} parent=11 // pred_check_branch
          %305 = sbr.rel (%p303) target = $region36
        $region35: #{tpu_custom_call.1} parent=11 // pred_region
          _
        $region36: #{tpu_custom_call.1} parent=11 // pred_fallthru
          _
        // Predicated region
        $region37: #{tpu_custom_call.1} parent=11 // pred_check
          %p306 = pneg %p196
        $region38: #{tpu_custom_call.1} parent=11 // pred_check_branch
          %308 = sbr.rel (%p306) target = $region40
        $region39: #{tpu_custom_call.1} parent=11 // pred_region
          %s310 = ssub.s32 2048, 2048
          %311 = vsyncadd [#allocation9], %s310
          %s312 = sshll.u32 [#allocation10], 4
          %s313 = int_to_ptr.vmem [resolvable:$true] %s312
          %318 = dma.hbm_to_vmem [thread:$0]  %s7, 2048, %s313, [#allocation9], 64, 64, 4
        $region40: #{tpu_custom_call.1} parent=11 // pred_fallthru
          _
        // Predicated region
        $region41: #{tpu_custom_call.1} parent=11 // pred_check
          %p319 = pneg %p217
        $region42: #{tpu_custom_call.1} parent=11 // pred_check_branch
          %321 = sbr.rel (%p319) target = $region44
        $region43: #{tpu_custom_call.1} parent=11 // pred_region
          _
        $region44: #{tpu_custom_call.1} parent=11 // pred_fallthru
          _
      $region12: #{tpu_custom_call.1} parent=5 // pred_fallthru
        _
      %p322 = scmp.lt.s32.totalorder %s23, 2
      // Predicated region
      $region45: #{tpu_custom_call.1} parent=5 // pred_check
        %p323 = pneg %p322
      $region46: #{tpu_custom_call.1} parent=5 // pred_check_branch
        %325 = sbr.rel (%p323) target = $region48
      $region47: #{tpu_custom_call.1} parent=5 // pred_region
        // Predicated region
        $region49: #{tpu_custom_call.1} parent=47 // pred_check
          %p326 = pneg %p43
        $region50: #{tpu_custom_call.1} parent=47 // pred_check_branch
          %328 = sbr.rel (%p326) target = $region52
        $region51: #{tpu_custom_call.1} parent=47 // pred_region
          %s329 = sand.u32 %s33, 1
          %s330 = scalar_lea.sflag [#allocation3], %s329
          %s331 = sand.u32 %s33, 1
          %s332 = smul.addr %s331, 8
          %s333 = scalar_lea.vmem [#allocation2], %s332
          %s335 = ssub.s32 128, 128
          %336 = vsyncadd %s330, %s335
          %s337 = smul.addr %s23, 128
          %s338 = scalar_lea.hbm %s0, %s337
          %s340 = sshll.u32 %s333, 4
          %s341 = int_to_ptr.vmem [resolvable:$true] %s340
          %343 = dma.hbm_to_vmem [thread:$0]  %s338, 128, %s341, %s330
        $region52: #{tpu_custom_call.1} parent=47 // pred_fallthru
          _
      $region48: #{tpu_custom_call.1} parent=5 // pred_fallthru
        _
      %p344 = scmp.le.s32.totalorder 1, %s23
      %p345 = scmp.lt.s32.totalorder %s23, 3
      %p346 = pnand %p344, %p345
      %p347 = pneg %p346
      // Predicated region
      $region53: #{tpu_custom_call.1} parent=5 // pred_check
        _
      $region54: #{tpu_custom_call.1} parent=5 // pred_check_branch
        %349 = sbr.rel (%p346) target = $region56
      $region55: #{tpu_custom_call.1} parent=5 // pred_region
        %s350 = ssub.s32 %s23, 1
        %s351 = sand.u32 %s36, 1
        %s352 = scalar_lea.sflag [#allocation3], %s351
        %s353 = sand.u32 %s36, 1
        %s354 = smul.addr %s353, 8
        %s355 = scalar_lea.vmem [#allocation2], %s354
        // Predicated region
        $region57: #{tpu_custom_call.1} parent=55 // pred_check
          %p356 = pneg %p49
        $region58: #{tpu_custom_call.1} parent=55 // pred_check_branch
          %358 = sbr.rel (%p356) target = $region60
        $region59: #{tpu_custom_call.1} parent=55 // pred_region
          %359 = dma.done %s352, 128
        $region60: #{tpu_custom_call.1} parent=55 // pred_fallthru
          _
        // Predicated region
        $region61: #{tpu_custom_call.1} parent=55 // pred_check
          %p360 = pneg %p70
        $region62: #{tpu_custom_call.1} parent=55 // pred_check_branch
          %362 = sbr.rel (%p360) target = $region64
        $region63: #{tpu_custom_call.1} parent=55 // pred_region
          %363 = dma.done [#allocation6], 2048
        $region64: #{tpu_custom_call.1} parent=55 // pred_fallthru
          _
        // Predicated region
        $region65: #{tpu_custom_call.1} parent=55 // pred_check
          %p364 = pneg %p112
        $region66: #{tpu_custom_call.1} parent=55 // pred_check_branch
          %366 = sbr.rel (%p364) target = $region68
        $region67: #{tpu_custom_call.1} parent=55 // pred_region
          %367 = dma.done [#allocation6], 8192
        $region68: #{tpu_custom_call.1} parent=55 // pred_fallthru
          _
        // Predicated region
        $region69: #{tpu_custom_call.1} parent=55 // pred_check
          %p368 = pneg %p154
        $region70: #{tpu_custom_call.1} parent=55 // pred_check_branch
          %370 = sbr.rel (%p368) target = $region72
        $region71: #{tpu_custom_call.1} parent=55 // pred_region
          %371 = dma.done [#allocation9], 8192
        $region72: #{tpu_custom_call.1} parent=55 // pred_fallthru
          _
        // Predicated region
        $region73: #{tpu_custom_call.1} parent=55 // pred_check
          %p372 = pneg %p196
        $region74: #{tpu_custom_call.1} parent=55 // pred_check_branch
          %374 = sbr.rel (%p372) target = $region76
        $region75: #{tpu_custom_call.1} parent=55 // pred_region
          %375 = dma.done [#allocation9], 2048
        $region76: #{tpu_custom_call.1} parent=55 // pred_fallthru
          _
        %s376 = sand.u32 %s36, 1
        %s377 = scalar_lea.sflag [#allocation3], %s376
        %s378 = sand.u32 %s36, 1
        %s379 = smul.addr %s378, 8
        %s380 = scalar_lea.vmem [#allocation2], %s379
        %p381 = pneg %p49
        %p382 = pneg %p46
        %p383 = pneg %p70
        %p384 = pneg %p67
        %p385 = pneg %p91
        %p386 = pneg %p88
        %p387 = pneg %p112
        %p388 = pneg %p109
        %p389 = pneg %p133
        %p390 = pneg %p130
        %p391 = pneg %p154
        %p392 = pneg %p151
        %p393 = pneg %p175
        %p394 = pneg %p172
        %p395 = pneg %p196
        %p396 = pneg %p193
        %p397 = pneg %p217
        %p398 = pneg %p214
        %p399 = pneg %p243
        %p400 = pneg %p240
        %s401 = sand.u32 %s230, 1
        %s402 = scalar_lea.sflag [#allocation4], %s401
        %s403 = sand.u32 %s230, 1
        %s404 = smul.addr %s403, 8
        %s405 = scalar_lea.vmem [#allocation11], %s404
        %v407 = vld [vmem:[%s355] sm:$0xff]
        %v408 = vpack.c.bf16 %v407, %v407
        %v409 = vld [vmem:[#allocation5] sm:$0xff]
        %v410 = vld [vmem:[#allocation5 + $0x8] sm:$0xff]
        %v411 = vld [vmem:[#allocation5 + $0x10] sm:$0xff]
        %v412 = vld [vmem:[#allocation5 + $0x18] sm:$0xff]
        %v413 = vld [vmem:[#allocation5 + $0x20] sm:$0xff]
        %v414 = vld [vmem:[#allocation5 + $0x28] sm:$0xff]
        %v415 = vld [vmem:[#allocation5 + $0x30] sm:$0xff]
        %v416 = vld [vmem:[#allocation5 + $0x38] sm:$0xff]
        %v417 = vld [vmem:[#allocation5 + $0x40] sm:$0xff]
        %v418 = vld [vmem:[#allocation5 + $0x48] sm:$0xff]
        %v419 = vld [vmem:[#allocation5 + $0x50] sm:$0xff]
        %v420 = vld [vmem:[#allocation5 + $0x58] sm:$0xff]
        %v421 = vld [vmem:[#allocation5 + $0x60] sm:$0xff]
        %v422 = vld [vmem:[#allocation5 + $0x68] sm:$0xff]
        %v423 = vld [vmem:[#allocation5 + $0x70] sm:$0xff]
        %v424 = vld [vmem:[#allocation5 + $0x78] sm:$0xff]
        %v441 = vunpack.c.l.b16 %v409
        %v442 = vunpack.c.h.b16 %v409
        %v443 = vunpack.c.l.b16 %v410
        %v444 = vunpack.c.h.b16 %v410
        %v445 = vunpack.c.l.b16 %v411
        %v446 = vunpack.c.h.b16 %v411
        %v447 = vunpack.c.l.b16 %v412
        %v448 = vunpack.c.h.b16 %v412
        %v449 = vunpack.c.l.b16 %v413
        %v450 = vunpack.c.h.b16 %v413
        %v451 = vunpack.c.l.b16 %v414
        %v452 = vunpack.c.h.b16 %v414
        %v453 = vunpack.c.l.b16 %v415
        %v454 = vunpack.c.h.b16 %v415
        %v455 = vunpack.c.l.b16 %v416
        %v456 = vunpack.c.h.b16 %v416
        %v457 = vunpack.c.l.b16 %v417
        %v458 = vunpack.c.h.b16 %v417
        %v459 = vunpack.c.l.b16 %v418
        %v460 = vunpack.c.h.b16 %v418
        %v461 = vunpack.c.l.b16 %v419
        %v462 = vunpack.c.h.b16 %v419
        %v463 = vunpack.c.l.b16 %v420
        %v464 = vunpack.c.h.b16 %v420
        %v465 = vunpack.c.l.b16 %v421
        %v466 = vunpack.c.h.b16 %v421
        %v467 = vunpack.c.l.b16 %v422
        %v468 = vunpack.c.h.b16 %v422
        %v469 = vunpack.c.l.b16 %v423
        %v470 = vunpack.c.h.b16 %v423
        %v471 = vunpack.c.l.b16 %v424
        %v472 = vunpack.c.h.b16 %v424
        %v473 = vpack.c.b16 %v443, %v441
        %v474 = vpack.c.b16 %v444, %v442
        %v475 = vpack.c.b16 %v447, %v445
        %v476 = vpack.c.b16 %v448, %v446
        %v477 = vpack.c.b16 %v451, %v449
        %v478 = vpack.c.b16 %v452, %v450
        %v479 = vpack.c.b16 %v455, %v453
        %v480 = vpack.c.b16 %v456, %v454
        %v481 = vpack.c.b16 %v459, %v457
        %v482 = vpack.c.b16 %v460, %v458
        %v483 = vpack.c.b16 %v463, %v461
        %v484 = vpack.c.b16 %v464, %v462
        %v485 = vpack.c.b16 %v467, %v465
        %v486 = vpack.c.b16 %v468, %v466
        %v487 = vpack.c.b16 %v471, %v469
        %v488 = vpack.c.b16 %v472, %v470
        %505 = vmatprep.subr.bf16.mxu0 %v474
        %506 = vmatpush1.bf16.msra.mxu0 %v473
        %507 = vmatprep.subr.bf16.mxu0 %v476
        %508 = vmatpush1.bf16.msra.mxu0 %v475
        %509 = vmatprep.subr.bf16.mxu0 %v478
        %510 = vmatpush1.bf16.msra.mxu0 %v477
        %511 = vmatprep.subr.bf16.mxu0 %v480
        %512 = vmatpush1.bf16.msra.mxu0 %v479
        %513 = vmatprep.subr.bf16.mxu0 %v482
        %514 = vmatpush1.bf16.msra.mxu0 %v481
        %515 = vmatprep.subr.bf16.mxu0 %v484
        %516 = vmatpush1.bf16.msra.mxu0 %v483
        %517 = vmatprep.subr.bf16.mxu0 %v486
        %518 = vmatpush1.bf16.msra.mxu0 %v485
        %519 = vmatprep.subr.bf16.mxu0 %v488
        %520 = vmatpush1.bf16.msra.mxu0 %v487
        %521 = vmatprep.subr.bf16.mxu0 0
        %522 = vmatpush1.bf16.msra.mxu0 0
        %523 = vmatprep.subr.bf16.mxu0 0
        %524 = vmatpush1.bf16.msra.mxu0 0
        %525 = vmatprep.subr.bf16.mxu0 0
        %526 = vmatpush1.bf16.msra.mxu0 0
        %527 = vmatprep.subr.bf16.mxu0 0
        %528 = vmatpush1.bf16.msra.mxu0 0
        %529 = vmatprep.subr.bf16.mxu0 0
        %530 = vmatpush1.bf16.msra.mxu0 0
        %531 = vmatprep.subr.bf16.mxu0 0
        %532 = vmatpush1.bf16.msra.mxu0 0
        %533 = vmatprep.subr.bf16.mxu0 0
        %534 = vmatpush1.bf16.msra.mxu0 0
        %535 = vmatprep.subr.bf16.mxu0 0
        %536 = vmatpush1.bf16.msra.mxu0 0
        %537 = vmatprep.mubr.bf16.mxu0 0
        %538 = vmatmul.mubr.bf16.gmra.mrb[0].mxu0 %v408
        %v539 = vpop.f32.mrb[0].mxu0
        %v540 = vadd.f32 0.0, %v539
        %v541 = vpop.f32.mrb[0].mxu0
        %v542 = vadd.f32 0.0, %v541
        %v543 = vpop.f32.mrb[0].mxu0
        %v544 = vpop.f32.mrb[0].mxu0
        %545 = vdwg.mxu0
        %v546 = vpack.c.bf16 %v540, %v540
        %v547 = vpack.c.bf16 %v542, %v542
        %v548 = vld [vmem:[%s2] sm:$0x3]
        %v551 = vunpack.c.l.s4 1966171168
        %v552 = vunpack.c.0.s8 %v551
        %v553 = vlaneseq
        %v554 = vshrl.u32 %v553, 7
        %v555 = vsub.s32 %v552, %v554
        %v556 = vrot.slane %v548, %v555
        %v557 = vcombine.high %v556, %v556
        %v559 = vunpack.c.l.s4 1966171168
        %v560 = vunpack.c.0.s8 %v559
        %v561 = vlaneseq
        %v562 = vshrl.u32 %v561, 7
        %v563 = vsub.s32 %v560, %v562
        %v564 = vrot.slane %v556, %v563
        %v566 = vunpack.c.l.s4 1966171168
        %v567 = vunpack.c.0.s8 %v566
        %v568 = vlaneseq
        %v569 = vshrl.u32 %v568, 7
        %v570 = vsub.s32 %v567, %v569
        %v571 = vrot.slane %v557, %v570
        %v573 = vpack.i.b16 %v564, %v564
        %v575 = vlaneseq
        %v576 = vshrl.u32 %v575, 7
        %v577 = vsub.s32 0, %v576
        %v578 = vrot.slane %v573, %v577
        %v580 = vpack.i.b16 %v571, %v571
        %v582 = vlaneseq
        %v583 = vshrl.u32 %v582, 7
        %v584 = vsub.s32 0, %v583
        %v585 = vrot.slane %v580, %v584
        %v586 = vadd.bf16 %v546, %v578
        %v587 = vadd.bf16 %v547, %v585
        %v588 = vmax.bf16 %v586, 0
        %v589 = vmax.bf16 %v587, 0
        %v590 = vld [vmem:[#allocation7] sm:$0xff]
        %v591 = vld [vmem:[#allocation7 + $0x8] sm:$0xff]
        %v592 = vld [vmem:[#allocation7 + $0x10] sm:$0xff]
        %v593 = vld [vmem:[#allocation7 + $0x18] sm:$0xff]
        %v594 = vld [vmem:[#allocation7 + $0x20] sm:$0xff]
        %v595 = vld [vmem:[#allocation7 + $0x28] sm:$0xff]
        %v596 = vld [vmem:[#allocation7 + $0x30] sm:$0xff]
        %v597 = vld [vmem:[#allocation7 + $0x38] sm:$0xff]
        %v598 = vld [vmem:[#allocation7 + $0x40] sm:$0xff]
        %v599 = vld [vmem:[#allocation7 + $0x48] sm:$0xff]
        %v600 = vld [vmem:[#allocation7 + $0x50] sm:$0xff]
        %v601 = vld [vmem:[#allocation7 + $0x58] sm:$0xff]
        %v602 = vld [vmem:[#allocation7 + $0x60] sm:$0xff]
        %v603 = vld [vmem:[#allocation7 + $0x68] sm:$0xff]
        %v604 = vld [vmem:[#allocation7 + $0x70] sm:$0xff]
        %v605 = vld [vmem:[#allocation7 + $0x78] sm:$0xff]
        %v606 = vld [vmem:[#allocation7 + $0x80] sm:$0xff]
        %v607 = vld [vmem:[#allocation7 + $0x88] sm:$0xff]
        %v608 = vld [vmem:[#allocation7 + $0x90] sm:$0xff]
        %v609 = vld [vmem:[#allocation7 + $0x98] sm:$0xff]
        %v610 = vld [vmem:[#allocation7 + $0xa0] sm:$0xff]
        %v611 = vld [vmem:[#allocation7 + $0xa8] sm:$0xff]
        %v612 = vld [vmem:[#allocation7 + $0xb0] sm:$0xff]
        %v613 = vld [vmem:[#allocation7 + $0xb8] sm:$0xff]
        %v614 = vld [vmem:[#allocation7 + $0xc0] sm:$0xff]
        %v615 = vld [vmem:[#allocation7 + $0xc8] sm:$0xff]
        %v616 = vld [vmem:[#allocation7 + $0xd0] sm:$0xff]
        %v617 = vld [vmem:[#allocation7 + $0xd8] sm:$0xff]
        %v618 = vld [vmem:[#allocation7 + $0xe0] sm:$0xff]
        %v619 = vld [vmem:[#allocation7 + $0xe8] sm:$0xff]
        %v620 = vld [vmem:[#allocation7 + $0xf0] sm:$0xff]
        %v621 = vld [vmem:[#allocation7 + $0xf8] sm:$0xff]
        %v622 = vld [vmem:[#allocation7 + $0x100] sm:$0xff]
        %v623 = vld [vmem:[#allocation7 + $0x108] sm:$0xff]
        %v624 = vld [vmem:[#allocation7 + $0x110] sm:$0xff]
        %v625 = vld [vmem:[#allocation7 + $0x118] sm:$0xff]
        %v626 = vld [vmem:[#allocation7 + $0x120] sm:$0xff]
        %v627 = vld [vmem:[#allocation7 + $0x128] sm:$0xff]
        %v628 = vld [vmem:[#allocation7 + $0x130] sm:$0xff]
        %v629 = vld [vmem:[#allocation7 + $0x138] sm:$0xff]
        %v630 = vld [vmem:[#allocation7 + $0x140] sm:$0xff]
        %v631 = vld [vmem:[#allocation7 + $0x148] sm:$0xff]
        %v632 = vld [vmem:[#allocation7 + $0x150] sm:$0xff]
        %v633 = vld [vmem:[#allocation7 + $0x158] sm:$0xff]
        %v634 = vld [vmem:[#allocation7 + $0x160] sm:$0xff]
        %v635 = vld [vmem:[#allocation7 + $0x168] sm:$0xff]
        %v636 = vld [vmem:[#allocation7 + $0x170] sm:$0xff]
        %v637 = vld [vmem:[#allocation7 + $0x178] sm:$0xff]
        %v638 = vld [vmem:[#allocation7 + $0x180] sm:$0xff]
        %v639 = vld [vmem:[#allocation7 + $0x188] sm:$0xff]
        %v640 = vld [vmem:[#allocation7 + $0x190] sm:$0xff]
        %v641 = vld [vmem:[#allocation7 + $0x198] sm:$0xff]
        %v642 = vld [vmem:[#allocation7 + $0x1a0] sm:$0xff]
        %v643 = vld [vmem:[#allocation7 + $0x1a8] sm:$0xff]
        %v644 = vld [vmem:[#allocation7 + $0x1b0] sm:$0xff]
        %v645 = vld [vmem:[#allocation7 + $0x1b8] sm:$0xff]
        %v646 = vld [vmem:[#allocation7 + $0x1c0] sm:$0xff]
        %v647 = vld [vmem:[#allocation7 + $0x1c8] sm:$0xff]
        %v648 = vld [vmem:[#allocation7 + $0x1d0] sm:$0xff]
        %v649 = vld [vmem:[#allocation7 + $0x1d8] sm:$0xff]
        %v650 = vld [vmem:[#allocation7 + $0x1e0] sm:$0xff]
        %v651 = vld [vmem:[#allocation7 + $0x1e8] sm:$0xff]
        %v652 = vld [vmem:[#allocation7 + $0x1f0] sm:$0xff]
        %v653 = vld [vmem:[#allocation7 + $0x1f8] sm:$0xff]
        %v718 = vunpack.c.l.b16 %v590
        %v719 = vunpack.c.h.b16 %v590
        %v720 = vunpack.c.l.b16 %v591
        %v721 = vunpack.c.h.b16 %v591
        %v722 = vunpack.c.l.b16 %v592
        %v723 = vunpack.c.h.b16 %v592
        %v724 = vunpack.c.l.b16 %v593
        %v725 = vunpack.c.h.b16 %v593
        %v726 = vunpack.c.l.b16 %v594
        %v727 = vunpack.c.h.b16 %v594
        %v728 = vunpack.c.l.b16 %v595
        %v729 = vunpack.c.h.b16 %v595
        %v730 = vunpack.c.l.b16 %v596
        %v731 = vunpack.c.h.b16 %v596
        %v732 = vunpack.c.l.b16 %v597
        %v733 = vunpack.c.h.b16 %v597
        %v734 = vunpack.c.l.b16 %v598
        %v735 = vunpack.c.h.b16 %v598
        %v736 = vunpack.c.l.b16 %v599
        %v737 = vunpack.c.h.b16 %v599
        %v738 = vunpack.c.l.b16 %v600
        %v739 = vunpack.c.h.b16 %v600
        %v740 = vunpack.c.l.b16 %v601
        %v741 = vunpack.c.h.b16 %v601
        %v742 = vunpack.c.l.b16 %v602
        %v743 = vunpack.c.h.b16 %v602
        %v744 = vunpack.c.l.b16 %v603
        %v745 = vunpack.c.h.b16 %v603
        %v746 = vunpack.c.l.b16 %v604
        %v747 = vunpack.c.h.b16 %v604
        %v748 = vunpack.c.l.b16 %v605
        %v749 = vunpack.c.h.b16 %v605
        %v750 = vunpack.c.l.b16 %v606
        %v751 = vunpack.c.h.b16 %v606
        %v752 = vunpack.c.l.b16 %v607
        %v753 = vunpack.c.h.b16 %v607
        %v754 = vunpack.c.l.b16 %v608
        %v755 = vunpack.c.h.b16 %v608
        %v756 = vunpack.c.l.b16 %v609
        %v757 = vunpack.c.h.b16 %v609
        %v758 = vunpack.c.l.b16 %v610
        %v759 = vunpack.c.h.b16 %v610
        %v760 = vunpack.c.l.b16 %v611
        %v761 = vunpack.c.h.b16 %v611
        %v762 = vunpack.c.l.b16 %v612
        %v763 = vunpack.c.h.b16 %v612
        %v764 = vunpack.c.l.b16 %v613
        %v765 = vunpack.c.h.b16 %v613
        %v766 = vunpack.c.l.b16 %v614
        %v767 = vunpack.c.h.b16 %v614
        %v768 = vunpack.c.l.b16 %v615
        %v769 = vunpack.c.h.b16 %v615
        %v770 = vunpack.c.l.b16 %v616
        %v771 = vunpack.c.h.b16 %v616
        %v772 = vunpack.c.l.b16 %v617
        %v773 = vunpack.c.h.b16 %v617
        %v774 = vunpack.c.l.b16 %v618
        %v775 = vunpack.c.h.b16 %v618
        %v776 = vunpack.c.l.b16 %v619
        %v777 = vunpack.c.h.b16 %v619
        %v778 = vunpack.c.l.b16 %v620
        %v779 = vunpack.c.h.b16 %v620
        %v780 = vunpack.c.l.b16 %v621
        %v781 = vunpack.c.h.b16 %v621
        %v782 = vunpack.c.l.b16 %v622
        %v783 = vunpack.c.h.b16 %v622
        %v784 = vunpack.c.l.b16 %v623
        %v785 = vunpack.c.h.b16 %v623
        %v786 = vunpack.c.l.b16 %v624
        %v787 = vunpack.c.h.b16 %v624
        %v788 = vunpack.c.l.b16 %v625
        %v789 = vunpack.c.h.b16 %v625
        %v790 = vunpack.c.l.b16 %v626
        %v791 = vunpack.c.h.b16 %v626
        %v792 = vunpack.c.l.b16 %v627
        %v793 = vunpack.c.h.b16 %v627
        %v794 = vunpack.c.l.b16 %v628
        %v795 = vunpack.c.h.b16 %v628
        %v796 = vunpack.c.l.b16 %v629
        %v797 = vunpack.c.h.b16 %v629
        %v798 = vunpack.c.l.b16 %v630
        %v799 = vunpack.c.h.b16 %v630
        %v800 = vunpack.c.l.b16 %v631
        %v801 = vunpack.c.h.b16 %v631
        %v802 = vunpack.c.l.b16 %v632
        %v803 = vunpack.c.h.b16 %v632
        %v804 = vunpack.c.l.b16 %v633
        %v805 = vunpack.c.h.b16 %v633
        %v806 = vunpack.c.l.b16 %v634
        %v807 = vunpack.c.h.b16 %v634
        %v808 = vunpack.c.l.b16 %v635
        %v809 = vunpack.c.h.b16 %v635
        %v810 = vunpack.c.l.b16 %v636
        %v811 = vunpack.c.h.b16 %v636
        %v812 = vunpack.c.l.b16 %v637
        %v813 = vunpack.c.h.b16 %v637
        %v814 = vunpack.c.l.b16 %v638
        %v815 = vunpack.c.h.b16 %v638
        %v816 = vunpack.c.l.b16 %v639
        %v817 = vunpack.c.h.b16 %v639
        %v818 = vunpack.c.l.b16 %v640
        %v819 = vunpack.c.h.b16 %v640
        %v820 = vunpack.c.l.b16 %v641
        %v821 = vunpack.c.h.b16 %v641
        %v822 = vunpack.c.l.b16 %v642
        %v823 = vunpack.c.h.b16 %v642
        %v824 = vunpack.c.l.b16 %v643
        %v825 = vunpack.c.h.b16 %v643
        %v826 = vunpack.c.l.b16 %v644
        %v827 = vunpack.c.h.b16 %v644
        %v828 = vunpack.c.l.b16 %v645
        %v829 = vunpack.c.h.b16 %v645
        %v830 = vunpack.c.l.b16 %v646
        %v831 = vunpack.c.h.b16 %v646
        %v832 = vunpack.c.l.b16 %v647
        %v833 = vunpack.c.h.b16 %v647
        %v834 = vunpack.c.l.b16 %v648
        %v835 = vunpack.c.h.b16 %v648
        %v836 = vunpack.c.l.b16 %v649
        %v837 = vunpack.c.h.b16 %v649
        %v838 = vunpack.c.l.b16 %v650
        %v839 = vunpack.c.h.b16 %v650
        %v840 = vunpack.c.l.b16 %v651
        %v841 = vunpack.c.h.b16 %v651
        %v842 = vunpack.c.l.b16 %v652
        %v843 = vunpack.c.h.b16 %v652
        %v844 = vunpack.c.l.b16 %v653
        %v845 = vunpack.c.h.b16 %v653
        %v846 = vpack.c.b16 %v722, %v718
        %v847 = vpack.c.b16 %v723, %v719
        %v848 = vpack.c.b16 %v724, %v720
        %v849 = vpack.c.b16 %v725, %v721
        %v850 = vpack.c.b16 %v730, %v726
        %v851 = vpack.c.b16 %v731, %v727
        %v852 = vpack.c.b16 %v732, %v728
        %v853 = vpack.c.b16 %v733, %v729
        %v854 = vpack.c.b16 %v738, %v734
        %v855 = vpack.c.b16 %v739, %v735
        %v856 = vpack.c.b16 %v740, %v736
        %v857 = vpack.c.b16 %v741, %v737
        %v858 = vpack.c.b16 %v746, %v742
        %v859 = vpack.c.b16 %v747, %v743
        %v860 = vpack.c.b16 %v748, %v744
        %v861 = vpack.c.b16 %v749, %v745
        %v862 = vpack.c.b16 %v754, %v750
        %v863 = vpack.c.b16 %v755, %v751
        %v864 = vpack.c.b16 %v756, %v752
        %v865 = vpack.c.b16 %v757, %v753
        %v866 = vpack.c.b16 %v762, %v758
        %v867 = vpack.c.b16 %v763, %v759
        %v868 = vpack.c.b16 %v764, %v760
        %v869 = vpack.c.b16 %v765, %v761
        %v870 = vpack.c.b16 %v770, %v766
        %v871 = vpack.c.b16 %v771, %v767
        %v872 = vpack.c.b16 %v772, %v768
        %v873 = vpack.c.b16 %v773, %v769
        %v874 = vpack.c.b16 %v778, %v774
        %v875 = vpack.c.b16 %v779, %v775
        %v876 = vpack.c.b16 %v780, %v776
        %v877 = vpack.c.b16 %v781, %v777
        %v878 = vpack.c.b16 %v786, %v782
        %v879 = vpack.c.b16 %v787, %v783
        %v880 = vpack.c.b16 %v788, %v784
        %v881 = vpack.c.b16 %v789, %v785
        %v882 = vpack.c.b16 %v794, %v790
        %v883 = vpack.c.b16 %v795, %v791
        %v884 = vpack.c.b16 %v796, %v792
        %v885 = vpack.c.b16 %v797, %v793
        %v886 = vpack.c.b16 %v802, %v798
        %v887 = vpack.c.b16 %v803, %v799
        %v888 = vpack.c.b16 %v804, %v800
        %v889 = vpack.c.b16 %v805, %v801
        %v890 = vpack.c.b16 %v810, %v806
        %v891 = vpack.c.b16 %v811, %v807
        %v892 = vpack.c.b16 %v812, %v808
        %v893 = vpack.c.b16 %v813, %v809
        %v894 = vpack.c.b16 %v818, %v814
        %v895 = vpack.c.b16 %v819, %v815
        %v896 = vpack.c.b16 %v820, %v816
        %v897 = vpack.c.b16 %v821, %v817
        %v898 = vpack.c.b16 %v826, %v822
        %v899 = vpack.c.b16 %v827, %v823
        %v900 = vpack.c.b16 %v828, %v824
        %v901 = vpack.c.b16 %v829, %v825
        %v902 = vpack.c.b16 %v834, %v830
        %v903 = vpack.c.b16 %v835, %v831
        %v904 = vpack.c.b16 %v836, %v832
        %v905 = vpack.c.b16 %v837, %v833
        %v906 = vpack.c.b16 %v842, %v838
        %v907 = vpack.c.b16 %v843, %v839
        %v908 = vpack.c.b16 %v844, %v840
        %v909 = vpack.c.b16 %v845, %v841
        %974 = vmatprep.subr.bf16.mxu0 %v847
        %975 = vmatpush1.bf16.msra.mxu0 %v846
        %976 = vmatprep.subr.bf16.mxu0 %v851
        %977 = vmatpush1.bf16.msra.mxu0 %v850
        %978 = vmatprep.subr.bf16.mxu0 %v855
        %979 = vmatpush1.bf16.msra.mxu0 %v854
        %980 = vmatprep.subr.bf16.mxu0 %v859
        %981 = vmatpush1.bf16.msra.mxu0 %v858
        %982 = vmatprep.subr.bf16.mxu0 %v863
        %983 = vmatpush1.bf16.msra.mxu0 %v862
        %984 = vmatprep.subr.bf16.mxu0 %v867
        %985 = vmatpush1.bf16.msra.mxu0 %v866
        %986 = vmatprep.subr.bf16.mxu0 %v871
        %987 = vmatpush1.bf16.msra.mxu0 %v870
        %988 = vmatprep.subr.bf16.mxu0 %v875
        %989 = vmatpush1.bf16.msra.mxu0 %v874
        %990 = vmatprep.subr.bf16.mxu0 %v879
        %991 = vmatpush1.bf16.msra.mxu0 %v878
        %992 = vmatprep.subr.bf16.mxu0 %v883
        %993 = vmatpush1.bf16.msra.mxu0 %v882
        %994 = vmatprep.subr.bf16.mxu0 %v887
        %995 = vmatpush1.bf16.msra.mxu0 %v886
        %996 = vmatprep.subr.bf16.mxu0 %v891
        %997 = vmatpush1.bf16.msra.mxu0 %v890
        %998 = vmatprep.subr.bf16.mxu0 %v895
        %999 = vmatpush1.bf16.msra.mxu0 %v894
        %1000 = vmatprep.subr.bf16.mxu0 %v899
        %1001 = vmatpush1.bf16.msra.mxu0 %v898
        %1002 = vmatprep.subr.bf16.mxu0 %v903
        %1003 = vmatpush1.bf16.msra.mxu0 %v902
        %1004 = vmatprep.subr.bf16.mxu0 %v907
        %1005 = vmatpush1.bf16.msra.mxu0 %v906
        %1006 = vmatprep.mubr.bf16.mxu0 %v589
        %1007 = vmatmul.mubr.bf16.gmra.mrb[0].mxu0 %v588
        %v1008 = vpop.f32.mrb[0].mxu0
        %v1009 = vadd.f32 0.0, %v1008
        %v1010 = vpop.f32.mrb[0].mxu0
        %v1011 = vadd.f32 0.0, %v1010
        %v1012 = vpop.f32.mrb[0].mxu0
        %v1013 = vpop.f32.mrb[0].mxu0
        %1014 = vdwg.mxu0
        %1015 = vmatprep.subr.bf16.mxu0 %v849
        %1016 = vmatpush1.bf16.msra.mxu0 %v848
        %1017 = vmatprep.subr.bf16.mxu0 %v853
        %1018 = vmatpush1.bf16.msra.mxu0 %v852
        %1019 = vmatprep.subr.bf16.mxu0 %v857
        %1020 = vmatpush1.bf16.msra.mxu0 %v856
        %1021 = vmatprep.subr.bf16.mxu0 %v861
        %1022 = vmatpush1.bf16.msra.mxu0 %v860
        %1023 = vmatprep.subr.bf16.mxu0 %v865
        %1024 = vmatpush1.bf16.msra.mxu0 %v864
        %1025 = vmatprep.subr.bf16.mxu0 %v869
        %1026 = vmatpush1.bf16.msra.mxu0 %v868
        %1027 = vmatprep.subr.bf16.mxu0 %v873
        %1028 = vmatpush1.bf16.msra.mxu0 %v872
        %1029 = vmatprep.subr.bf16.mxu0 %v877
        %1030 = vmatpush1.bf16.msra.mxu0 %v876
        %1031 = vmatprep.subr.bf16.mxu0 %v881
        %1032 = vmatpush1.bf16.msra.mxu0 %v880
        %1033 = vmatprep.subr.bf16.mxu0 %v885
        %1034 = vmatpush1.bf16.msra.mxu0 %v884
        %1035 = vmatprep.subr.bf16.mxu0 %v889
        %1036 = vmatpush1.bf16.msra.mxu0 %v888
        %1037 = vmatprep.subr.bf16.mxu0 %v893
        %1038 = vmatpush1.bf16.msra.mxu0 %v892
        %1039 = vmatprep.subr.bf16.mxu0 %v897
        %1040 = vmatpush1.bf16.msra.mxu0 %v896
        %1041 = vmatprep.subr.bf16.mxu0 %v901
        %1042 = vmatpush1.bf16.msra.mxu0 %v900
        %1043 = vmatprep.subr.bf16.mxu0 %v905
        %1044 = vmatpush1.bf16.msra.mxu0 %v904
        %1045 = vmatprep.subr.bf16.mxu0 %v909
        %1046 = vmatpush1.bf16.msra.mxu0 %v908
        %1047 = vmatprep.mubr.bf16.mxu0 %v589
        %1048 = vmatmul.mubr.bf16.gmra.mrb[0].mxu0 %v588
        %v1049 = vpop.f32.mrb[0].mxu0
        %v1050 = vadd.f32 0.0, %v1049
        %v1051 = vpop.f32.mrb[0].mxu0
        %v1052 = vadd.f32 0.0, %v1051
        %v1053 = vpop.f32.mrb[0].mxu0
        %v1054 = vpop.f32.mrb[0].mxu0
        %1055 = vdwg.mxu0
        %v1056 = vpack.c.bf16 %v1009, %v1009
        %v1057 = vpack.c.bf16 %v1011, %v1011
        %v1058 = vpack.c.bf16 %v1050, %v1050
        %v1059 = vpack.c.bf16 %v1052, %v1052
        %v1060 = vld [vmem:[%s4] sm:$0xf]
        %v1063 = vunpack.c.l.s4 1966171168
        %v1064 = vunpack.c.0.s8 %v1063
        %v1065 = vlaneseq
        %v1066 = vshrl.u32 %v1065, 7
        %v1067 = vsub.s32 %v1064, %v1066
        %v1068 = vrot.slane %v1060, %v1067
        %v1069 = vcombine.high %v1068, %v1068
        %v1071 = vunpack.c.l.s4 1966171168
        %v1072 = vunpack.c.0.s8 %v1071
        %v1073 = vlaneseq
        %v1074 = vshrl.u32 %v1073, 7
        %v1075 = vsub.s32 %v1072, %v1074
        %v1076 = vrot.slane %v1068, %v1075
        %v1078 = vunpack.c.l.s4 1966171168
        %v1079 = vunpack.c.0.s8 %v1078
        %v1080 = vlaneseq
        %v1081 = vshrl.u32 %v1080, 7
        %v1082 = vsub.s32 %v1079, %v1081
        %v1083 = vrot.slane %v1069, %v1082
        %v1084 = vcombine.high %v1076, %v1076
        %v1085 = vcombine.high %v1083, %v1083
        %v1087 = vpack.i.b16 %v1076, %v1076
        %v1089 = vlaneseq
        %v1090 = vshrl.u32 %v1089, 7
        %v1091 = vsub.s32 0, %v1090
        %v1092 = vrot.slane %v1087, %v1091
        %v1094 = vpack.i.b16 %v1083, %v1083
        %v1096 = vlaneseq
        %v1097 = vshrl.u32 %v1096, 7
        %v1098 = vsub.s32 0, %v1097
        %v1099 = vrot.slane %v1094, %v1098
        %v1101 = vpack.i.b16 %v1084, %v1084
        %v1103 = vlaneseq
        %v1104 = vshrl.u32 %v1103, 7
        %v1105 = vsub.s32 0, %v1104
        %v1106 = vrot.slane %v1101, %v1105
        %v1108 = vpack.i.b16 %v1085, %v1085
        %v1110 = vlaneseq
        %v1111 = vshrl.u32 %v1110, 7
        %v1112 = vsub.s32 0, %v1111
        %v1113 = vrot.slane %v1108, %v1112
        %v1114 = vadd.bf16 %v1056, %v1092
        %v1115 = vadd.bf16 %v1057, %v1099
        %v1116 = vadd.bf16 %v1058, %v1106
        %v1117 = vadd.bf16 %v1059, %v1113
        %v1118 = vmax.bf16 %v1114, 0
        %v1119 = vmax.bf16 %v1115, 0
        %v1120 = vmax.bf16 %v1116, 0
        %v1121 = vmax.bf16 %v1117, 0
        %v1122 = vld [vmem:[#allocation8] sm:$0xff]
        %v1123 = vld [vmem:[#allocation8 + $0x8] sm:$0xff]
        %v1124 = vld [vmem:[#allocation8 + $0x10] sm:$0xff]
        %v1125 = vld [vmem:[#allocation8 + $0x18] sm:$0xff]
        %v1126 = vld [vmem:[#allocation8 + $0x20] sm:$0xff]
        %v1127 = vld [vmem:[#allocation8 + $0x28] sm:$0xff]
        %v1128 = vld [vmem:[#allocation8 + $0x30] sm:$0xff]
        %v1129 = vld [vmem:[#allocation8 + $0x38] sm:$0xff]
        %v1130 = vld [vmem:[#allocation8 + $0x40] sm:$0xff]
        %v1131 = vld [vmem:[#allocation8 + $0x48] sm:$0xff]
        %v1132 = vld [vmem:[#allocation8 + $0x50] sm:$0xff]
        %v1133 = vld [vmem:[#allocation8 + $0x58] sm:$0xff]
        %v1134 = vld [vmem:[#allocation8 + $0x60] sm:$0xff]
        %v1135 = vld [vmem:[#allocation8 + $0x68] sm:$0xff]
        %v1136 = vld [vmem:[#allocation8 + $0x70] sm:$0xff]
        %v1137 = vld [vmem:[#allocation8 + $0x78] sm:$0xff]
        %v1138 = vld [vmem:[#allocation8 + $0x80] sm:$0xff]
        %v1139 = vld [vmem:[#allocation8 + $0x88] sm:$0xff]
        %v1140 = vld [vmem:[#allocation8 + $0x90] sm:$0xff]
        %v1141 = vld [vmem:[#allocation8 + $0x98] sm:$0xff]
        %v1142 = vld [vmem:[#allocation8 + $0xa0] sm:$0xff]
        %v1143 = vld [vmem:[#allocation8 + $0xa8] sm:$0xff]
        %v1144 = vld [vmem:[#allocation8 + $0xb0] sm:$0xff]
        %v1145 = vld [vmem:[#allocation8 + $0xb8] sm:$0xff]
        %v1146 = vld [vmem:[#allocation8 + $0xc0] sm:$0xff]
        %v1147 = vld [vmem:[#allocation8 + $0xc8] sm:$0xff]
        %v1148 = vld [vmem:[#allocation8 + $0xd0] sm:$0xff]
        %v1149 = vld [vmem:[#allocation8 + $0xd8] sm:$0xff]
        %v1150 = vld [vmem:[#allocation8 + $0xe0] sm:$0xff]
        %v1151 = vld [vmem:[#allocation8 + $0xe8] sm:$0xff]
        %v1152 = vld [vmem:[#allocation8 + $0xf0] sm:$0xff]
        %v1153 = vld [vmem:[#allocation8 + $0xf8] sm:$0xff]
        %v1154 = vld [vmem:[#allocation8 + $0x100] sm:$0xff]
        %v1155 = vld [vmem:[#allocation8 + $0x108] sm:$0xff]
        %v1156 = vld [vmem:[#allocation8 + $0x110] sm:$0xff]
        %v1157 = vld [vmem:[#allocation8 + $0x118] sm:$0xff]
        %v1158 = vld [vmem:[#allocation8 + $0x120] sm:$0xff]
        %v1159 = vld [vmem:[#allocation8 + $0x128] sm:$0xff]
        %v1160 = vld [vmem:[#allocation8 + $0x130] sm:$0xff]
        %v1161 = vld [vmem:[#allocation8 + $0x138] sm:$0xff]
        %v1162 = vld [vmem:[#allocation8 + $0x140] sm:$0xff]
        %v1163 = vld [vmem:[#allocation8 + $0x148] sm:$0xff]
        %v1164 = vld [vmem:[#allocation8 + $0x150] sm:$0xff]
        %v1165 = vld [vmem:[#allocation8 + $0x158] sm:$0xff]
        %v1166 = vld [vmem:[#allocation8 + $0x160] sm:$0xff]
        %v1167 = vld [vmem:[#allocation8 + $0x168] sm:$0xff]
        %v1168 = vld [vmem:[#allocation8 + $0x170] sm:$0xff]
        %v1169 = vld [vmem:[#allocation8 + $0x178] sm:$0xff]
        %v1170 = vld [vmem:[#allocation8 + $0x180] sm:$0xff]
        %v1171 = vld [vmem:[#allocation8 + $0x188] sm:$0xff]
        %v1172 = vld [vmem:[#allocation8 + $0x190] sm:$0xff]
        %v1173 = vld [vmem:[#allocation8 + $0x198] sm:$0xff]
        %v1174 = vld [vmem:[#allocation8 + $0x1a0] sm:$0xff]
        %v1175 = vld [vmem:[#allocation8 + $0x1a8] sm:$0xff]
        %v1176 = vld [vmem:[#allocation8 + $0x1b0] sm:$0xff]
        %v1177 = vld [vmem:[#allocation8 + $0x1b8] sm:$0xff]
        %v1178 = vld [vmem:[#allocation8 + $0x1c0] sm:$0xff]
        %v1179 = vld [vmem:[#allocation8 + $0x1c8] sm:$0xff]
        %v1180 = vld [vmem:[#allocation8 + $0x1d0] sm:$0xff]
        %v1181 = vld [vmem:[#allocation8 + $0x1d8] sm:$0xff]
        %v1182 = vld [vmem:[#allocation8 + $0x1e0] sm:$0xff]
        %v1183 = vld [vmem:[#allocation8 + $0x1e8] sm:$0xff]
        %v1184 = vld [vmem:[#allocation8 + $0x1f0] sm:$0xff]
        %v1185 = vld [vmem:[#allocation8 + $0x1f8] sm:$0xff]
        %v1250 = vunpack.c.l.b16 %v1122
        %v1251 = vunpack.c.h.b16 %v1122
        %v1252 = vunpack.c.l.b16 %v1123
        %v1253 = vunpack.c.h.b16 %v1123
        %v1254 = vunpack.c.l.b16 %v1124
        %v1255 = vunpack.c.h.b16 %v1124
        %v1256 = vunpack.c.l.b16 %v1125
        %v1257 = vunpack.c.h.b16 %v1125
        %v1258 = vunpack.c.l.b16 %v1126
        %v1259 = vunpack.c.h.b16 %v1126
        %v1260 = vunpack.c.l.b16 %v1127
        %v1261 = vunpack.c.h.b16 %v1127
        %v1262 = vunpack.c.l.b16 %v1128
        %v1263 = vunpack.c.h.b16 %v1128
        %v1264 = vunpack.c.l.b16 %v1129
        %v1265 = vunpack.c.h.b16 %v1129
        %v1266 = vunpack.c.l.b16 %v1130
        %v1267 = vunpack.c.h.b16 %v1130
        %v1268 = vunpack.c.l.b16 %v1131
        %v1269 = vunpack.c.h.b16 %v1131
        %v1270 = vunpack.c.l.b16 %v1132
        %v1271 = vunpack.c.h.b16 %v1132
        %v1272 = vunpack.c.l.b16 %v1133
        %v1273 = vunpack.c.h.b16 %v1133
        %v1274 = vunpack.c.l.b16 %v1134
        %v1275 = vunpack.c.h.b16 %v1134
        %v1276 = vunpack.c.l.b16 %v1135
        %v1277 = vunpack.c.h.b16 %v1135
        %v1278 = vunpack.c.l.b16 %v1136
        %v1279 = vunpack.c.h.b16 %v1136
        %v1280 = vunpack.c.l.b16 %v1137
        %v1281 = vunpack.c.h.b16 %v1137
        %v1282 = vunpack.c.l.b16 %v1138
        %v1283 = vunpack.c.h.b16 %v1138
        %v1284 = vunpack.c.l.b16 %v1139
        %v1285 = vunpack.c.h.b16 %v1139
        %v1286 = vunpack.c.l.b16 %v1140
        %v1287 = vunpack.c.h.b16 %v1140
        %v1288 = vunpack.c.l.b16 %v1141
        %v1289 = vunpack.c.h.b16 %v1141
        %v1290 = vunpack.c.l.b16 %v1142
        %v1291 = vunpack.c.h.b16 %v1142
        %v1292 = vunpack.c.l.b16 %v1143
        %v1293 = vunpack.c.h.b16 %v1143
        %v1294 = vunpack.c.l.b16 %v1144
        %v1295 = vunpack.c.h.b16 %v1144
        %v1296 = vunpack.c.l.b16 %v1145
        %v1297 = vunpack.c.h.b16 %v1145
        %v1298 = vunpack.c.l.b16 %v1146
        %v1299 = vunpack.c.h.b16 %v1146
        %v1300 = vunpack.c.l.b16 %v1147
        %v1301 = vunpack.c.h.b16 %v1147
        %v1302 = vunpack.c.l.b16 %v1148
        %v1303 = vunpack.c.h.b16 %v1148
        %v1304 = vunpack.c.l.b16 %v1149
        %v1305 = vunpack.c.h.b16 %v1149
        %v1306 = vunpack.c.l.b16 %v1150
        %v1307 = vunpack.c.h.b16 %v1150
        %v1308 = vunpack.c.l.b16 %v1151
        %v1309 = vunpack.c.h.b16 %v1151
        %v1310 = vunpack.c.l.b16 %v1152
        %v1311 = vunpack.c.h.b16 %v1152
        %v1312 = vunpack.c.l.b16 %v1153
        %v1313 = vunpack.c.h.b16 %v1153
        %v1314 = vunpack.c.l.b16 %v1154
        %v1315 = vunpack.c.h.b16 %v1154
        %v1316 = vunpack.c.l.b16 %v1155
        %v1317 = vunpack.c.h.b16 %v1155
        %v1318 = vunpack.c.l.b16 %v1156
        %v1319 = vunpack.c.h.b16 %v1156
        %v1320 = vunpack.c.l.b16 %v1157
        %v1321 = vunpack.c.h.b16 %v1157
        %v1322 = vunpack.c.l.b16 %v1158
        %v1323 = vunpack.c.h.b16 %v1158
        %v1324 = vunpack.c.l.b16 %v1159
        %v1325 = vunpack.c.h.b16 %v1159
        %v1326 = vunpack.c.l.b16 %v1160
        %v1327 = vunpack.c.h.b16 %v1160
        %v1328 = vunpack.c.l.b16 %v1161
        %v1329 = vunpack.c.h.b16 %v1161
        %v1330 = vunpack.c.l.b16 %v1162
        %v1331 = vunpack.c.h.b16 %v1162
        %v1332 = vunpack.c.l.b16 %v1163
        %v1333 = vunpack.c.h.b16 %v1163
        %v1334 = vunpack.c.l.b16 %v1164
        %v1335 = vunpack.c.h.b16 %v1164
        %v1336 = vunpack.c.l.b16 %v1165
        %v1337 = vunpack.c.h.b16 %v1165
        %v1338 = vunpack.c.l.b16 %v1166
        %v1339 = vunpack.c.h.b16 %v1166
        %v1340 = vunpack.c.l.b16 %v1167
        %v1341 = vunpack.c.h.b16 %v1167
        %v1342 = vunpack.c.l.b16 %v1168
        %v1343 = vunpack.c.h.b16 %v1168
        %v1344 = vunpack.c.l.b16 %v1169
        %v1345 = vunpack.c.h.b16 %v1169
        %v1346 = vunpack.c.l.b16 %v1170
        %v1347 = vunpack.c.h.b16 %v1170
        %v1348 = vunpack.c.l.b16 %v1171
        %v1349 = vunpack.c.h.b16 %v1171
        %v1350 = vunpack.c.l.b16 %v1172
        %v1351 = vunpack.c.h.b16 %v1172
        %v1352 = vunpack.c.l.b16 %v1173
        %v1353 = vunpack.c.h.b16 %v1173
        %v1354 = vunpack.c.l.b16 %v1174
        %v1355 = vunpack.c.h.b16 %v1174
        %v1356 = vunpack.c.l.b16 %v1175
        %v1357 = vunpack.c.h.b16 %v1175
        %v1358 = vunpack.c.l.b16 %v1176
        %v1359 = vunpack.c.h.b16 %v1176
        %v1360 = vunpack.c.l.b16 %v1177
        %v1361 = vunpack.c.h.b16 %v1177
        %v1362 = vunpack.c.l.b16 %v1178
        %v1363 = vunpack.c.h.b16 %v1178
        %v1364 = vunpack.c.l.b16 %v1179
        %v1365 = vunpack.c.h.b16 %v1179
        %v1366 = vunpack.c.l.b16 %v1180
        %v1367 = vunpack.c.h.b16 %v1180
        %v1368 = vunpack.c.l.b16 %v1181
        %v1369 = vunpack.c.h.b16 %v1181
        %v1370 = vunpack.c.l.b16 %v1182
        %v1371 = vunpack.c.h.b16 %v1182
        %v1372 = vunpack.c.l.b16 %v1183
        %v1373 = vunpack.c.h.b16 %v1183
        %v1374 = vunpack.c.l.b16 %v1184
        %v1375 = vunpack.c.h.b16 %v1184
        %v1376 = vunpack.c.l.b16 %v1185
        %v1377 = vunpack.c.h.b16 %v1185
        %v1378 = vpack.c.b16 %v1252, %v1250
        %v1379 = vpack.c.b16 %v1253, %v1251
        %v1380 = vpack.c.b16 %v1256, %v1254
        %v1381 = vpack.c.b16 %v1257, %v1255
        %v1382 = vpack.c.b16 %v1260, %v1258
        %v1383 = vpack.c.b16 %v1261, %v1259
        %v1384 = vpack.c.b16 %v1264, %v1262
        %v1385 = vpack.c.b16 %v1265, %v1263
        %v1386 = vpack.c.b16 %v1268, %v1266
        %v1387 = vpack.c.b16 %v1269, %v1267
        %v1388 = vpack.c.b16 %v1272, %v1270
        %v1389 = vpack.c.b16 %v1273, %v1271
        %v1390 = vpack.c.b16 %v1276, %v1274
        %v1391 = vpack.c.b16 %v1277, %v1275
        %v1392 = vpack.c.b16 %v1280, %v1278
        %v1393 = vpack.c.b16 %v1281, %v1279
        %v1394 = vpack.c.b16 %v1284, %v1282
        %v1395 = vpack.c.b16 %v1285, %v1283
        %v1396 = vpack.c.b16 %v1288, %v1286
        %v1397 = vpack.c.b16 %v1289, %v1287
        %v1398 = vpack.c.b16 %v1292, %v1290
        %v1399 = vpack.c.b16 %v1293, %v1291
        %v1400 = vpack.c.b16 %v1296, %v1294
        %v1401 = vpack.c.b16 %v1297, %v1295
        %v1402 = vpack.c.b16 %v1300, %v1298
        %v1403 = vpack.c.b16 %v1301, %v1299
        %v1404 = vpack.c.b16 %v1304, %v1302
        %v1405 = vpack.c.b16 %v1305, %v1303
        %v1406 = vpack.c.b16 %v1308, %v1306
        %v1407 = vpack.c.b16 %v1309, %v1307
        %v1408 = vpack.c.b16 %v1312, %v1310
        %v1409 = vpack.c.b16 %v1313, %v1311
        %v1410 = vpack.c.b16 %v1316, %v1314
        %v1411 = vpack.c.b16 %v1317, %v1315
        %v1412 = vpack.c.b16 %v1320, %v1318
        %v1413 = vpack.c.b16 %v1321, %v1319
        %v1414 = vpack.c.b16 %v1324, %v1322
        %v1415 = vpack.c.b16 %v1325, %v1323
        %v1416 = vpack.c.b16 %v1328, %v1326
        %v1417 = vpack.c.b16 %v1329, %v1327
        %v1418 = vpack.c.b16 %v1332, %v1330
        %v1419 = vpack.c.b16 %v1333, %v1331
        %v1420 = vpack.c.b16 %v1336, %v1334
        %v1421 = vpack.c.b16 %v1337, %v1335
        %v1422 = vpack.c.b16 %v1340, %v1338
        %v1423 = vpack.c.b16 %v1341, %v1339
        %v1424 = vpack.c.b16 %v1344, %v1342
        %v1425 = vpack.c.b16 %v1345, %v1343
        %v1426 = vpack.c.b16 %v1348, %v1346
        %v1427 = vpack.c.b16 %v1349, %v1347
        %v1428 = vpack.c.b16 %v1352, %v1350
        %v1429 = vpack.c.b16 %v1353, %v1351
        %v1430 = vpack.c.b16 %v1356, %v1354
        %v1431 = vpack.c.b16 %v1357, %v1355
        %v1432 = vpack.c.b16 %v1360, %v1358
        %v1433 = vpack.c.b16 %v1361, %v1359
        %v1434 = vpack.c.b16 %v1364, %v1362
        %v1435 = vpack.c.b16 %v1365, %v1363
        %v1436 = vpack.c.b16 %v1368, %v1366
        %v1437 = vpack.c.b16 %v1369, %v1367
        %v1438 = vpack.c.b16 %v1372, %v1370
        %v1439 = vpack.c.b16 %v1373, %v1371
        %v1440 = vpack.c.b16 %v1376, %v1374
        %v1441 = vpack.c.b16 %v1377, %v1375
        %1506 = vmatprep.subr.bf16.mxu0 %v1379
        %1507 = vmatpush1.bf16.msra.mxu0 %v1378
        %1508 = vmatprep.subr.bf16.mxu0 %v1381
        %1509 = vmatpush1.bf16.msra.mxu0 %v1380
        %1510 = vmatprep.subr.bf16.mxu0 %v1383
        %1511 = vmatpush1.bf16.msra.mxu0 %v1382
        %1512 = vmatprep.subr.bf16.mxu0 %v1385
        %1513 = vmatpush1.bf16.msra.mxu0 %v1384
        %1514 = vmatprep.subr.bf16.mxu0 %v1387
        %1515 = vmatpush1.bf16.msra.mxu0 %v1386
        %1516 = vmatprep.subr.bf16.mxu0 %v1389
        %1517 = vmatpush1.bf16.msra.mxu0 %v1388
        %1518 = vmatprep.subr.bf16.mxu0 %v1391
        %1519 = vmatpush1.bf16.msra.mxu0 %v1390
        %1520 = vmatprep.subr.bf16.mxu0 %v1393
        %1521 = vmatpush1.bf16.msra.mxu0 %v1392
        %1522 = vmatprep.subr.bf16.mxu0 %v1395
        %1523 = vmatpush1.bf16.msra.mxu0 %v1394
        %1524 = vmatprep.subr.bf16.mxu0 %v1397
        %1525 = vmatpush1.bf16.msra.mxu0 %v1396
        %1526 = vmatprep.subr.bf16.mxu0 %v1399
        %1527 = vmatpush1.bf16.msra.mxu0 %v1398
        %1528 = vmatprep.subr.bf16.mxu0 %v1401
        %1529 = vmatpush1.bf16.msra.mxu0 %v1400
        %1530 = vmatprep.subr.bf16.mxu0 %v1403
        %1531 = vmatpush1.bf16.msra.mxu0 %v1402
        %1532 = vmatprep.subr.bf16.mxu0 %v1405
        %1533 = vmatpush1.bf16.msra.mxu0 %v1404
        %1534 = vmatprep.subr.bf16.mxu0 %v1407
        %1535 = vmatpush1.bf16.msra.mxu0 %v1406
        %1536 = vmatprep.subr.bf16.mxu0 %v1409
        %1537 = vmatpush1.bf16.msra.mxu0 %v1408
        %1538 = vmatprep.mubr.bf16.mxu0 %v1119
        %1539 = vmatmul.mubr.bf16.gmra.mrb[0].mxu0 %v1118
        %v1540 = vpop.f32.mrb[0].mxu0
        %v1541 = vadd.f32 0.0, %v1540
        %v1542 = vpop.f32.mrb[0].mxu0
        %v1543 = vadd.f32 0.0, %v1542
        %v1544 = vpop.f32.mrb[0].mxu0
        %v1545 = vpop.f32.mrb[0].mxu0
        %1546 = vdwg.mxu0
        %1547 = vmatprep.subr.bf16.mxu0 %v1411
        %1548 = vmatpush1.bf16.msra.mxu0 %v1410
        %1549 = vmatprep.subr.bf16.mxu0 %v1413
        %1550 = vmatpush1.bf16.msra.mxu0 %v1412
        %1551 = vmatprep.subr.bf16.mxu0 %v1415
        %1552 = vmatpush1.bf16.msra.mxu0 %v1414
        %1553 = vmatprep.subr.bf16.mxu0 %v1417
        %1554 = vmatpush1.bf16.msra.mxu0 %v1416
        %1555 = vmatprep.subr.bf16.mxu0 %v1419
        %1556 = vmatpush1.bf16.msra.mxu0 %v1418
        %1557 = vmatprep.subr.bf16.mxu0 %v1421
        %1558 = vmatpush1.bf16.msra.mxu0 %v1420
        %1559 = vmatprep.subr.bf16.mxu0 %v1423
        %1560 = vmatpush1.bf16.msra.mxu0 %v1422
        %1561 = vmatprep.subr.bf16.mxu0 %v1425
        %1562 = vmatpush1.bf16.msra.mxu0 %v1424
        %1563 = vmatprep.subr.bf16.mxu0 %v1427
        %1564 = vmatpush1.bf16.msra.mxu0 %v1426
        %1565 = vmatprep.subr.bf16.mxu0 %v1429
        %1566 = vmatpush1.bf16.msra.mxu0 %v1428
        %1567 = vmatprep.subr.bf16.mxu0 %v1431
        %1568 = vmatpush1.bf16.msra.mxu0 %v1430
        %1569 = vmatprep.subr.bf16.mxu0 %v1433
        %1570 = vmatpush1.bf16.msra.mxu0 %v1432
        %1571 = vmatprep.subr.bf16.mxu0 %v1435
        %1572 = vmatpush1.bf16.msra.mxu0 %v1434
        %1573 = vmatprep.subr.bf16.mxu0 %v1437
        %1574 = vmatpush1.bf16.msra.mxu0 %v1436
        %1575 = vmatprep.subr.bf16.mxu0 %v1439
        %1576 = vmatpush1.bf16.msra.mxu0 %v1438
        %1577 = vmatprep.subr.bf16.mxu0 %v1441
        %1578 = vmatpush1.bf16.msra.mxu0 %v1440
        %1579 = vmatprep.mubr.bf16.mxu0 %v1121
        %1580 = vmatmul.mubr.bf16.gmra.mrb[0].mxu0 %v1120
        %v1581 = vpop.f32.mrb[0].mxu0
        %v1582 = vadd.f32 %v1541, %v1581
        %v1583 = vpop.f32.mrb[0].mxu0
        %v1584 = vadd.f32 %v1543, %v1583
        %v1585 = vpop.f32.mrb[0].mxu0
        %v1586 = vpop.f32.mrb[0].mxu0
        %1587 = vdwg.mxu0
        %v1588 = vpack.c.bf16 %v1582, %v1582
        %v1589 = vpack.c.bf16 %v1584, %v1584
        %v1590 = vld [vmem:[%s6] sm:$0x3]
        %v1593 = vunpack.c.l.s4 1966171168
        %v1594 = vunpack.c.0.s8 %v1593
        %v1595 = vlaneseq
        %v1596 = vshrl.u32 %v1595, 7
        %v1597 = vsub.s32 %v1594, %v1596
        %v1598 = vrot.slane %v1590, %v1597
        %v1599 = vcombine.high %v1598, %v1598
        %v1601 = vunpack.c.l.s4 1966171168
        %v1602 = vunpack.c.0.s8 %v1601
        %v1603 = vlaneseq
        %v1604 = vshrl.u32 %v1603, 7
        %v1605 = vsub.s32 %v1602, %v1604
        %v1606 = vrot.slane %v1598, %v1605
        %v1608 = vunpack.c.l.s4 1966171168
        %v1609 = vunpack.c.0.s8 %v1608
        %v1610 = vlaneseq
        %v1611 = vshrl.u32 %v1610, 7
        %v1612 = vsub.s32 %v1609, %v1611
        %v1613 = vrot.slane %v1599, %v1612
        %v1615 = vpack.i.b16 %v1606, %v1606
        %v1617 = vlaneseq
        %v1618 = vshrl.u32 %v1617, 7
        %v1619 = vsub.s32 0, %v1618
        %v1620 = vrot.slane %v1615, %v1619
        %v1622 = vpack.i.b16 %v1613, %v1613
        %v1624 = vlaneseq
        %v1625 = vshrl.u32 %v1624, 7
        %v1626 = vsub.s32 0, %v1625
        %v1627 = vrot.slane %v1622, %v1626
        %v1628 = vadd.bf16 %v1588, %v1620
        %v1629 = vadd.bf16 %v1589, %v1627
        %v1630 = vmax.bf16 %v1628, 0
        %v1631 = vmax.bf16 %v1629, 0
        %v1632 = vld [vmem:[#allocation10] sm:$0xf]
        %v1633 = vld [vmem:[#allocation10 + $0x4] sm:$0xf]
        %v1634 = vld [vmem:[#allocation10 + $0x8] sm:$0xf]
        %v1635 = vld [vmem:[#allocation10 + $0xc] sm:$0xf]
        %v1636 = vld [vmem:[#allocation10 + $0x10] sm:$0xf]
        %v1637 = vld [vmem:[#allocation10 + $0x14] sm:$0xf]
        %v1638 = vld [vmem:[#allocation10 + $0x18] sm:$0xf]
        %v1639 = vld [vmem:[#allocation10 + $0x1c] sm:$0xf]
        %v1640 = vld [vmem:[#allocation10 + $0x20] sm:$0xf]
        %v1641 = vld [vmem:[#allocation10 + $0x24] sm:$0xf]
        %v1642 = vld [vmem:[#allocation10 + $0x28] sm:$0xf]
        %v1643 = vld [vmem:[#allocation10 + $0x2c] sm:$0xf]
        %v1644 = vld [vmem:[#allocation10 + $0x30] sm:$0xf]
        %v1645 = vld [vmem:[#allocation10 + $0x34] sm:$0xf]
        %v1646 = vld [vmem:[#allocation10 + $0x38] sm:$0xf]
        %v1647 = vld [vmem:[#allocation10 + $0x3c] sm:$0xf]
        %v1648 = vld [vmem:[#allocation10 + $0x40] sm:$0xf]
        %v1649 = vld [vmem:[#allocation10 + $0x44] sm:$0xf]
        %v1650 = vld [vmem:[#allocation10 + $0x48] sm:$0xf]
        %v1651 = vld [vmem:[#allocation10 + $0x4c] sm:$0xf]
        %v1652 = vld [vmem:[#allocation10 + $0x50] sm:$0xf]
        %v1653 = vld [vmem:[#allocation10 + $0x54] sm:$0xf]
        %v1654 = vld [vmem:[#allocation10 + $0x58] sm:$0xf]
        %v1655 = vld [vmem:[#allocation10 + $0x5c] sm:$0xf]
        %v1656 = vld [vmem:[#allocation10 + $0x60] sm:$0xf]
        %v1657 = vld [vmem:[#allocation10 + $0x64] sm:$0xf]
        %v1658 = vld [vmem:[#allocation10 + $0x68] sm:$0xf]
        %v1659 = vld [vmem:[#allocation10 + $0x6c] sm:$0xf]
        %v1660 = vld [vmem:[#allocation10 + $0x70] sm:$0xf]
        %v1661 = vld [vmem:[#allocation10 + $0x74] sm:$0xf]
        %v1662 = vld [vmem:[#allocation10 + $0x78] sm:$0xf]
        %v1663 = vld [vmem:[#allocation10 + $0x7c] sm:$0xf]
        %v1664 = vld [vmem:[%s8] sm:$0x1]
        %v1666 = vlaneseq
        %v1667 = vshrl.u32 %v1666, 7
        %v1668 = vsub.s32 0, %v1667
        %v1669 = vrot.slane %v1664, %v1668
        %v1703 = vunpack.c.l.b16 %v1632
        %v1704 = vunpack.c.l.b16 %v1633
        %v1705 = vunpack.c.l.b16 %v1634
        %v1706 = vunpack.c.l.b16 %v1635
        %v1707 = vunpack.c.l.b16 %v1636
        %v1708 = vunpack.c.l.b16 %v1637
        %v1709 = vunpack.c.l.b16 %v1638
        %v1710 = vunpack.c.l.b16 %v1639
        %v1711 = vunpack.c.l.b16 %v1640
        %v1712 = vunpack.c.l.b16 %v1641
        %v1713 = vunpack.c.l.b16 %v1642
        %v1714 = vunpack.c.l.b16 %v1643
        %v1715 = vunpack.c.l.b16 %v1644
        %v1716 = vunpack.c.l.b16 %v1645
        %v1717 = vunpack.c.l.b16 %v1646
        %v1718 = vunpack.c.l.b16 %v1647
        %v1719 = vunpack.c.l.b16 %v1648
        %v1720 = vunpack.c.l.b16 %v1649
        %v1721 = vunpack.c.l.b16 %v1650
        %v1722 = vunpack.c.l.b16 %v1651
        %v1723 = vunpack.c.l.b16 %v1652
        %v1724 = vunpack.c.l.b16 %v1653
        %v1725 = vunpack.c.l.b16 %v1654
        %v1726 = vunpack.c.l.b16 %v1655
        %v1727 = vunpack.c.l.b16 %v1656
        %v1728 = vunpack.c.l.b16 %v1657
        %v1729 = vunpack.c.l.b16 %v1658
        %v1730 = vunpack.c.l.b16 %v1659
        %v1731 = vunpack.c.l.b16 %v1660
        %v1732 = vunpack.c.l.b16 %v1661
        %v1733 = vunpack.c.l.b16 %v1662
        %v1734 = vunpack.c.l.b16 %v1663
        %v1735 = vpack.c.b16 %v1704, %v1703
        %v1736 = vpack.c.b16 %v1706, %v1705
        %v1737 = vpack.c.b16 %v1708, %v1707
        %v1738 = vpack.c.b16 %v1710, %v1709
        %v1739 = vpack.c.b16 %v1712, %v1711
        %v1740 = vpack.c.b16 %v1714, %v1713
        %v1741 = vpack.c.b16 %v1716, %v1715
        %v1742 = vpack.c.b16 %v1718, %v1717
        %v1743 = vpack.c.b16 %v1720, %v1719
        %v1744 = vpack.c.b16 %v1722, %v1721
        %v1745 = vpack.c.b16 %v1724, %v1723
        %v1746 = vpack.c.b16 %v1726, %v1725
        %v1747 = vpack.c.b16 %v1728, %v1727
        %v1748 = vpack.c.b16 %v1730, %v1729
        %v1749 = vpack.c.b16 %v1732, %v1731
        %v1750 = vpack.c.b16 %v1734, %v1733
        %1767 = vmatprep.subr.bf16.mxu0 0
        %1768 = vmatpush1.bf16.msra.mxu0 %v1735
        %1769 = vmatprep.subr.bf16.mxu0 0
        %1770 = vmatpush1.bf16.msra.mxu0 %v1736
        %1771 = vmatprep.subr.bf16.mxu0 0
        %1772 = vmatpush1.bf16.msra.mxu0 %v1737
        %1773 = vmatprep.subr.bf16.mxu0 0
        %1774 = vmatpush1.bf16.msra.mxu0 %v1738
        %1775 = vmatprep.subr.bf16.mxu0 0
        %1776 = vmatpush1.bf16.msra.mxu0 %v1739
        %1777 = vmatprep.subr.bf16.mxu0 0
        %1778 = vmatpush1.bf16.msra.mxu0 %v1740
        %1779 = vmatprep.subr.bf16.mxu0 0
        %1780 = vmatpush1.bf16.msra.mxu0 %v1741
        %1781 = vmatprep.subr.bf16.mxu0 0
        %1782 = vmatpush1.bf16.msra.mxu0 %v1742
        %1783 = vmatprep.subr.bf16.mxu0 0
        %1784 = vmatpush1.bf16.msra.mxu0 %v1743
        %1785 = vmatprep.subr.bf16.mxu0 0
        %1786 = vmatpush1.bf16.msra.mxu0 %v1744
        %1787 = vmatprep.subr.bf16.mxu0 0
        %1788 = vmatpush1.bf16.msra.mxu0 %v1745
        %1789 = vmatprep.subr.bf16.mxu0 0
        %1790 = vmatpush1.bf16.msra.mxu0 %v1746
        %1791 = vmatprep.subr.bf16.mxu0 0
        %1792 = vmatpush1.bf16.msra.mxu0 %v1747
        %1793 = vmatprep.subr.bf16.mxu0 0
        %1794 = vmatpush1.bf16.msra.mxu0 %v1748
        %1795 = vmatprep.subr.bf16.mxu0 0
        %1796 = vmatpush1.bf16.msra.mxu0 %v1749
        %1797 = vmatprep.subr.bf16.mxu0 0
        %1798 = vmatpush1.bf16.msra.mxu0 %v1750
        %1799 = vmatprep.mubr.bf16.mxu0 %v1631
        %1800 = vmatmul.mubr.bf16.gmra.mrb[0].mxu0 %v1630
        %v1801 = vpop.f32.mrb[0].mxu0
        %v1802 = vadd.f32 %v1669, %v1801
        %v1803 = vpop.f32.mrb[0].mxu0
        %v1804 = vpop.f32.mrb[0].mxu0
        %v1805 = vpop.f32.mrb[0].mxu0
        %1806 = vdwg.mxu0
        %1807 = vst [vmem:[%s405] sm:$0xff] %v1802
        %s1808 = sand.u32 %s230, 1
        %s1809 = scalar_lea.sflag [#allocation4], %s1808
        %s1810 = sand.u32 %s230, 1
        %s1811 = smul.addr %s1810, 8
        %s1812 = scalar_lea.vmem [#allocation11], %s1811
        // Predicated region
        $region77: #{tpu_custom_call.1} parent=55 // pred_check
          %p1813 = pneg %p240
        $region78: #{tpu_custom_call.1} parent=55 // pred_check_branch
          %1815 = sbr.rel (%p1813) target = $region80
        $region79: #{tpu_custom_call.1} parent=55 // pred_region
          %s1817 = ssub.s32 128, 128
          %1818 = vsyncadd %s1809, %s1817
          %s1819 = smul.addr %s28, 128
          %s1820 = scalar_lea.hbm %s9, %s1819
          %s1822 = sshll.u32 %s1812, 4
          %s1823 = int_to_ptr.vmem [resolvable:$true] %s1822
          %1825 = dma.vmem_to_hbm [thread:$0]  %s1823, 128, %s1820, %s1809
        $region80: #{tpu_custom_call.1} parent=55 // pred_fallthru
          _
      $region56: #{tpu_custom_call.1} parent=5 // pred_fallthru
        _
      %p1826 = scmp.le.s32.totalorder 2, %s23
      // Predicated region
      $region81: #{tpu_custom_call.1} parent=5 // pred_check
        %p1827 = pneg %p1826
      $region82: #{tpu_custom_call.1} parent=5 // pred_check_branch
        %1829 = sbr.rel (%p1827) target = $region84
      $region83: #{tpu_custom_call.1} parent=5 // pred_region
        %s1830 = ssub.s32 %s23, 2
        // Predicated region
        $region85: #{tpu_custom_call.1} parent=83 // pred_check
          %p1831 = pneg %p246
        $region86: #{tpu_custom_call.1} parent=83 // pred_check_branch
          %1833 = sbr.rel (%p1831) target = $region88
        $region87: #{tpu_custom_call.1} parent=83 // pred_region
          %s1834 = sand.u32 %s231, 1
          %s1835 = scalar_lea.sflag [#allocation4], %s1834
          %s1836 = sand.u32 %s231, 1
          %s1837 = smul.addr %s1836, 8
          %s1838 = scalar_lea.vmem [#allocation11], %s1837
          %1839 = dma.done %s1835, 128
        $region88: #{tpu_custom_call.1} parent=83 // pred_fallthru
          _
      $region84: #{tpu_custom_call.1} parent=5 // pred_fallthru
        _
    $region6: #{tpu_custom_call.1} parent=1 // loop_footer
      %s27 = sadd.s32 1, %s23
    $region7: #{tpu_custom_call.1} parent=1 // loop_footer_branch
      %22 = sbr.rel target = $region3
    $region8: #{tpu_custom_call.1} parent=1 // loop_exit
      _
    %1840 = vsyncpa [#allocation3], 1
    %s1841 = scalar_lea.sflag [#allocation3], 1
    %1842 = vsyncpa %s1841, 1
    %1843 = vsyncpa [#allocation6], 1
    %1844 = vsyncpa [#allocation9], 1
    %1845 = vsyncpa [#allocation4], 1
    %s1846 = scalar_lea.sflag [#allocation4], 1
    %1847 = vsyncpa %s1846, 1

</llo_original>
